<compile_context>
chip_gen: v5e
topology: v5e:2x2
jax: 0.10.0
libtpu: 0.0.40
codegen_flags: <defaults>
</compile_context>

<pallas_src>
import functools

import numpy as np
import jax
import jax.numpy as jnp
from jax.experimental import pallas as pl
from jax.experimental.pallas import tpu as pltpu


# ---------------------------------------------------------------------------
# in-kernel helpers
# ---------------------------------------------------------------------------
def _layernorm(x, w, b, eps=1e-5):
    # LayerNorm always computed in fp32 (mirrors the fp16-safe LayerNorm subclass).
    x32 = x.astype(jnp.float32)
    mu = jnp.mean(x32, axis=-1, keepdims=True)
    var = jnp.mean(jnp.square(x32 - mu), axis=-1, keepdims=True)
    return (x32 - mu) * jax.lax.rsqrt(var + eps) * w.astype(jnp.float32) \
        + b.astype(jnp.float32)


def _round_up(n, m):
    return ((n + m - 1) // m) * m


def _vmem_limit_bytes():
    # Generation-aware budget: ~85% of physical VMEM with a 112 MiB cap.
    # v5e/v6e (128 MiB) -> ~108 MiB; v7x (64 MiB) -> ~54 MiB (headroom for
    # compiler-internal scratch).
    cap = 128 * 1024 * 1024
    try:
        cap = int(pltpu.get_tpu_info().vmem_capacity_bytes)
    except Exception:
        pass
    return max(32 * 1024 * 1024, min(int(cap * 0.85), 112 * 1024 * 1024))


# ---------------------------------------------------------------------------
# Pallas kernels
# ---------------------------------------------------------------------------
def patch_embed_kernel(p_ref, w_ref, cls_ref, pos_ref, lnw_ref, lnb_ref, o_ref,
                       *, s_real):
    # p_ref: (P, K) bf16 patches of one image; w_ref: (K, D) bf16 conv weight
    # cls_ref: (1, D) f32; pos_ref: (S_pad, D) f32; o_ref: (S_pad, D) f32
    s_pad, d = o_ref.shape
    lnw = lnw_ref[...]
    lnb = lnb_ref[...]
    emb = jnp.dot(p_ref[...], w_ref[...], preferred_element_type=jnp.float32)
    # write rows directly (no sublane concatenate, no extra (S_pad, D) temp)
    o_ref[0:1, :] = _layernorm(cls_ref[...] + pos_ref[0:1, :], lnw, lnb)
    o_ref[1:s_real, :] = _layernorm(emb + pos_ref[1:s_real, :], lnw, lnb)
    if s_pad > s_real:
        o_ref[s_real:, :] = jnp.zeros((s_pad - s_real, d), jnp.float32)


def fused_blocks_kernel(x_ref, ln1w_ref, ln1b_ref, wqkv_ref, bqkv_ref, wo_ref,
                        bo_ref, ln2w_ref, ln2b_ref, wfc_ref, bfc_ref, wpr_ref,
                        bpr_ref, o_ref, ctx_ref, *, heads, s_real):
    """All interior ResidualAttentionBlocks; grid = (batch, layer)."""
    bf16, f32 = jnp.bfloat16, jnp.float32

    # Residual stream lives in o_ref (same output block across the layer axis
    # -> VMEM-resident, written back to HBM only when the batch index changes).
    @pl.when(pl.program_id(1) == 0)
    def _():
        o_ref[...] = x_ref[...]

    x = o_ref[...]                                               # (S_pad, D) f32
    S, D = x.shape
    hd = D // heads
    scale = 1.0 / float(hd) ** 0.5

    # ---- multi-head self-attention (pre-LN); bf16 MXU inputs, f32 accum ----
    h = _layernorm(x, ln1w_ref[...], ln1b_ref[...]).astype(bf16)
    qkv = jnp.dot(h, wqkv_ref[...], preferred_element_type=f32) + bqkv_ref[...]
    q = (qkv[:, 0:D] * scale).astype(bf16)        # scale folded into q
    k = qkv[:, D:2 * D].astype(bf16)
    v = qkv[:, 2 * D:3 * D].astype(bf16)

    key_mask = jax.lax.broadcasted_iota(jnp.int32, (S, S), 1) < s_real

    # TODO(synk): lax.fori_loop (pl.ds lane slices) or heads grid axis for
    #             production head counts.
    for hi in range(heads):
        sl = slice(hi * hd, (hi + 1) * hd)
        # contract last dims directly -> no materialized k.T
        sc = jax.lax.dot_general(q[:, sl], k[:, sl],
                                 dimension_numbers=(((1,), (1,)), ((), ())),
                                 preferred_element_type=f32)      # (S, S)
        sc = jnp.where(key_mask, sc, jnp.float32(-1e30))
        sc = sc - jnp.max(sc, axis=-1, keepdims=True)
        p = jnp.exp(sc)
        p = p * pl.reciprocal(jnp.sum(p, axis=-1, keepdims=True), approx=True)
        # per-head context into a lane slice of the VMEM scratch
        ctx_ref[:, sl] = jnp.dot(p.astype(bf16), v[:, sl],
                                 preferred_element_type=f32)

    # single K=D output projection (full MXU contraction depth)
    attn = jnp.dot(ctx_ref[...].astype(bf16), wo_ref[...],
                   preferred_element_type=f32) + bo_ref[...]
    x = x + attn

    # ---- MLP with QuickGELU (pre-LN) ----
    h2 = _layernorm(x, ln2w_ref[...], ln2b_ref[...]).astype(bf16)
    ff = jnp.dot(h2, wfc_ref[...], preferred_element_type=f32) + bfc_ref[...]
    ff = ff * jax.nn.sigmoid(1.702 * ff)
    ff = jnp.dot(ff.astype(bf16), wpr_ref[...], preferred_element_type=f32) \
        + bpr_ref[...]
    o_ref[...] = x + ff


def final_block_kernel(x_ref, ln1w_ref, ln1b_ref, wqkv_ref, bqkv_ref, wo_ref,
                       bo_ref, ln2w_ref, ln2b_ref, wfc_ref, bfc_ref, wpr_ref,
                       bpr_ref, lnpw_ref, lnpb_ref, cls_ref, *, heads, s_real):
    """Last ResidualAttentionBlock restricted to the cls row + fused ln_post."""
    bf16, f32 = jnp.bfloat16, jnp.float32
    x = x_ref[...]                                              # (S_pad, D) f32
    S, D = x.shape
    hd = D // heads
    scale = 1.0 / float(hd) ** 0.5

    h = _layernorm(x, ln1w_ref[...], ln1b_ref[...]).astype(bf16)
    # query projection for the cls row only; key/value for all rows
    q0 = (jnp.dot(h[0:1, :], wqkv_ref[:, 0:D], preferred_element_type=f32)
          + bqkv_ref[:, 0:D]) * scale                           # (1, D)
    k = jnp.dot(h, wqkv_ref[:, D:2 * D], preferred_element_type=f32) \
        + bqkv_ref[:, D:2 * D]                                  # (S, D)
    v = jnp.dot(h, wqkv_ref[:, 2 * D:3 * D], preferred_element_type=f32) \
        + bqkv_ref[:, 2 * D:3 * D]                              # (S, D)

    key_mask = jax.lax.broadcasted_iota(jnp.int32, (1, S), 1) < s_real
    attn0 = jnp.zeros((1, D), f32)
    for hi in range(heads):
        sl = slice(hi * hd, (hi + 1) * hd)
        sc = jax.lax.dot_general(q0[:, sl].astype(bf16), k[:, sl].astype(bf16),
                                 dimension_numbers=(((1,), (1,)), ((), ())),
                                 preferred_element_type=f32)    # (1, S)
        sc = jnp.where(key_mask, sc, jnp.float32(-1e30))
        sc = sc - jnp.max(sc, axis=-1, keepdims=True)
        p = jnp.exp(sc)
        p = p * pl.reciprocal(jnp.sum(p, axis=-1, keepdims=True), approx=True)
        ctx = jnp.dot(p.astype(bf16), v[:, sl].astype(bf16),
                      preferred_element_type=f32)               # (1, hd)
        attn0 = attn0 + jnp.dot(ctx.astype(bf16), wo_ref[sl, :],
                                preferred_element_type=f32)
    x0 = x[0:1, :] + attn0 + bo_ref[...]

    # MLP on the single cls row only
    h2 = _layernorm(x0, ln2w_ref[...], ln2b_ref[...]).astype(bf16)
    ff = jnp.dot(h2, wfc_ref[...], preferred_element_type=f32) + bfc_ref[...]
    ff = ff * jax.nn.sigmoid(1.702 * ff)
    x0 = x0 + jnp.dot(ff.astype(bf16), wpr_ref[...],
                      preferred_element_type=f32) + bpr_ref[...]
    cls_ref[...] = _layernorm(x0, lnpw_ref[...], lnpb_ref[...]).astype(
        cls_ref.dtype)


# ---------------------------------------------------------------------------
# parameter initialization (deterministic, synthetic, layer-stacked)
# ---------------------------------------------------------------------------
def _trunc_normal(key, shape, std):
    return std * jax.random.truncated_normal(key, -2.0, 2.0, shape, jnp.float32)


def init_vit_params(key, *, img_size, patch_size, in_chans, emb_dim, layers, heads):
    del heads
    gh = img_size[0] // patch_size[0]
    gw = img_size[1] // patch_size[1]
    P = gh * gw
    K = in_chans * patch_size[0] * patch_size[1]
    D = emb_dim
    L = layers
    scale = D ** (-0.5)
    kconv, kcls, kpos, kq, ko, kfc, kpr = jax.random.split(key, 7)
    bf16, f32 = jnp.bfloat16, jnp.float32

    return {
        # conv weight stored already flattened & transposed: (K, D), bf16 for the MXU
        "conv_w": _trunc_normal(kconv, (K, D), 0.02).astype(bf16),
        "cls": scale * jax.random.normal(kcls, (1, D), f32),
        "pos": scale * jax.random.normal(kpos, (P + 1, D), f32),
        "ln_pre_w": jnp.ones((1, D), f32),
        "ln_pre_b": jnp.zeros((1, D), f32),
        "ln_post_w": jnp.ones((1, D), f32),
        "ln_post_b": jnp.zeros((1, D), f32),
        # per-layer weights stacked along a leading layer axis (fused kernel
        # indexes them by the layer grid coordinate); linear weights stored
        # transposed (x @ W) and in bf16; biases in f32.
        "blocks": {
            "ln1_w": jnp.ones((L, 1, D), f32),
            "ln1_b": jnp.zeros((L, 1, D), f32),
            "wqkv": _trunc_normal(kq, (L, D, 3 * D), 0.02).astype(bf16),
            "bqkv": jnp.zeros((L, 1, 3 * D), f32),
            "wo": _trunc_normal(ko, (L, D, D), 0.02).astype(bf16),
            "bo": jnp.zeros((L, 1, D), f32),
            "ln2_w": jnp.ones((L, 1, D), f32),
            "ln2_b": jnp.zeros((L, 1, D), f32),
            "wfc": _trunc_normal(kfc, (L, D, 4 * D), 0.02).astype(bf16),
            "bfc": jnp.zeros((L, 1, 4 * D), f32),
            "wpr": _trunc_normal(kpr, (L, 4 * D, D), 0.02).astype(bf16),
            "bpr": jnp.zeros((L, 1, D), f32),
        },
    }


# ---------------------------------------------------------------------------
# forward pass (Pallas) + pure-JAX reference
# ---------------------------------------------------------------------------
def _extract_patches(x, patch_size):
    # x: (B, C, H, W) NCHW -> (B, P, C*ph*pw); patch order matches the
    # conv->reshape->permute sequence of the PyTorch module.
    B, C, H, W = x.shape
    ph, pw = patch_size
    gh, gw = H // ph, W // pw
    x = x.reshape(B, C, gh, ph, gw, pw)
    x = x.transpose(0, 2, 4, 1, 3, 5)             # (B, gh, gw, C, ph, pw)
    return x.reshape(B, gh * gw, C * ph * pw)


def vit_forward_pallas(x, params, *, patch_size, heads):
    B, C, H, W = x.shape
    ph, pw = patch_size
    P = (H // ph) * (W // pw)
    K = C * ph * pw
    D = params["conv_w"].shape[1]
    S = P + 1
    S_pad = _round_up(S, 16)                      # bf16-friendly sublane alignment

    patches = _extract_patches(x, patch_size).astype(jnp.bfloat16)   # glue
    pos_pad = jnp.pad(params["pos"], ((0, S_pad - S), (0, 0)))       # glue

    vmem_limit = _vmem_limit_bytes()
    cp1 = pltpu.CompilerParams(dimension_semantics=("parallel",),
                               vmem_limit_bytes=vmem_limit)
    cp2 = pltpu.CompilerParams(dimension_semantics=("parallel", "arbitrary"),
                               vmem_limit_bytes=vmem_limit)

    # ---- patch embedding + cls/pos + ln_pre --------------------------------
    tok = pl.pallas_call(
        functools.partial(patch_embed_kernel, s_real=S),
        out_shape=jax.ShapeDtypeStruct((B, S_pad, D), jnp.float32),
        grid=(B,),
        in_specs=[
            pl.BlockSpec((None, P, K), lambda b: (b, 0, 0)),
            pl.BlockSpec((K, D), lambda b: (0, 0)),
            pl.BlockSpec((1, D), lambda b: (0, 0)),
            pl.BlockSpec((S_pad, D), lambda b: (0, 0)),
            pl.BlockSpec((1, D), lambda b: (0, 0)),
            pl.BlockSpec((1, D), lambda b: (0, 0)),
        ],
        out_specs=pl.BlockSpec((None, S_pad, D), lambda b: (b, 0, 0)),
        compiler_params=cp1,
    )(patches, params["conv_w"], params["cls"], pos_pad,
      params["ln_pre_w"], params["ln_pre_b"])

    blk = params["blocks"]
    stacked = (blk["ln1_w"], blk["ln1_b"], blk["wqkv"], blk["bqkv"], blk["wo"],
               blk["bo"], blk["ln2_w"], blk["ln2_b"], blk["wfc"], blk["bfc"],
               blk["wpr"], blk["bpr"])
    L = blk["wqkv"].shape[0]

    # ---- all interior layers fused into ONE pallas_call --------------------
    if L > 1:
        w_specs = [pl.BlockSpec((None,) + tuple(w.shape[1:]),
                                lambda b, l: (l, 0, 0)) for w in stacked]
        tok = pl.pallas_call(
            functools.partial(fused_blocks_kernel, heads=heads, s_real=S),
            out_shape=jax.ShapeDtypeStruct((B, S_pad, D), jnp.float32),
            grid=(B, L - 1),
            in_specs=[pl.BlockSpec((None, S_pad, D), lambda b, l: (b, 0, 0))]
                     + w_specs,
            out_specs=pl.BlockSpec((None, S_pad, D), lambda b, l: (b, 0, 0)),
            scratch_shapes=[pltpu.VMEM((S_pad, D), jnp.float32)],
            input_output_aliases={0: 0},          # residual stream updated in place
            compiler_params=cp2,
        )(tok, *stacked)

    # ---- final layer: cls-row-only attention + MLP, fused ln_post ----------
    last = L - 1
    w_specs_last = [pl.BlockSpec((None,) + tuple(w.shape[1:]),
                                 lambda b: (last, 0, 0)) for w in stacked]
    cls_out = pl.pallas_call(
        functools.partial(final_block_kernel, heads=heads, s_real=S),
        out_shape=jax.ShapeDtypeStruct((B, 1, D), jnp.float32),
        grid=(B,),
        in_specs=[pl.BlockSpec((None, S_pad, D), lambda b: (b, 0, 0))]
                 + w_specs_last
                 + [pl.BlockSpec((1, D), lambda b: (0, 0)),
                    pl.BlockSpec((1, D), lambda b: (0, 0))],
        out_specs=pl.BlockSpec((None, 1, D), lambda b: (b, 0, 0)),
        compiler_params=cp1,
    )(tok, *stacked, params["ln_post_w"], params["ln_post_b"])

    return cls_out[:, 0, :]


def vit_forward_ref(x, params, *, patch_size, heads):
    """Pure-JAX reference of the same math (bf16 matmul inputs, f32 accumulation)."""
    B = x.shape[0]
    D = params["conv_w"].shape[1]
    hd = D // heads
    f32, bf16 = jnp.float32, jnp.bfloat16

    patches = _extract_patches(x, patch_size).astype(bf16)
    emb = jnp.einsum("bpk,kd->bpd", patches, params["conv_w"],
                     preferred_element_type=f32)
    cls = jnp.broadcast_to(params["cls"][None].astype(f32), (B, 1, D))
    tok = jnp.concatenate([cls, emb], axis=1) + params["pos"][None]
    tok = _layernorm(tok, params["ln_pre_w"], params["ln_pre_b"])
    S = tok.shape[1]
    blk = params["blocks"]
    L = blk["wqkv"].shape[0]
    for li in range(L):
        h = _layernorm(tok, blk["ln1_w"][li], blk["ln1_b"][li]).astype(bf16)
        qkv = jnp.einsum("bsd,de->bse", h, blk["wqkv"][li],
                         preferred_element_type=f32) + blk["bqkv"][li]
        q, k, v = jnp.split(qkv, 3, axis=-1)
        sp = lambda t: t.reshape(B, S, heads, hd).transpose(0, 2, 1, 3).astype(bf16)
        q, k, v = sp(q), sp(k), sp(v)
        sc = jnp.einsum("bhqd,bhkd->bhqk", q, k,
                        preferred_element_type=f32) / jnp.sqrt(jnp.float32(hd))
        p = jax.nn.softmax(sc, axis=-1)
        ctx = jnp.einsum("bhqk,bhkd->bhqd", p.astype(bf16), v,
                         preferred_element_type=f32)
        ctx = ctx.transpose(0, 2, 1, 3).reshape(B, S, D)
        tok = tok + jnp.einsum("bsd,de->bse", ctx.astype(bf16), blk["wo"][li],
                               preferred_element_type=f32) + blk["bo"][li]
        h2 = _layernorm(tok, blk["ln2_w"][li], blk["ln2_b"][li]).astype(bf16)
        ff = jnp.einsum("bsd,de->bse", h2, blk["wfc"][li],
                        preferred_element_type=f32) + blk["bfc"][li]
        ff = ff * jax.nn.sigmoid(1.702 * ff)
        tok = tok + jnp.einsum("bse,ed->bsd", ff.astype(bf16), blk["wpr"][li],
                               preferred_element_type=f32) + blk["bpr"][li]
    return _layernorm(tok[:, 0, :], params["ln_post_w"], params["ln_post_b"])


# ---------------------------------------------------------------------------
# main
# ---------------------------------------------------------------------------
if __name__ == "__main__":
    # Small but consistent configuration: img 16x16, patch 8x8 -> 4 patches + cls.
    B, C = 2, 4
    img_size = (16, 16)
    patch_size = (8, 8)
    emb_dim = 32
    layers = 2
    heads = 4

    key = jax.random.PRNGKey(0)
    k_params, k_x = jax.random.split(key)
    params = init_vit_params(k_params, img_size=img_size, patch_size=patch_size,
                             in_chans=C, emb_dim=emb_dim, layers=layers, heads=heads)
    x = jax.random.normal(k_x, (B, C, img_size[0], img_size[1]), jnp.float32)

    fwd = jax.jit(functools.partial(vit_forward_pallas,
                                    patch_size=patch_size, heads=heads))
    out = jax.block_until_ready(fwd(x, params))

    ref_fn = jax.jit(functools.partial(vit_forward_ref,
                                       patch_size=patch_size, heads=heads))
    ref = jax.block_until_ready(ref_fn(x, params))

    np.testing.assert_allclose(np.asarray(out), np.asarray(ref), rtol=2e-2, atol=2e-2)
    assert out.shape == (B, emb_dim)
    print("KERNEL_OK")
</pallas_src>

<mosaic_0001>
module attributes {stable_mosaic.version = 11 : i64} {
  func.func @patch_embed_kernel(%arg0: i32, %arg1: memref<1x4x256xbf16, #tpu.memory_space<vmem>>, %arg2: memref<256x32xbf16, #tpu.memory_space<vmem>>, %arg3: memref<1x32xf32, #tpu.memory_space<vmem>>, %arg4: memref<16x32xf32, #tpu.memory_space<vmem>>, %arg5: memref<1x32xf32, #tpu.memory_space<vmem>>, %arg6: memref<1x32xf32, #tpu.memory_space<vmem>>, %arg7: memref<1x16x32xf32, #tpu.memory_space<vmem>>) attributes {dimension_semantics = [#tpu.dimension_semantics<parallel>], iteration_bounds = array<i64: 2>, scalar_prefetch = 0 : i64, scratch_operands = 0 : i64, tpu.core_type = #tpu.core_type<tc>, window_params = [{transform_indices = @transform_0, window_bounds = array<i64: 1, 4, 256>}, {pipeline_mode = #tpu.pipeline_mode<synchronous>, transform_indices = @transform_1, window_bounds = array<i64: 256, 32>}, {pipeline_mode = #tpu.pipeline_mode<synchronous>, transform_indices = @transform_2, window_bounds = array<i64: 1, 32>}, {pipeline_mode = #tpu.pipeline_mode<synchronous>, transform_indices = @transform_3, window_bounds = array<i64: 16, 32>}, {pipeline_mode = #tpu.pipeline_mode<synchronous>, transform_indices = @transform_4, window_bounds = array<i64: 1, 32>}, {pipeline_mode = #tpu.pipeline_mode<synchronous>, transform_indices = @transform_5, window_bounds = array<i64: 1, 32>}, {transform_indices = @transform_6, window_bounds = array<i64: 1, 16, 32>}]} {
    %c0 = arith.constant 0 : index
    %c0_0 = arith.constant 0 : index
    %0 = vector.load %arg5[%c0, %c0_0] : memref<1x32xf32, #tpu.memory_space<vmem>>, vector<1x32xf32>
    %c0_1 = arith.constant 0 : index
    %c0_2 = arith.constant 0 : index
    %1 = vector.load %arg6[%c0_1, %c0_2] : memref<1x32xf32, #tpu.memory_space<vmem>>, vector<1x32xf32>
    %c0_3 = arith.constant 0 : index
    %c0_4 = arith.constant 0 : index
    %c0_5 = arith.constant 0 : index
    %2 = vector.load %arg1[%c0_3, %c0_4, %c0_5] : memref<1x4x256xbf16, #tpu.memory_space<vmem>>, vector<1x4x256xbf16>
    %3 = vector.shape_cast %2 : vector<1x4x256xbf16> to vector<4x256xbf16>
    %c0_6 = arith.constant 0 : index
    %c0_7 = arith.constant 0 : index
    %4 = vector.load %arg2[%c0_6, %c0_7] : memref<256x32xbf16, #tpu.memory_space<vmem>>, vector<256x32xbf16>
    %cst = arith.constant dense<0.000000e+00> : vector<4x32xf32>
    %5 = tpu.matmul %3, %4, %cst {dimension_numbers = #tpu.dot_dimension_numbers<[1], [0], [0], [1], [0, 0, 1, 1], [], []>} : vector<4x256xbf16>, vector<256x32xbf16>, vector<4x32xf32> -> vector<4x32xf32>
    %c0_8 = arith.constant 0 : index
    %c0_9 = arith.constant 0 : index
    %6 = vector.load %arg3[%c0_8, %c0_9] : memref<1x32xf32, #tpu.memory_space<vmem>>, vector<1x32xf32>
    %c0_10 = arith.constant 0 : index
    %c0_11 = arith.constant 0 : index
    %7 = vector.load %arg4[%c0_10, %c0_11] : memref<16x32xf32, #tpu.memory_space<vmem>>, vector<1x32xf32>
    %8 = arith.addf %6, %7 : vector<1x32xf32>
    %cst_12 = arith.constant dense<0.000000e+00> : vector<1xf32>
    %9 = vector.multi_reduction <add>, %8, %cst_12 [1] : vector<1x32xf32> to vector<1xf32>
    %10 = vector.shape_cast %9 : vector<1xf32> to vector<1x1xf32>
    %cst_13 = arith.constant 3.200000e+01 : f32
    %11 = vector.broadcast %cst_13 : f32 to vector<1x1xf32>
    %12 = arith.divf %10, %11 : vector<1x1xf32>
    %13 = vector.broadcast %12 : vector<1x1xf32> to vector<1x32xf32>
    %14 = arith.subf %8, %13 : vector<1x32xf32>
    %15 = arith.mulf %14, %14 : vector<1x32xf32>
    %cst_14 = arith.constant dense<0.000000e+00> : vector<1xf32>
    %16 = vector.multi_reduction <add>, %15, %cst_14 [1] : vector<1x32xf32> to vector<1xf32>
    %17 = vector.shape_cast %16 : vector<1xf32> to vector<1x1xf32>
    %cst_15 = arith.constant 3.200000e+01 : f32
    %18 = vector.broadcast %cst_15 : f32 to vector<1x1xf32>
    %19 = arith.divf %17, %18 : vector<1x1xf32>
    %20 = vector.broadcast %12 : vector<1x1xf32> to vector<1x32xf32>
    %21 = arith.subf %8, %20 : vector<1x32xf32>
    %cst_16 = arith.constant 9.99999974E-6 : f32
    %22 = vector.broadcast %cst_16 : f32 to vector<1x1xf32>
    %23 = arith.addf %19, %22 : vector<1x1xf32>
    %24 = math.rsqrt %23 : vector<1x1xf32>
    %25 = vector.broadcast %24 : vector<1x1xf32> to vector<1x32xf32>
    %26 = arith.mulf %21, %25 : vector<1x32xf32>
    %27 = arith.mulf %26, %0 : vector<1x32xf32>
    %28 = arith.addf %27, %1 : vector<1x32xf32>
    %c0_17 = arith.constant 0 : index
    %c0_18 = arith.constant 0 : index
    %c0_19 = arith.constant 0 : index
    %29 = vector.load %arg7[%c0_17, %c0_18, %c0_19] : memref<1x16x32xf32, #tpu.memory_space<vmem>>, vector<1x1x32xf32>
    %30 = vector.shape_cast %29 : vector<1x1x32xf32> to vector<1x32xf32>
    %31 = vector.shape_cast %28 : vector<1x32xf32> to vector<1x1x32xf32>
    tpu.vector_store %arg7[%c0_17, %c0_18, %c0_19], %31 {strides = array<i32>} : memref<1x16x32xf32, #tpu.memory_space<vmem>>, vector<1x1x32xf32>,
    %c1 = arith.constant 1 : index
    %c0_20 = arith.constant 0 : index
    %32 = vector.load %arg4[%c1, %c0_20] : memref<16x32xf32, #tpu.memory_space<vmem>>, vector<4x32xf32>
    %33 = arith.addf %5, %32 : vector<4x32xf32>
    %cst_21 = arith.constant dense<0.000000e+00> : vector<4xf32>
    %34 = vector.multi_reduction <add>, %33, %cst_21 [1] : vector<4x32xf32> to vector<4xf32>
    %35 = vector.shape_cast %34 : vector<4xf32> to vector<4x1xf32>
    %cst_22 = arith.constant 3.200000e+01 : f32
    %36 = vector.broadcast %cst_22 : f32 to vector<4x1xf32>
    %37 = arith.divf %35, %36 : vector<4x1xf32>
    %38 = vector.broadcast %37 : vector<4x1xf32> to vector<4x32xf32>
    %39 = arith.subf %33, %38 : vector<4x32xf32>
    %40 = arith.mulf %39, %39 : vector<4x32xf32>
    %cst_23 = arith.constant dense<0.000000e+00> : vector<4xf32>
    %41 = vector.multi_reduction <add>, %40, %cst_23 [1] : vector<4x32xf32> to vector<4xf32>
    %42 = vector.shape_cast %41 : vector<4xf32> to vector<4x1xf32>
    %cst_24 = arith.constant 3.200000e+01 : f32
    %43 = vector.broadcast %cst_24 : f32 to vector<4x1xf32>
    %44 = arith.divf %42, %43 : vector<4x1xf32>
    %45 = vector.broadcast %37 : vector<4x1xf32> to vector<4x32xf32>
    %46 = arith.subf %33, %45 : vector<4x32xf32>
    %cst_25 = arith.constant 9.99999974E-6 : f32
    %47 = vector.broadcast %cst_25 : f32 to vector<4x1xf32>
    %48 = arith.addf %44, %47 : vector<4x1xf32>
    %49 = math.rsqrt %48 : vector<4x1xf32>
    %50 = vector.broadcast %49 : vector<4x1xf32> to vector<4x32xf32>
    %51 = arith.mulf %46, %50 : vector<4x32xf32>
    %52 = vector.broadcast %0 : vector<1x32xf32> to vector<4x32xf32>
    %53 = arith.mulf %51, %52 : vector<4x32xf32>
    %54 = vector.broadcast %1 : vector<1x32xf32> to vector<4x32xf32>
    %55 = arith.addf %53, %54 : vector<4x32xf32>
    %c0_26 = arith.constant 0 : index
    %c1_27 = arith.constant 1 : index
    %c0_28 = arith.constant 0 : index
    %56 = vector.load %arg7[%c0_26, %c1_27, %c0_28] : memref<1x16x32xf32, #tpu.memory_space<vmem>>, vector<1x4x32xf32>
    %57 = vector.shape_cast %56 : vector<1x4x32xf32> to vector<4x32xf32>
    %58 = vector.shape_cast %55 : vector<4x32xf32> to vector<1x4x32xf32>
    tpu.vector_store %arg7[%c0_26, %c1_27, %c0_28], %58 {strides = array<i32>} : memref<1x16x32xf32, #tpu.memory_space<vmem>>, vector<1x4x32xf32>,
    %cst_29 = arith.constant 0.000000e+00 : f32
    %59 = vector.broadcast %cst_29 : f32 to vector<11x32xf32>
    %c0_30 = arith.constant 0 : index
    %c5 = arith.constant 5 : index
    %c0_31 = arith.constant 0 : index
    %60 = vector.load %arg7[%c0_30, %c5, %c0_31] : memref<1x16x32xf32, #tpu.memory_space<vmem>>, vector<1x11x32xf32>
    %61 = vector.shape_cast %60 : vector<1x11x32xf32> to vector<11x32xf32>
    %62 = vector.shape_cast %59 : vector<11x32xf32> to vector<1x11x32xf32>
    tpu.vector_store %arg7[%c0_30, %c5, %c0_31], %62 {strides = array<i32>} : memref<1x16x32xf32, #tpu.memory_space<vmem>>, vector<1x11x32xf32>,
    return
  }
  func.func @transform_0(%arg0: i32) -> (i32, i32, i32) {
    %c0_i32 = arith.constant 0 : i32
    %c0_i32_0 = arith.constant 0 : i32
    %c0_i32_1 = arith.constant 0 : i32
    return %arg0, %c0_i32, %c0_i32_0 : i32, i32, i32
  }
  func.func @transform_1(%arg0: i32) -> (i32, i32) {
    %c0_i32 = arith.constant 0 : i32
    %c0_i32_0 = arith.constant 0 : i32
    %c0_i32_1 = arith.constant 0 : i32
    return %c0_i32, %c0_i32_0 : i32, i32
  }
  func.func @transform_2(%arg0: i32) -> (i32, i32) {
    %c0_i32 = arith.constant 0 : i32
    %c0_i32_0 = arith.constant 0 : i32
    %c0_i32_1 = arith.constant 0 : i32
    return %c0_i32, %c0_i32_0 : i32, i32
  }
  func.func @transform_3(%arg0: i32) -> (i32, i32) {
    %c0_i32 = arith.constant 0 : i32
    %c0_i32_0 = arith.constant 0 : i32
    %c0_i32_1 = arith.constant 0 : i32
    return %c0_i32, %c0_i32_0 : i32, i32
  }
  func.func @transform_4(%arg0: i32) -> (i32, i32) {
    %c0_i32 = arith.constant 0 : i32
    %c0_i32_0 = arith.constant 0 : i32
    %c0_i32_1 = arith.constant 0 : i32
    return %c0_i32, %c0_i32_0 : i32, i32
  }
  func.func @transform_5(%arg0: i32) -> (i32, i32) {
    %c0_i32 = arith.constant 0 : i32
    %c0_i32_0 = arith.constant 0 : i32
    %c0_i32_1 = arith.constant 0 : i32
    return %c0_i32, %c0_i32_0 : i32, i32
  }
  func.func @transform_6(%arg0: i32) -> (i32, i32, i32) {
    %c0_i32 = arith.constant 0 : i32
    %c0_i32_0 = arith.constant 0 : i32
    %c0_i32_1 = arith.constant 0 : i32
    return %arg0, %c0_i32, %c0_i32_0 : i32, i32, i32
  }
}

module attributes {stable_mosaic.version = 11 : i64} {
  func.func @final_block_kernel(%arg0: i32, %arg1: memref<1x16x32xf32, #tpu.memory_space<vmem>>, %arg2: memref<1x1x32xf32, #tpu.memory_space<vmem>>, %arg3: memref<1x1x32xf32, #tpu.memory_space<vmem>>, %arg4: memref<1x32x96xbf16, #tpu.memory_space<vmem>>, %arg5: memref<1x1x96xf32, #tpu.memory_space<vmem>>, %arg6: memref<1x32x32xbf16, #tpu.memory_space<vmem>>, %arg7: memref<1x1x32xf32, #tpu.memory_space<vmem>>, %arg8: memref<1x1x32xf32, #tpu.memory_space<vmem>>, %arg9: memref<1x1x32xf32, #tpu.memory_space<vmem>>, %arg10: memref<1x32x128xbf16, #tpu.memory_space<vmem>>, %arg11: memref<1x1x128xf32, #tpu.memory_space<vmem>>, %arg12: memref<1x128x32xbf16, #tpu.memory_space<vmem>>, %arg13: memref<1x1x32xf32, #tpu.memory_space<vmem>>, %arg14: memref<1x32xf32, #tpu.memory_space<vmem>>, %arg15: memref<1x32xf32, #tpu.memory_space<vmem>>, %arg16: memref<1x1x32xf32, #tpu.memory_space<vmem>>) attributes {dimension_semantics = [#tpu.dimension_semantics<parallel>], iteration_bounds = array<i64: 2>, scalar_prefetch = 0 : i64, scratch_operands = 0 : i64, tpu.core_type = #tpu.core_type<tc>, window_params = [{transform_indices = @transform_0, window_bounds = array<i64: 1, 16, 32>}, {transform_indices = @transform_1, window_bounds = array<i64: 1, 1, 32>}, {transform_indices = @transform_2, window_bounds = array<i64: 1, 1, 32>}, {transform_indices = @transform_3, window_bounds = array<i64: 1, 32, 96>}, {transform_indices = @transform_4, window_bounds = array<i64: 1, 1, 96>}, {transform_indices = @transform_5, window_bounds = array<i64: 1, 32, 32>}, {transform_indices = @transform_6, window_bounds = array<i64: 1, 1, 32>}, {transform_indices = @transform_7, window_bounds = array<i64: 1, 1, 32>}, {transform_indices = @transform_8, window_bounds = array<i64: 1, 1, 32>}, {transform_indices = @transform_9, window_bounds = array<i64: 1, 32, 128>}, {transform_indices = @transform_10, window_bounds = array<i64: 1, 1, 128>}, {transform_indices = @transform_11, window_bounds = array<i64: 1, 128, 32>}, {transform_indices = @transform_12, window_bounds = array<i64: 1, 1, 32>}, {pipeline_mode = #tpu.pipeline_mode<synchronous>, transform_indices = @transform_13, window_bounds = array<i64: 1, 32>}, {pipeline_mode = #tpu.pipeline_mode<synchronous>, transform_indices = @transform_14, window_bounds = array<i64: 1, 32>}, {transform_indices = @transform_15, window_bounds = array<i64: 1, 1, 32>}]} {
    %c0 = arith.constant 0 : index
    %c0_0 = arith.constant 0 : index
    %c0_1 = arith.constant 0 : index
    %0 = vector.load %arg1[%c0, %c0_0, %c0_1] : memref<1x16x32xf32, #tpu.memory_space<vmem>>, vector<1x16x32xf32>
    %1 = vector.shape_cast %0 : vector<1x16x32xf32> to vector<16x32xf32>
    %c0_2 = arith.constant 0 : index
    %c0_3 = arith.constant 0 : index
    %c0_4 = arith.constant 0 : index
    %2 = vector.load %arg2[%c0_2, %c0_3, %c0_4] : memref<1x1x32xf32, #tpu.memory_space<vmem>>, vector<1x1x32xf32>
    %3 = vector.shape_cast %2 : vector<1x1x32xf32> to vector<1x32xf32>
    %c0_5 = arith.constant 0 : index
    %c0_6 = arith.constant 0 : index
    %c0_7 = arith.constant 0 : index
    %4 = vector.load %arg3[%c0_5, %c0_6, %c0_7] : memref<1x1x32xf32, #tpu.memory_space<vmem>>, vector<1x1x32xf32>
    %5 = vector.shape_cast %4 : vector<1x1x32xf32> to vector<1x32xf32>
    %cst = arith.constant dense<0.000000e+00> : vector<16xf32>
    %6 = vector.multi_reduction <add>, %1, %cst [1] : vector<16x32xf32> to vector<16xf32>
    %7 = vector.shape_cast %6 : vector<16xf32> to vector<16x1xf32>
    %cst_8 = arith.constant 3.200000e+01 : f32
    %8 = vector.broadcast %cst_8 : f32 to vector<16x1xf32>
    %9 = arith.divf %7, %8 : vector<16x1xf32>
    %10 = vector.broadcast %9 : vector<16x1xf32> to vector<16x32xf32>
    %11 = arith.subf %1, %10 : vector<16x32xf32>
    %12 = arith.mulf %11, %11 : vector<16x32xf32>
    %cst_9 = arith.constant dense<0.000000e+00> : vector<16xf32>
    %13 = vector.multi_reduction <add>, %12, %cst_9 [1] : vector<16x32xf32> to vector<16xf32>
    %14 = vector.shape_cast %13 : vector<16xf32> to vector<16x1xf32>
    %cst_10 = arith.constant 3.200000e+01 : f32
    %15 = vector.broadcast %cst_10 : f32 to vector<16x1xf32>
    %16 = arith.divf %14, %15 : vector<16x1xf32>
    %17 = vector.broadcast %9 : vector<16x1xf32> to vector<16x32xf32>
    %18 = arith.subf %1, %17 : vector<16x32xf32>
    %cst_11 = arith.constant 9.99999974E-6 : f32
    %19 = vector.broadcast %cst_11 : f32 to vector<16x1xf32>
    %20 = arith.addf %16, %19 : vector<16x1xf32>
    %21 = math.rsqrt %20 : vector<16x1xf32>
    %22 = vector.broadcast %21 : vector<16x1xf32> to vector<16x32xf32>
    %23 = arith.mulf %18, %22 : vector<16x32xf32>
    %24 = vector.broadcast %3 : vector<1x32xf32> to vector<16x32xf32>
    %25 = arith.mulf %23, %24 : vector<16x32xf32>
    %26 = vector.broadcast %5 : vector<1x32xf32> to vector<16x32xf32>
    %27 = arith.addf %25, %26 : vector<16x32xf32>
    %28 = arith.truncf %27 : vector<16x32xf32> to vector<16x32xbf16>
    %29 = vector.extract_strided_slice %28 {offsets = [0, 0], sizes = [1, 32], strides = [1, 1]} : vector<16x32xbf16> to vector<1x32xbf16>
    %c0_12 = arith.constant 0 : index
    %c0_13 = arith.constant 0 : index
    %c0_14 = arith.constant 0 : index
    %30 = vector.load %arg4[%c0_12, %c0_13, %c0_14] : memref<1x32x96xbf16, #tpu.memory_space<vmem>>, vector<1x32x32xbf16>
    %31 = vector.shape_cast %30 : vector<1x32x32xbf16> to vector<32x32xbf16>
    %cst_15 = arith.constant dense<0.000000e+00> : vector<1x32xf32>
    %32 = tpu.matmul %29, %31, %cst_15 {dimension_numbers = #tpu.dot_dimension_numbers<[1], [0], [0], [1], [0, 0, 1, 1], [], []>} : vector<1x32xbf16>, vector<32x32xbf16>, vector<1x32xf32> -> vector<1x32xf32>
    %c0_16 = arith.constant 0 : index
    %c0_17 = arith.constant 0 : index
    %c0_18 = arith.constant 0 : index
    %33 = vector.load %arg5[%c0_16, %c0_17, %c0_18] : memref<1x1x96xf32, #tpu.memory_space<vmem>>, vector<1x1x32xf32>
    %34 = vector.shape_cast %33 : vector<1x1x32xf32> to vector<1x32xf32>
    %35 = arith.addf %32, %34 : vector<1x32xf32>
    %cst_19 = arith.constant 0.353553385 : f32
    %36 = vector.broadcast %cst_19 : f32 to vector<1x32xf32>
    %37 = arith.mulf %35, %36 : vector<1x32xf32>
    %c0_20 = arith.constant 0 : index
    %c0_21 = arith.constant 0 : index
    %c32 = arith.constant 32 : index
    %38 = vector.load %arg4[%c0_20, %c0_21, %c32] : memref<1x32x96xbf16, #tpu.memory_space<vmem>>, vector<1x32x32xbf16>
    %39 = vector.shape_cast %38 : vector<1x32x32xbf16> to vector<32x32xbf16>
    %cst_22 = arith.constant dense<0.000000e+00> : vector<16x32xf32>
    %40 = tpu.matmul %28, %39, %cst_22 {dimension_numbers = #tpu.dot_dimension_numbers<[1], [0], [0], [1], [0, 0, 1, 1], [], []>} : vector<16x32xbf16>, vector<32x32xbf16>, vector<16x32xf32> -> vector<16x32xf32>
    %c0_23 = arith.constant 0 : index
    %c0_24 = arith.constant 0 : index
    %c32_25 = arith.constant 32 : index
    %41 = vector.load %arg5[%c0_23, %c0_24, %c32_25] : memref<1x1x96xf32, #tpu.memory_space<vmem>>, vector<1x1x32xf32>
    %42 = vector.shape_cast %41 : vector<1x1x32xf32> to vector<1x32xf32>
    %43 = vector.broadcast %42 : vector<1x32xf32> to vector<16x32xf32>
    %44 = arith.addf %40, %43 : vector<16x32xf32>
    %c0_26 = arith.constant 0 : index
    %c0_27 = arith.constant 0 : index
    %c64 = arith.constant 64 : index
    %45 = vector.load %arg4[%c0_26, %c0_27, %c64] : memref<1x32x96xbf16, #tpu.memory_space<vmem>>, vector<1x32x32xbf16>
    %46 = vector.shape_cast %45 : vector<1x32x32xbf16> to vector<32x32xbf16>
    %cst_28 = arith.constant dense<0.000000e+00> : vector<16x32xf32>
    %47 = tpu.matmul %28, %46, %cst_28 {dimension_numbers = #tpu.dot_dimension_numbers<[1], [0], [0], [1], [0, 0, 1, 1], [], []>} : vector<16x32xbf16>, vector<32x32xbf16>, vector<16x32xf32> -> vector<16x32xf32>
    %c0_29 = arith.constant 0 : index
    %c0_30 = arith.constant 0 : index
    %c64_31 = arith.constant 64 : index
    %48 = vector.load %arg5[%c0_29, %c0_30, %c64_31] : memref<1x1x96xf32, #tpu.memory_space<vmem>>, vector<1x1x32xf32>
    %49 = vector.shape_cast %48 : vector<1x1x32xf32> to vector<1x32xf32>
    %50 = vector.broadcast %49 : vector<1x32xf32> to vector<16x32xf32>
    %51 = arith.addf %47, %50 : vector<16x32xf32>
    %52 = tpu.iota {dimensions = array<i32: 1>} : vector<1x16xi32>
    %c5_i32 = arith.constant 5 : i32
    %53 = vector.broadcast %c5_i32 : i32 to vector<1x16xi32>
    %54 = arith.cmpi slt, %52, %53 : vector<1x16xi32>
    %cst_32 = arith.constant 0.000000e+00 : f32
    %55 = vector.broadcast %cst_32 : f32 to vector<1x32xf32>
    %56 = vector.extract_strided_slice %37 {offsets = [0, 0], sizes = [1, 8], strides = [1, 1]} : vector<1x32xf32> to vector<1x8xf32>
    %57 = arith.truncf %56 : vector<1x8xf32> to vector<1x8xbf16>
    %58 = vector.extract_strided_slice %44 {offsets = [0, 0], sizes = [16, 8], strides = [1, 1]} : vector<16x32xf32> to vector<16x8xf32>
    %59 = arith.truncf %58 : vector<16x8xf32> to vector<16x8xbf16>
    %cst_33 = arith.constant dense<0.000000e+00> : vector<1x16xf32>
    %60 = tpu.matmul %57, %59, %cst_33 {dimension_numbers = #tpu.dot_dimension_numbers<[1], [1], [0], [0], [0, 0, 1, 0], [], []>} : vector<1x8xbf16>, vector<16x8xbf16>, vector<1x16xf32> -> vector<1x16xf32>
    %cst_34 = arith.constant -1.000000e+30 : f32
    %61 = vector.broadcast %cst_34 : f32 to vector<1x16xf32>
    %62 = arith.select %54, %60, %61 : vector<1x16xi1>, vector<1x16xf32>
    %cst_35 = arith.constant dense<0xFF800000> : vector<1xf32>
    %63 = vector.multi_reduction <maximumf>, %62, %cst_35 [1] : vector<1x16xf32> to vector<1xf32>
    %64 = vector.shape_cast %63 : vector<1xf32> to vector<1x1xf32>
    %65 = vector.broadcast %64 : vector<1x1xf32> to vector<1x16xf32>
    %66 = arith.subf %62, %65 : vector<1x16xf32>
    %67 = math.exp %66 : vector<1x16xf32>
    %cst_36 = arith.constant dense<0.000000e+00> : vector<1xf32>
    %68 = vector.multi_reduction <add>, %67, %cst_36 [1] : vector<1x16xf32> to vector<1xf32>
    %69 = vector.shape_cast %68 : vector<1xf32> to vector<1x1xf32>
    %70 = tpu.reciprocal %69 {approx = true} : vector<1x1xf32> -> vector<1x1xf32>
    %71 = vector.broadcast %70 : vector<1x1xf32> to vector<1x16xf32>
    %72 = arith.mulf %67, %71 : vector<1x16xf32>
    %73 = arith.truncf %72 : vector<1x16xf32> to vector<1x16xbf16>
    %74 = vector.extract_strided_slice %51 {offsets = [0, 0], sizes = [16, 8], strides = [1, 1]} : vector<16x32xf32> to vector<16x8xf32>
    %75 = arith.truncf %74 : vector<16x8xf32> to vector<16x8xbf16>
    %cst_37 = arith.constant dense<0.000000e+00> : vector<1x8xf32>
    %76 = tpu.matmul %73, %75, %cst_37 {dimension_numbers = #tpu.dot_dimension_numbers<[1], [0], [0], [1], [0, 0, 1, 1], [], []>} : vector<1x16xbf16>, vector<16x8xbf16>, vector<1x8xf32> -> vector<1x8xf32>
    %77 = arith.truncf %76 : vector<1x8xf32> to vector<1x8xbf16>
    %c0_38 = arith.constant 0 : index
    %c0_39 = arith.constant 0 : index
    %c0_40 = arith.constant 0 : index
    %78 = vector.load %arg6[%c0_38, %c0_39, %c0_40] : memref<1x32x32xbf16, #tpu.memory_space<vmem>>, vector<1x8x32xbf16>
    %79 = vector.shape_cast %78 : vector<1x8x32xbf16> to vector<8x32xbf16>
    %cst_41 = arith.constant dense<0.000000e+00> : vector<1x32xf32>
    %80 = tpu.matmul %77, %79, %cst_41 {dimension_numbers = #tpu.dot_dimension_numbers<[1], [0], [0], [1], [0, 0, 1, 1], [], []>} : vector<1x8xbf16>, vector<8x32xbf16>, vector<1x32xf32> -> vector<1x32xf32>
    %81 = arith.addf %55, %80 : vector<1x32xf32>
    %82 = vector.extract_strided_slice %37 {offsets = [0, 8], sizes = [1, 8], strides = [1, 1]} : vector<1x32xf32> to vector<1x8xf32>
    %83 = arith.truncf %82 : vector<1x8xf32> to vector<1x8xbf16>
    %84 = vector.extract_strided_slice %44 {offsets = [0, 8], sizes = [16, 8], strides = [1, 1]} : vector<16x32xf32> to vector<16x8xf32>
    %85 = arith.truncf %84 : vector<16x8xf32> to vector<16x8xbf16>
    %cst_42 = arith.constant dense<0.000000e+00> : vector<1x16xf32>
    %86 = tpu.matmul %83, %85, %cst_42 {dimension_numbers = #tpu.dot_dimension_numbers<[1], [1], [0], [0], [0, 0, 1, 0], [], []>} : vector<1x8xbf16>, vector<16x8xbf16>, vector<1x16xf32> -> vector<1x16xf32>
    %cst_43 = arith.constant -1.000000e+30 : f32
    %87 = vector.broadcast %cst_43 : f32 to vector<1x16xf32>
    %88 = arith.select %54, %86, %87 : vector<1x16xi1>, vector<1x16xf32>
    %cst_44 = arith.constant dense<0xFF800000> : vector<1xf32>
    %89 = vector.multi_reduction <maximumf>, %88, %cst_44 [1] : vector<1x16xf32> to vector<1xf32>
    %90 = vector.shape_cast %89 : vector<1xf32> to vector<1x1xf32>
    %91 = vector.broadcast %90 : vector<1x1xf32> to vector<1x16xf32>
    %92 = arith.subf %88, %91 : vector<1x16xf32>
    %93 = math.exp %92 : vector<1x16xf32>
    %cst_45 = arith.constant dense<0.000000e+00> : vector<1xf32>
    %94 = vector.multi_reduction <add>, %93, %cst_45 [1] : vector<1x16xf32> to vector<1xf32>
    %95 = vector.shape_cast %94 : vector<1xf32> to vector<1x1xf32>
    %96 = tpu.reciprocal %95 {approx = true} : vector<1x1xf32> -> vector<1x1xf32>
    %97 = vector.broadcast %96 : vector<1x1xf32> to vector<1x16xf32>
    %98 = arith.mulf %93, %97 : vector<1x16xf32>
    %99 = arith.truncf %98 : vector<1x16xf32> to vector<1x16xbf16>
    %100 = vector.extract_strided_slice %51 {offsets = [0, 8], sizes = [16, 8], strides = [1, 1]} : vector<16x32xf32> to vector<16x8xf32>
    %101 = arith.truncf %100 : vector<16x8xf32> to vector<16x8xbf16>
    %cst_46 = arith.constant dense<0.000000e+00> : vector<1x8xf32>
    %102 = tpu.matmul %99, %101, %cst_46 {dimension_numbers = #tpu.dot_dimension_numbers<[1], [0], [0], [1], [0, 0, 1, 1], [], []>} : vector<1x16xbf16>, vector<16x8xbf16>, vector<1x8xf32> -> vector<1x8xf32>
    %103 = arith.truncf %102 : vector<1x8xf32> to vector<1x8xbf16>
    %c0_47 = arith.constant 0 : index
    %c8 = arith.constant 8 : index
    %c0_48 = arith.constant 0 : index
    %104 = vector.load %arg6[%c0_47, %c8, %c0_48] : memref<1x32x32xbf16, #tpu.memory_space<vmem>>, vector<1x8x32xbf16>
    %105 = vector.shape_cast %104 : vector<1x8x32xbf16> to vector<8x32xbf16>
    %cst_49 = arith.constant dense<0.000000e+00> : vector<1x32xf32>
    %106 = tpu.matmul %103, %105, %cst_49 {dimension_numbers = #tpu.dot_dimension_numbers<[1], [0], [0], [1], [0, 0, 1, 1], [], []>} : vector<1x8xbf16>, vector<8x32xbf16>, vector<1x32xf32> -> vector<1x32xf32>
    %107 = arith.addf %81, %106 : vector<1x32xf32>
    %108 = vector.extract_strided_slice %37 {offsets = [0, 16], sizes = [1, 8], strides = [1, 1]} : vector<1x32xf32> to vector<1x8xf32>
    %109 = arith.truncf %108 : vector<1x8xf32> to vector<1x8xbf16>
    %110 = vector.extract_strided_slice %44 {offsets = [0, 16], sizes = [16, 8], strides = [1, 1]} : vector<16x32xf32> to vector<16x8xf32>
    %111 = arith.truncf %110 : vector<16x8xf32> to vector<16x8xbf16>
    %cst_50 = arith.constant dense<0.000000e+00> : vector<1x16xf32>
    %112 = tpu.matmul %109, %111, %cst_50 {dimension_numbers = #tpu.dot_dimension_numbers<[1], [1], [0], [0], [0, 0, 1, 0], [], []>} : vector<1x8xbf16>, vector<16x8xbf16>, vector<1x16xf32> -> vector<1x16xf32>
    %cst_51 = arith.constant -1.000000e+30 : f32
    %113 = vector.broadcast %cst_51 : f32 to vector<1x16xf32>
    %114 = arith.select %54, %112, %113 : vector<1x16xi1>, vector<1x16xf32>
    %cst_52 = arith.constant dense<0xFF800000> : vector<1xf32>
    %115 = vector.multi_reduction <maximumf>, %114, %cst_52 [1] : vector<1x16xf32> to vector<1xf32>
    %116 = vector.shape_cast %115 : vector<1xf32> to vector<1x1xf32>
    %117 = vector.broadcast %116 : vector<1x1xf32> to vector<1x16xf32>
    %118 = arith.subf %114, %117 : vector<1x16xf32>
    %119 = math.exp %118 : vector<1x16xf32>
    %cst_53 = arith.constant dense<0.000000e+00> : vector<1xf32>
    %120 = vector.multi_reduction <add>, %119, %cst_53 [1] : vector<1x16xf32> to vector<1xf32>
    %121 = vector.shape_cast %120 : vector<1xf32> to vector<1x1xf32>
    %122 = tpu.reciprocal %121 {approx = true} : vector<1x1xf32> -> vector<1x1xf32>
    %123 = vector.broadcast %122 : vector<1x1xf32> to vector<1x16xf32>
    %124 = arith.mulf %119, %123 : vector<1x16xf32>
    %125 = arith.truncf %124 : vector<1x16xf32> to vector<1x16xbf16>
    %126 = vector.extract_strided_slice %51 {offsets = [0, 16], sizes = [16, 8], strides = [1, 1]} : vector<16x32xf32> to vector<16x8xf32>
    %127 = arith.truncf %126 : vector<16x8xf32> to vector<16x8xbf16>
    %cst_54 = arith.constant dense<0.000000e+00> : vector<1x8xf32>
    %128 = tpu.matmul %125, %127, %cst_54 {dimension_numbers = #tpu.dot_dimension_numbers<[1], [0], [0], [1], [0, 0, 1, 1], [], []>} : vector<1x16xbf16>, vector<16x8xbf16>, vector<1x8xf32> -> vector<1x8xf32>
    %129 = arith.truncf %128 : vector<1x8xf32> to vector<1x8xbf16>
    %c0_55 = arith.constant 0 : index
    %c16 = arith.constant 16 : index
    %c0_56 = arith.constant 0 : index
    %130 = vector.load %arg6[%c0_55, %c16, %c0_56] : memref<1x32x32xbf16, #tpu.memory_space<vmem>>, vector<1x8x32xbf16>
    %131 = vector.shape_cast %130 : vector<1x8x32xbf16> to vector<8x32xbf16>
    %cst_57 = arith.constant dense<0.000000e+00> : vector<1x32xf32>
    %132 = tpu.matmul %129, %131, %cst_57 {dimension_numbers = #tpu.dot_dimension_numbers<[1], [0], [0], [1], [0, 0, 1, 1], [], []>} : vector<1x8xbf16>, vector<8x32xbf16>, vector<1x32xf32> -> vector<1x32xf32>
    %133 = arith.addf %107, %132 : vector<1x32xf32>
    %134 = vector.extract_strided_slice %37 {offsets = [0, 24], sizes = [1, 8], strides = [1, 1]} : vector<1x32xf32> to vector<1x8xf32>
    %135 = arith.truncf %134 : vector<1x8xf32> to vector<1x8xbf16>
    %136 = vector.extract_strided_slice %44 {offsets = [0, 24], sizes = [16, 8], strides = [1, 1]} : vector<16x32xf32> to vector<16x8xf32>
    %137 = arith.truncf %136 : vector<16x8xf32> to vector<16x8xbf16>
    %cst_58 = arith.constant dense<0.000000e+00> : vector<1x16xf32>
    %138 = tpu.matmul %135, %137, %cst_58 {dimension_numbers = #tpu.dot_dimension_numbers<[1], [1], [0], [0], [0, 0, 1, 0], [], []>} : vector<1x8xbf16>, vector<16x8xbf16>, vector<1x16xf32> -> vector<1x16xf32>
    %cst_59 = arith.constant -1.000000e+30 : f32
    %139 = vector.broadcast %cst_59 : f32 to vector<1x16xf32>
    %140 = arith.select %54, %138, %139 : vector<1x16xi1>, vector<1x16xf32>
    %cst_60 = arith.constant dense<0xFF800000> : vector<1xf32>
    %141 = vector.multi_reduction <maximumf>, %140, %cst_60 [1] : vector<1x16xf32> to vector<1xf32>
    %142 = vector.shape_cast %141 : vector<1xf32> to vector<1x1xf32>
    %143 = vector.broadcast %142 : vector<1x1xf32> to vector<1x16xf32>
    %144 = arith.subf %140, %143 : vector<1x16xf32>
    %145 = math.exp %144 : vector<1x16xf32>
    %cst_61 = arith.constant dense<0.000000e+00> : vector<1xf32>
    %146 = vector.multi_reduction <add>, %145, %cst_61 [1] : vector<1x16xf32> to vector<1xf32>
    %147 = vector.shape_cast %146 : vector<1xf32> to vector<1x1xf32>
    %148 = tpu.reciprocal %147 {approx = true} : vector<1x1xf32> -> vector<1x1xf32>
    %149 = vector.broadcast %148 : vector<1x1xf32> to vector<1x16xf32>
    %150 = arith.mulf %145, %149 : vector<1x16xf32>
    %151 = arith.truncf %150 : vector<1x16xf32> to vector<1x16xbf16>
    %152 = vector.extract_strided_slice %51 {offsets = [0, 24], sizes = [16, 8], strides = [1, 1]} : vector<16x32xf32> to vector<16x8xf32>
    %153 = arith.truncf %152 : vector<16x8xf32> to vector<16x8xbf16>
    %cst_62 = arith.constant dense<0.000000e+00> : vector<1x8xf32>
    %154 = tpu.matmul %151, %153, %cst_62 {dimension_numbers = #tpu.dot_dimension_numbers<[1], [0], [0], [1], [0, 0, 1, 1], [], []>} : vector<1x16xbf16>, vector<16x8xbf16>, vector<1x8xf32> -> vector<1x8xf32>
    %155 = arith.truncf %154 : vector<1x8xf32> to vector<1x8xbf16>
    %c0_63 = arith.constant 0 : index
    %c24 = arith.constant 24 : index
    %c0_64 = arith.constant 0 : index
    %156 = vector.load %arg6[%c0_63, %c24, %c0_64] : memref<1x32x32xbf16, #tpu.memory_space<vmem>>, vector<1x8x32xbf16>
    %157 = vector.shape_cast %156 : vector<1x8x32xbf16> to vector<8x32xbf16>
    %cst_65 = arith.constant dense<0.000000e+00> : vector<1x32xf32>
    %158 = tpu.matmul %155, %157, %cst_65 {dimension_numbers = #tpu.dot_dimension_numbers<[1], [0], [0], [1], [0, 0, 1, 1], [], []>} : vector<1x8xbf16>, vector<8x32xbf16>, vector<1x32xf32> -> vector<1x32xf32>
    %159 = arith.addf %133, %158 : vector<1x32xf32>
    %160 = vector.extract_strided_slice %1 {offsets = [0, 0], sizes = [1, 32], strides = [1, 1]} : vector<16x32xf32> to vector<1x32xf32>
    %161 = arith.addf %160, %159 : vector<1x32xf32>
    %c0_66 = arith.constant 0 : index
    %c0_67 = arith.constant 0 : index
    %c0_68 = arith.constant 0 : index
    %162 = vector.load %arg7[%c0_66, %c0_67, %c0_68] : memref<1x1x32xf32, #tpu.memory_space<vmem>>, vector<1x1x32xf32>
    %163 = vector.shape_cast %162 : vector<1x1x32xf32> to vector<1x32xf32>
    %164 = arith.addf %161, %163 : vector<1x32xf32>
    %c0_69 = arith.constant 0 : index
    %c0_70 = arith.constant 0 : index
    %c0_71 = arith.constant 0 : index
    %165 = vector.load %arg8[%c0_69, %c0_70, %c0_71] : memref<1x1x32xf32, #tpu.memory_space<vmem>>, vector<1x1x32xf32>
    %166 = vector.shape_cast %165 : vector<1x1x32xf32> to vector<1x32xf32>
    %c0_72 = arith.constant 0 : index
    %c0_73 = arith.constant 0 : index
    %c0_74 = arith.constant 0 : index
    %167 = vector.load %arg9[%c0_72, %c0_73, %c0_74] : memref<1x1x32xf32, #tpu.memory_space<vmem>>, vector<1x1x32xf32>
    %168 = vector.shape_cast %167 : vector<1x1x32xf32> to vector<1x32xf32>
    %cst_75 = arith.constant dense<0.000000e+00> : vector<1xf32>
    %169 = vector.multi_reduction <add>, %164, %cst_75 [1] : vector<1x32xf32> to vector<1xf32>
    %170 = vector.shape_cast %169 : vector<1xf32> to vector<1x1xf32>
    %cst_76 = arith.constant 3.200000e+01 : f32
    %171 = vector.broadcast %cst_76 : f32 to vector<1x1xf32>
    %172 = arith.divf %170, %171 : vector<1x1xf32>
    %173 = vector.broadcast %172 : vector<1x1xf32> to vector<1x32xf32>
    %174 = arith.subf %164, %173 : vector<1x32xf32>
    %175 = arith.mulf %174, %174 : vector<1x32xf32>
    %cst_77 = arith.constant dense<0.000000e+00> : vector<1xf32>
    %176 = vector.multi_reduction <add>, %175, %cst_77 [1] : vector<1x32xf32> to vector<1xf32>
    %177 = vector.shape_cast %176 : vector<1xf32> to vector<1x1xf32>
    %cst_78 = arith.constant 3.200000e+01 : f32
    %178 = vector.broadcast %cst_78 : f32 to vector<1x1xf32>
    %179 = arith.divf %177, %178 : vector<1x1xf32>
    %180 = vector.broadcast %172 : vector<1x1xf32> to vector<1x32xf32>
    %181 = arith.subf %164, %180 : vector<1x32xf32>
    %cst_79 = arith.constant 9.99999974E-6 : f32
    %182 = vector.broadcast %cst_79 : f32 to vector<1x1xf32>
    %183 = arith.addf %179, %182 : vector<1x1xf32>
    %184 = math.rsqrt %183 : vector<1x1xf32>
    %185 = vector.broadcast %184 : vector<1x1xf32> to vector<1x32xf32>
    %186 = arith.mulf %181, %185 : vector<1x32xf32>
    %187 = arith.mulf %186, %166 : vector<1x32xf32>
    %188 = arith.addf %187, %168 : vector<1x32xf32>
    %189 = arith.truncf %188 : vector<1x32xf32> to vector<1x32xbf16>
    %c0_80 = arith.constant 0 : index
    %c0_81 = arith.constant 0 : index
    %c0_82 = arith.constant 0 : index
    %190 = vector.load %arg10[%c0_80, %c0_81, %c0_82] : memref<1x32x128xbf16, #tpu.memory_space<vmem>>, vector<1x32x128xbf16>
    %191 = vector.shape_cast %190 : vector<1x32x128xbf16> to vector<32x128xbf16>
    %cst_83 = arith.constant dense<0.000000e+00> : vector<1x128xf32>
    %192 = tpu.matmul %189, %191, %cst_83 {dimension_numbers = #tpu.dot_dimension_numbers<[1], [0], [0], [1], [0, 0, 1, 1], [], []>} : vector<1x32xbf16>, vector<32x128xbf16>, vector<1x128xf32> -> vector<1x128xf32>
    %c0_84 = arith.constant 0 : index
    %c0_85 = arith.constant 0 : index
    %c0_86 = arith.constant 0 : index
    %193 = vector.load %arg11[%c0_84, %c0_85, %c0_86] : memref<1x1x128xf32, #tpu.memory_space<vmem>>, vector<1x1x128xf32>
    %194 = vector.shape_cast %193 : vector<1x1x128xf32> to vector<1x128xf32>
    %195 = arith.addf %192, %194 : vector<1x128xf32>
    %cst_87 = arith.constant 1.702000e+00 : f32
    %196 = vector.broadcast %cst_87 : f32 to vector<1x128xf32>
    %197 = arith.mulf %196, %195 : vector<1x128xf32>
    %198 = arith.negf %197 : vector<1x128xf32>
    %199 = math.exp %198 : vector<1x128xf32>
    %cst_88 = arith.constant 1.000000e+00 : f32
    %200 = vector.broadcast %cst_88 : f32 to vector<1x128xf32>
    %201 = arith.addf %200, %199 : vector<1x128xf32>
    %202 = arith.divf %200, %201 : vector<1x128xf32>
    %203 = arith.mulf %195, %202 : vector<1x128xf32>
    %204 = arith.truncf %203 : vector<1x128xf32> to vector<1x128xbf16>
    %c0_89 = arith.constant 0 : index
    %c0_90 = arith.constant 0 : index
    %c0_91 = arith.constant 0 : index
    %205 = vector.load %arg12[%c0_89, %c0_90, %c0_91] : memref<1x128x32xbf16, #tpu.memory_space<vmem>>, vector<1x128x32xbf16>
    %206 = vector.shape_cast %205 : vector<1x128x32xbf16> to vector<128x32xbf16>
    %cst_92 = arith.constant dense<0.000000e+00> : vector<1x32xf32>
    %207 = tpu.matmul %204, %206, %cst_92 {dimension_numbers = #tpu.dot_dimension_numbers<[1], [0], [0], [1], [0, 0, 1, 1], [], []>} : vector<1x128xbf16>, vector<128x32xbf16>, vector<1x32xf32> -> vector<1x32xf32>
    %208 = arith.addf %164, %207 : vector<1x32xf32>
    %c0_93 = arith.constant 0 : index
    %c0_94 = arith.constant 0 : index
    %c0_95 = arith.constant 0 : index
    %209 = vector.load %arg13[%c0_93, %c0_94, %c0_95] : memref<1x1x32xf32, #tpu.memory_space<vmem>>, vector<1x1x32xf32>
    %210 = vector.shape_cast %209 : vector<1x1x32xf32> to vector<1x32xf32>
    %211 = arith.addf %208, %210 : vector<1x32xf32>
    %c0_96 = arith.constant 0 : index
    %c0_97 = arith.constant 0 : index
    %212 = vector.load %arg14[%c0_96, %c0_97] : memref<1x32xf32, #tpu.memory_space<vmem>>, vector<1x32xf32>
    %c0_98 = arith.constant 0 : index
    %c0_99 = arith.constant 0 : index
    %213 = vector.load %arg15[%c0_98, %c0_99] : memref<1x32xf32, #tpu.memory_space<vmem>>, vector<1x32xf32>
    %cst_100 = arith.constant dense<0.000000e+00> : vector<1xf32>
    %214 = vector.multi_reduction <add>, %211, %cst_100 [1] : vector<1x32xf32> to vector<1xf32>
    %215 = vector.shape_cast %214 : vector<1xf32> to vector<1x1xf32>
    %cst_101 = arith.constant 3.200000e+01 : f32
    %216 = vector.broadcast %cst_101 : f32 to vector<1x1xf32>
    %217 = arith.divf %215, %216 : vector<1x1xf32>
    %218 = vector.broadcast %217 : vector<1x1xf32> to vector<1x32xf32>
    %219 = arith.subf %211, %218 : vector<1x32xf32>
    %220 = arith.mulf %219, %219 : vector<1x32xf32>
    %cst_102 = arith.constant dense<0.000000e+00> : vector<1xf32>
    %221 = vector.multi_reduction <add>, %220, %cst_102 [1] : vector<1x32xf32> to vector<1xf32>
    %222 = vector.shape_cast %221 : vector<1xf32> to vector<1x1xf32>
    %cst_103 = arith.constant 3.200000e+01 : f32
    %223 = vector.broadcast %cst_103 : f32 to vector<1x1xf32>
    %224 = arith.divf %222, %223 : vector<1x1xf32>
    %225 = vector.broadcast %217 : vector<1x1xf32> to vector<1x32xf32>
    %226 = arith.subf %211, %225 : vector<1x32xf32>
    %cst_104 = arith.constant 9.99999974E-6 : f32
    %227 = vector.broadcast %cst_104 : f32 to vector<1x1xf32>
    %228 = arith.addf %224, %227 : vector<1x1xf32>
    %229 = math.rsqrt %228 : vector<1x1xf32>
    %230 = vector.broadcast %229 : vector<1x1xf32> to vector<1x32xf32>
    %231 = arith.mulf %226, %230 : vector<1x32xf32>
    %232 = arith.mulf %231, %212 : vector<1x32xf32>
    %233 = arith.addf %232, %213 : vector<1x32xf32>
    %c0_105 = arith.constant 0 : index
    %c0_106 = arith.constant 0 : index
    %c0_107 = arith.constant 0 : index
    %234 = vector.load %arg16[%c0_105, %c0_106, %c0_107] : memref<1x1x32xf32, #tpu.memory_space<vmem>>, vector<1x1x32xf32>
    %235 = vector.shape_cast %234 : vector<1x1x32xf32> to vector<1x32xf32>
    %236 = vector.shape_cast %233 : vector<1x32xf32> to vector<1x1x32xf32>
    tpu.vector_store %arg16[%c0_105, %c0_106, %c0_107], %236 {strides = array<i32>} : memref<1x1x32xf32, #tpu.memory_space<vmem>>, vector<1x1x32xf32>,
    return
  }
  func.func @transform_0(%arg0: i32) -> (i32, i32, i32) {
    %c0_i32 = arith.constant 0 : i32
    %c0_i32_0 = arith.constant 0 : i32
    %c0_i32_1 = arith.constant 0 : i32
    return %arg0, %c0_i32, %c0_i32_0 : i32, i32, i32
  }
  func.func @transform_1(%arg0: i32) -> (i32, i32, i32) {
    %c1_i32 = arith.constant 1 : i32
    %c0_i32 = arith.constant 0 : i32
    %c0_i32_0 = arith.constant 0 : i32
    %c0_i32_1 = arith.constant 0 : i32
    return %c1_i32, %c0_i32, %c0_i32_0 : i32, i32, i32
  }
  func.func @transform_2(%arg0: i32) -> (i32, i32, i32) {
    %c1_i32 = arith.constant 1 : i32
    %c0_i32 = arith.constant 0 : i32
    %c0_i32_0 = arith.constant 0 : i32
    %c0_i32_1 = arith.constant 0 : i32
    return %c1_i32, %c0_i32, %c0_i32_0 : i32, i32, i32
  }
  func.func @transform_3(%arg0: i32) -> (i32, i32, i32) {
    %c1_i32 = arith.constant 1 : i32
    %c0_i32 = arith.constant 0 : i32
    %c0_i32_0 = arith.constant 0 : i32
    %c0_i32_1 = arith.constant 0 : i32
    return %c1_i32, %c0_i32, %c0_i32_0 : i32, i32, i32
  }
  func.func @transform_4(%arg0: i32) -> (i32, i32, i32) {
    %c1_i32 = arith.constant 1 : i32
    %c0_i32 = arith.constant 0 : i32
    %c0_i32_0 = arith.constant 0 : i32
    %c0_i32_1 = arith.constant 0 : i32
    return %c1_i32, %c0_i32, %c0_i32_0 : i32, i32, i32
  }
  func.func @transform_5(%arg0: i32) -> (i32, i32, i32) {
    %c1_i32 = arith.constant 1 : i32
    %c0_i32 = arith.constant 0 : i32
    %c0_i32_0 = arith.constant 0 : i32
    %c0_i32_1 = arith.constant 0 : i32
    return %c1_i32, %c0_i32, %c0_i32_0 : i32, i32, i32
  }
  func.func @transform_6(%arg0: i32) -> (i32, i32, i32) {
    %c1_i32 = arith.constant 1 : i32
    %c0_i32 = arith.constant 0 : i32
    %c0_i32_0 = arith.constant 0 : i32
    %c0_i32_1 = arith.constant 0 : i32
    return %c1_i32, %c0_i32, %c0_i32_0 : i32, i32, i32
  }
  func.func @transform_7(%arg0: i32) -> (i32, i32, i32) {
    %c1_i32 = arith.constant 1 : i32
    %c0_i32 = arith.constant 0 : i32
    %c0_i32_0 = arith.constant 0 : i32
    %c0_i32_1 = arith.constant 0 : i32
    return %c1_i32, %c0_i32, %c0_i32_0 : i32, i32, i32
  }
  func.func @transform_8(%arg0: i32) -> (i32, i32, i32) {
    %c1_i32 = arith.constant 1 : i32
    %c0_i32 = arith.constant 0 : i32
    %c0_i32_0 = arith.constant 0 : i32
    %c0_i32_1 = arith.constant 0 : i32
    return %c1_i32, %c0_i32, %c0_i32_0 : i32, i32, i32
  }
  func.func @transform_9(%arg0: i32) -> (i32, i32, i32) {
    %c1_i32 = arith.constant 1 : i32
    %c0_i32 = arith.constant 0 : i32
    %c0_i32_0 = arith.constant 0 : i32
    %c0_i32_1 = arith.constant 0 : i32
    return %c1_i32, %c0_i32, %c0_i32_0 : i32, i32, i32
  }
  func.func @transform_10(%arg0: i32) -> (i32, i32, i32) {
    %c1_i32 = arith.constant 1 : i32
    %c0_i32 = arith.constant 0 : i32
    %c0_i32_0 = arith.constant 0 : i32
    %c0_i32_1 = arith.constant 0 : i32
    return %c1_i32, %c0_i32, %c0_i32_0 : i32, i32, i32
  }
  func.func @transform_11(%arg0: i32) -> (i32, i32, i32) {
    %c1_i32 = arith.constant 1 : i32
    %c0_i32 = arith.constant 0 : i32
    %c0_i32_0 = arith.constant 0 : i32
    %c0_i32_1 = arith.constant 0 : i32
    return %c1_i32, %c0_i32, %c0_i32_0 : i32, i32, i32
  }
  func.func @transform_12(%arg0: i32) -> (i32, i32, i32) {
    %c1_i32 = arith.constant 1 : i32
    %c0_i32 = arith.constant 0 : i32
    %c0_i32_0 = arith.constant 0 : i32
    %c0_i32_1 = arith.constant 0 : i32
    return %c1_i32, %c0_i32, %c0_i32_0 : i32, i32, i32
  }
  func.func @transform_13(%arg0: i32) -> (i32, i32) {
    %c0_i32 = arith.constant 0 : i32
    %c0_i32_0 = arith.constant 0 : i32
    %c0_i32_1 = arith.constant 0 : i32
    return %c0_i32, %c0_i32_0 : i32, i32
  }
  func.func @transform_14(%arg0: i32) -> (i32, i32) {
    %c0_i32 = arith.constant 0 : i32
    %c0_i32_0 = arith.constant 0 : i32
    %c0_i32_1 = arith.constant 0 : i32
    return %c0_i32, %c0_i32_0 : i32, i32
  }
  func.func @transform_15(%arg0: i32) -> (i32, i32, i32) {
    %c0_i32 = arith.constant 0 : i32
    %c0_i32_0 = arith.constant 0 : i32
    %c0_i32_1 = arith.constant 0 : i32
    return %arg0, %c0_i32, %c0_i32_0 : i32, i32, i32
  }
}

module attributes {stable_mosaic.version = 11 : i64} {
  func.func @fused_blocks_kernel(%arg0: i32, %arg1: i32, %arg2: memref<1x16x32xf32, #tpu.memory_space<vmem>>, %arg3: memref<1x1x32xf32, #tpu.memory_space<vmem>>, %arg4: memref<1x1x32xf32, #tpu.memory_space<vmem>>, %arg5: memref<1x32x96xbf16, #tpu.memory_space<vmem>>, %arg6: memref<1x1x96xf32, #tpu.memory_space<vmem>>, %arg7: memref<1x32x32xbf16, #tpu.memory_space<vmem>>, %arg8: memref<1x1x32xf32, #tpu.memory_space<vmem>>, %arg9: memref<1x1x32xf32, #tpu.memory_space<vmem>>, %arg10: memref<1x1x32xf32, #tpu.memory_space<vmem>>, %arg11: memref<1x32x128xbf16, #tpu.memory_space<vmem>>, %arg12: memref<1x1x128xf32, #tpu.memory_space<vmem>>, %arg13: memref<1x128x32xbf16, #tpu.memory_space<vmem>>, %arg14: memref<1x1x32xf32, #tpu.memory_space<vmem>>, %arg15: memref<1x16x32xf32, #tpu.memory_space<vmem>>, %arg16: memref<16x32xf32, #tpu.memory_space<vmem>>) attributes {dimension_semantics = [#tpu.dimension_semantics<parallel>, #tpu.dimension_semantics<arbitrary>], iteration_bounds = array<i64: 2, 1>, scalar_prefetch = 0 : i64, scratch_operands = 1 : i64, tpu.core_type = #tpu.core_type<tc>, window_params = [{transform_indices = @transform_0, window_bounds = array<i64: 1, 16, 32>}, {transform_indices = @transform_1, window_bounds = array<i64: 1, 1, 32>}, {transform_indices = @transform_2, window_bounds = array<i64: 1, 1, 32>}, {transform_indices = @transform_3, window_bounds = array<i64: 1, 32, 96>}, {transform_indices = @transform_4, window_bounds = array<i64: 1, 1, 96>}, {transform_indices = @transform_5, window_bounds = array<i64: 1, 32, 32>}, {transform_indices = @transform_6, window_bounds = array<i64: 1, 1, 32>}, {transform_indices = @transform_7, window_bounds = array<i64: 1, 1, 32>}, {transform_indices = @transform_8, window_bounds = array<i64: 1, 1, 32>}, {transform_indices = @transform_9, window_bounds = array<i64: 1, 32, 128>}, {transform_indices = @transform_10, window_bounds = array<i64: 1, 1, 128>}, {transform_indices = @transform_11, window_bounds = array<i64: 1, 128, 32>}, {transform_indices = @transform_12, window_bounds = array<i64: 1, 1, 32>}, {transform_indices = @transform_13, window_bounds = array<i64: 1, 16, 32>}]} {
    %c0_i32 = arith.constant 0 : i32
    %0 = arith.cmpi eq, %arg1, %c0_i32 : i32
    %1 = arith.extui %0 : i1 to i32
    %c0_i32_0 = arith.constant 0 : i32
    %2 = arith.cmpi ne, %1, %c0_i32_0 : i32
    scf.if %2 {
      %c0_85 = arith.constant 0 : index
      %c0_86 = arith.constant 0 : index
      %c0_87 = arith.constant 0 : index
      %190 = vector.load %arg2[%c0_85, %c0_86, %c0_87] : memref<1x16x32xf32, #tpu.memory_space<vmem>>, vector<1x16x32xf32>
      %191 = vector.shape_cast %190 : vector<1x16x32xf32> to vector<16x32xf32>
      %c0_88 = arith.constant 0 : index
      %c0_89 = arith.constant 0 : index
      %c0_90 = arith.constant 0 : index
      %192 = vector.load %arg15[%c0_88, %c0_89, %c0_90] : memref<1x16x32xf32, #tpu.memory_space<vmem>>, vector<1x16x32xf32>
      %193 = vector.shape_cast %192 : vector<1x16x32xf32> to vector<16x32xf32>
      %194 = vector.shape_cast %191 : vector<16x32xf32> to vector<1x16x32xf32>
      tpu.vector_store %arg15[%c0_88, %c0_89, %c0_90], %194 {strides = array<i32>} : memref<1x16x32xf32, #tpu.memory_space<vmem>>, vector<1x16x32xf32>,
    } else {
    }
    %c0 = arith.constant 0 : index
    %c0_1 = arith.constant 0 : index
    %c0_2 = arith.constant 0 : index
    %3 = vector.load %arg15[%c0, %c0_1, %c0_2] : memref<1x16x32xf32, #tpu.memory_space<vmem>>, vector<1x16x32xf32>
    %4 = vector.shape_cast %3 : vector<1x16x32xf32> to vector<16x32xf32>
    %c0_3 = arith.constant 0 : index
    %c0_4 = arith.constant 0 : index
    %c0_5 = arith.constant 0 : index
    %5 = vector.load %arg3[%c0_3, %c0_4, %c0_5] : memref<1x1x32xf32, #tpu.memory_space<vmem>>, vector<1x1x32xf32>
    %6 = vector.shape_cast %5 : vector<1x1x32xf32> to vector<1x32xf32>
    %c0_6 = arith.constant 0 : index
    %c0_7 = arith.constant 0 : index
    %c0_8 = arith.constant 0 : index
    %7 = vector.load %arg4[%c0_6, %c0_7, %c0_8] : memref<1x1x32xf32, #tpu.memory_space<vmem>>, vector<1x1x32xf32>
    %8 = vector.shape_cast %7 : vector<1x1x32xf32> to vector<1x32xf32>
    %cst = arith.constant dense<0.000000e+00> : vector<16xf32>
    %9 = vector.multi_reduction <add>, %4, %cst [1] : vector<16x32xf32> to vector<16xf32>
    %10 = vector.shape_cast %9 : vector<16xf32> to vector<16x1xf32>
    %cst_9 = arith.constant 3.200000e+01 : f32
    %11 = vector.broadcast %cst_9 : f32 to vector<16x1xf32>
    %12 = arith.divf %10, %11 : vector<16x1xf32>
    %13 = vector.broadcast %12 : vector<16x1xf32> to vector<16x32xf32>
    %14 = arith.subf %4, %13 : vector<16x32xf32>
    %15 = arith.mulf %14, %14 : vector<16x32xf32>
    %cst_10 = arith.constant dense<0.000000e+00> : vector<16xf32>
    %16 = vector.multi_reduction <add>, %15, %cst_10 [1] : vector<16x32xf32> to vector<16xf32>
    %17 = vector.shape_cast %16 : vector<16xf32> to vector<16x1xf32>
    %cst_11 = arith.constant 3.200000e+01 : f32
    %18 = vector.broadcast %cst_11 : f32 to vector<16x1xf32>
    %19 = arith.divf %17, %18 : vector<16x1xf32>
    %20 = vector.broadcast %12 : vector<16x1xf32> to vector<16x32xf32>
    %21 = arith.subf %4, %20 : vector<16x32xf32>
    %cst_12 = arith.constant 9.99999974E-6 : f32
    %22 = vector.broadcast %cst_12 : f32 to vector<16x1xf32>
    %23 = arith.addf %19, %22 : vector<16x1xf32>
    %24 = math.rsqrt %23 : vector<16x1xf32>
    %25 = vector.broadcast %24 : vector<16x1xf32> to vector<16x32xf32>
    %26 = arith.mulf %21, %25 : vector<16x32xf32>
    %27 = vector.broadcast %6 : vector<1x32xf32> to vector<16x32xf32>
    %28 = arith.mulf %26, %27 : vector<16x32xf32>
    %29 = vector.broadcast %8 : vector<1x32xf32> to vector<16x32xf32>
    %30 = arith.addf %28, %29 : vector<16x32xf32>
    %31 = arith.truncf %30 : vector<16x32xf32> to vector<16x32xbf16>
    %c0_13 = arith.constant 0 : index
    %c0_14 = arith.constant 0 : index
    %c0_15 = arith.constant 0 : index
    %32 = vector.load %arg5[%c0_13, %c0_14, %c0_15] : memref<1x32x96xbf16, #tpu.memory_space<vmem>>, vector<1x32x96xbf16>
    %33 = vector.shape_cast %32 : vector<1x32x96xbf16> to vector<32x96xbf16>
    %cst_16 = arith.constant dense<0.000000e+00> : vector<16x96xf32>
    %34 = tpu.matmul %31, %33, %cst_16 {dimension_numbers = #tpu.dot_dimension_numbers<[1], [0], [0], [1], [0, 0, 1, 1], [], []>} : vector<16x32xbf16>, vector<32x96xbf16>, vector<16x96xf32> -> vector<16x96xf32>
    %c0_17 = arith.constant 0 : index
    %c0_18 = arith.constant 0 : index
    %c0_19 = arith.constant 0 : index
    %35 = vector.load %arg6[%c0_17, %c0_18, %c0_19] : memref<1x1x96xf32, #tpu.memory_space<vmem>>, vector<1x1x96xf32>
    %36 = vector.shape_cast %35 : vector<1x1x96xf32> to vector<1x96xf32>
    %37 = vector.broadcast %36 : vector<1x96xf32> to vector<16x96xf32>
    %38 = arith.addf %34, %37 : vector<16x96xf32>
    %39 = vector.extract_strided_slice %38 {offsets = [0, 0], sizes = [16, 32], strides = [1, 1]} : vector<16x96xf32> to vector<16x32xf32>
    %cst_20 = arith.constant 0.353553385 : f32
    %40 = vector.broadcast %cst_20 : f32 to vector<16x32xf32>
    %41 = arith.mulf %39, %40 : vector<16x32xf32>
    %42 = arith.truncf %41 : vector<16x32xf32> to vector<16x32xbf16>
    %43 = vector.extract_strided_slice %38 {offsets = [0, 32], sizes = [16, 32], strides = [1, 1]} : vector<16x96xf32> to vector<16x32xf32>
    %44 = arith.truncf %43 : vector<16x32xf32> to vector<16x32xbf16>
    %45 = vector.extract_strided_slice %38 {offsets = [0, 64], sizes = [16, 32], strides = [1, 1]} : vector<16x96xf32> to vector<16x32xf32>
    %46 = arith.truncf %45 : vector<16x32xf32> to vector<16x32xbf16>
    %47 = tpu.iota {dimensions = array<i32: 1>} : vector<16x16xi32>
    %c5_i32 = arith.constant 5 : i32
    %48 = vector.broadcast %c5_i32 : i32 to vector<16x16xi32>
    %49 = arith.cmpi slt, %47, %48 : vector<16x16xi32>
    %50 = vector.extract_strided_slice %42 {offsets = [0, 0], sizes = [16, 8], strides = [1, 1]} : vector<16x32xbf16> to vector<16x8xbf16>
    %51 = vector.extract_strided_slice %44 {offsets = [0, 0], sizes = [16, 8], strides = [1, 1]} : vector<16x32xbf16> to vector<16x8xbf16>
    %cst_21 = arith.constant dense<0.000000e+00> : vector<16x16xf32>
    %52 = tpu.matmul %50, %51, %cst_21 {dimension_numbers = #tpu.dot_dimension_numbers<[1], [1], [0], [0], [0, 0, 1, 0], [], []>} : vector<16x8xbf16>, vector<16x8xbf16>, vector<16x16xf32> -> vector<16x16xf32>
    %cst_22 = arith.constant -1.000000e+30 : f32
    %53 = vector.broadcast %cst_22 : f32 to vector<16x16xf32>
    %54 = arith.select %49, %52, %53 : vector<16x16xi1>, vector<16x16xf32>
    %cst_23 = arith.constant dense<0xFF800000> : vector<16xf32>
    %55 = vector.multi_reduction <maximumf>, %54, %cst_23 [1] : vector<16x16xf32> to vector<16xf32>
    %56 = vector.shape_cast %55 : vector<16xf32> to vector<16x1xf32>
    %57 = vector.broadcast %56 : vector<16x1xf32> to vector<16x16xf32>
    %58 = arith.subf %54, %57 : vector<16x16xf32>
    %59 = math.exp %58 : vector<16x16xf32>
    %cst_24 = arith.constant dense<0.000000e+00> : vector<16xf32>
    %60 = vector.multi_reduction <add>, %59, %cst_24 [1] : vector<16x16xf32> to vector<16xf32>
    %61 = vector.shape_cast %60 : vector<16xf32> to vector<16x1xf32>
    %62 = tpu.reciprocal %61 {approx = true} : vector<16x1xf32> -> vector<16x1xf32>
    %63 = vector.broadcast %62 : vector<16x1xf32> to vector<16x16xf32>
    %64 = arith.mulf %59, %63 : vector<16x16xf32>
    %65 = arith.truncf %64 : vector<16x16xf32> to vector<16x16xbf16>
    %66 = vector.extract_strided_slice %46 {offsets = [0, 0], sizes = [16, 8], strides = [1, 1]} : vector<16x32xbf16> to vector<16x8xbf16>
    %cst_25 = arith.constant dense<0.000000e+00> : vector<16x8xf32>
    %67 = tpu.matmul %65, %66, %cst_25 {dimension_numbers = #tpu.dot_dimension_numbers<[1], [0], [0], [1], [0, 0, 1, 1], [], []>} : vector<16x16xbf16>, vector<16x8xbf16>, vector<16x8xf32> -> vector<16x8xf32>
    %c0_26 = arith.constant 0 : index
    %c0_27 = arith.constant 0 : index
    %68 = vector.load %arg16[%c0_26, %c0_27] : memref<16x32xf32, #tpu.memory_space<vmem>>, vector<16x8xf32>
    tpu.vector_store %arg16[%c0_26, %c0_27], %67 {strides = array<i32>} : memref<16x32xf32, #tpu.memory_space<vmem>>, vector<16x8xf32>,
    %69 = vector.extract_strided_slice %42 {offsets = [0, 8], sizes = [16, 8], strides = [1, 1]} : vector<16x32xbf16> to vector<16x8xbf16>
    %70 = vector.extract_strided_slice %44 {offsets = [0, 8], sizes = [16, 8], strides = [1, 1]} : vector<16x32xbf16> to vector<16x8xbf16>
    %cst_28 = arith.constant dense<0.000000e+00> : vector<16x16xf32>
    %71 = tpu.matmul %69, %70, %cst_28 {dimension_numbers = #tpu.dot_dimension_numbers<[1], [1], [0], [0], [0, 0, 1, 0], [], []>} : vector<16x8xbf16>, vector<16x8xbf16>, vector<16x16xf32> -> vector<16x16xf32>
    %cst_29 = arith.constant -1.000000e+30 : f32
    %72 = vector.broadcast %cst_29 : f32 to vector<16x16xf32>
    %73 = arith.select %49, %71, %72 : vector<16x16xi1>, vector<16x16xf32>
    %cst_30 = arith.constant dense<0xFF800000> : vector<16xf32>
    %74 = vector.multi_reduction <maximumf>, %73, %cst_30 [1] : vector<16x16xf32> to vector<16xf32>
    %75 = vector.shape_cast %74 : vector<16xf32> to vector<16x1xf32>
    %76 = vector.broadcast %75 : vector<16x1xf32> to vector<16x16xf32>
    %77 = arith.subf %73, %76 : vector<16x16xf32>
    %78 = math.exp %77 : vector<16x16xf32>
    %cst_31 = arith.constant dense<0.000000e+00> : vector<16xf32>
    %79 = vector.multi_reduction <add>, %78, %cst_31 [1] : vector<16x16xf32> to vector<16xf32>
    %80 = vector.shape_cast %79 : vector<16xf32> to vector<16x1xf32>
    %81 = tpu.reciprocal %80 {approx = true} : vector<16x1xf32> -> vector<16x1xf32>
    %82 = vector.broadcast %81 : vector<16x1xf32> to vector<16x16xf32>
    %83 = arith.mulf %78, %82 : vector<16x16xf32>
    %84 = arith.truncf %83 : vector<16x16xf32> to vector<16x16xbf16>
    %85 = vector.extract_strided_slice %46 {offsets = [0, 8], sizes = [16, 8], strides = [1, 1]} : vector<16x32xbf16> to vector<16x8xbf16>
    %cst_32 = arith.constant dense<0.000000e+00> : vector<16x8xf32>
    %86 = tpu.matmul %84, %85, %cst_32 {dimension_numbers = #tpu.dot_dimension_numbers<[1], [0], [0], [1], [0, 0, 1, 1], [], []>} : vector<16x16xbf16>, vector<16x8xbf16>, vector<16x8xf32> -> vector<16x8xf32>
    %c0_33 = arith.constant 0 : index
    %c8 = arith.constant 8 : index
    %87 = vector.load %arg16[%c0_33, %c8] : memref<16x32xf32, #tpu.memory_space<vmem>>, vector<16x8xf32>
    tpu.vector_store %arg16[%c0_33, %c8], %86 {strides = array<i32>} : memref<16x32xf32, #tpu.memory_space<vmem>>, vector<16x8xf32>,
    %88 = vector.extract_strided_slice %42 {offsets = [0, 16], sizes = [16, 8], strides = [1, 1]} : vector<16x32xbf16> to vector<16x8xbf16>
    %89 = vector.extract_strided_slice %44 {offsets = [0, 16], sizes = [16, 8], strides = [1, 1]} : vector<16x32xbf16> to vector<16x8xbf16>
    %cst_34 = arith.constant dense<0.000000e+00> : vector<16x16xf32>
    %90 = tpu.matmul %88, %89, %cst_34 {dimension_numbers = #tpu.dot_dimension_numbers<[1], [1], [0], [0], [0, 0, 1, 0], [], []>} : vector<16x8xbf16>, vector<16x8xbf16>, vector<16x16xf32> -> vector<16x16xf32>
    %cst_35 = arith.constant -1.000000e+30 : f32
    %91 = vector.broadcast %cst_35 : f32 to vector<16x16xf32>
    %92 = arith.select %49, %90, %91 : vector<16x16xi1>, vector<16x16xf32>
    %cst_36 = arith.constant dense<0xFF800000> : vector<16xf32>
    %93 = vector.multi_reduction <maximumf>, %92, %cst_36 [1] : vector<16x16xf32> to vector<16xf32>
    %94 = vector.shape_cast %93 : vector<16xf32> to vector<16x1xf32>
    %95 = vector.broadcast %94 : vector<16x1xf32> to vector<16x16xf32>
    %96 = arith.subf %92, %95 : vector<16x16xf32>
    %97 = math.exp %96 : vector<16x16xf32>
    %cst_37 = arith.constant dense<0.000000e+00> : vector<16xf32>
    %98 = vector.multi_reduction <add>, %97, %cst_37 [1] : vector<16x16xf32> to vector<16xf32>
    %99 = vector.shape_cast %98 : vector<16xf32> to vector<16x1xf32>
    %100 = tpu.reciprocal %99 {approx = true} : vector<16x1xf32> -> vector<16x1xf32>
    %101 = vector.broadcast %100 : vector<16x1xf32> to vector<16x16xf32>
    %102 = arith.mulf %97, %101 : vector<16x16xf32>
    %103 = arith.truncf %102 : vector<16x16xf32> to vector<16x16xbf16>
    %104 = vector.extract_strided_slice %46 {offsets = [0, 16], sizes = [16, 8], strides = [1, 1]} : vector<16x32xbf16> to vector<16x8xbf16>
    %cst_38 = arith.constant dense<0.000000e+00> : vector<16x8xf32>
    %105 = tpu.matmul %103, %104, %cst_38 {dimension_numbers = #tpu.dot_dimension_numbers<[1], [0], [0], [1], [0, 0, 1, 1], [], []>} : vector<16x16xbf16>, vector<16x8xbf16>, vector<16x8xf32> -> vector<16x8xf32>
    %c0_39 = arith.constant 0 : index
    %c16 = arith.constant 16 : index
    %106 = vector.load %arg16[%c0_39, %c16] : memref<16x32xf32, #tpu.memory_space<vmem>>, vector<16x8xf32>
    tpu.vector_store %arg16[%c0_39, %c16], %105 {strides = array<i32>} : memref<16x32xf32, #tpu.memory_space<vmem>>, vector<16x8xf32>,
    %107 = vector.extract_strided_slice %42 {offsets = [0, 24], sizes = [16, 8], strides = [1, 1]} : vector<16x32xbf16> to vector<16x8xbf16>
    %108 = vector.extract_strided_slice %44 {offsets = [0, 24], sizes = [16, 8], strides = [1, 1]} : vector<16x32xbf16> to vector<16x8xbf16>
    %cst_40 = arith.constant dense<0.000000e+00> : vector<16x16xf32>
    %109 = tpu.matmul %107, %108, %cst_40 {dimension_numbers = #tpu.dot_dimension_numbers<[1], [1], [0], [0], [0, 0, 1, 0], [], []>} : vector<16x8xbf16>, vector<16x8xbf16>, vector<16x16xf32> -> vector<16x16xf32>
    %cst_41 = arith.constant -1.000000e+30 : f32
    %110 = vector.broadcast %cst_41 : f32 to vector<16x16xf32>
    %111 = arith.select %49, %109, %110 : vector<16x16xi1>, vector<16x16xf32>
    %cst_42 = arith.constant dense<0xFF800000> : vector<16xf32>
    %112 = vector.multi_reduction <maximumf>, %111, %cst_42 [1] : vector<16x16xf32> to vector<16xf32>
    %113 = vector.shape_cast %112 : vector<16xf32> to vector<16x1xf32>
    %114 = vector.broadcast %113 : vector<16x1xf32> to vector<16x16xf32>
    %115 = arith.subf %111, %114 : vector<16x16xf32>
    %116 = math.exp %115 : vector<16x16xf32>
    %cst_43 = arith.constant dense<0.000000e+00> : vector<16xf32>
    %117 = vector.multi_reduction <add>, %116, %cst_43 [1] : vector<16x16xf32> to vector<16xf32>
    %118 = vector.shape_cast %117 : vector<16xf32> to vector<16x1xf32>
    %119 = tpu.reciprocal %118 {approx = true} : vector<16x1xf32> -> vector<16x1xf32>
    %120 = vector.broadcast %119 : vector<16x1xf32> to vector<16x16xf32>
    %121 = arith.mulf %116, %120 : vector<16x16xf32>
    %122 = arith.truncf %121 : vector<16x16xf32> to vector<16x16xbf16>
    %123 = vector.extract_strided_slice %46 {offsets = [0, 24], sizes = [16, 8], strides = [1, 1]} : vector<16x32xbf16> to vector<16x8xbf16>
    %cst_44 = arith.constant dense<0.000000e+00> : vector<16x8xf32>
    %124 = tpu.matmul %122, %123, %cst_44 {dimension_numbers = #tpu.dot_dimension_numbers<[1], [0], [0], [1], [0, 0, 1, 1], [], []>} : vector<16x16xbf16>, vector<16x8xbf16>, vector<16x8xf32> -> vector<16x8xf32>
    %c0_45 = arith.constant 0 : index
    %c24 = arith.constant 24 : index
    %125 = vector.load %arg16[%c0_45, %c24] : memref<16x32xf32, #tpu.memory_space<vmem>>, vector<16x8xf32>
    tpu.vector_store %arg16[%c0_45, %c24], %124 {strides = array<i32>} : memref<16x32xf32, #tpu.memory_space<vmem>>, vector<16x8xf32>,
    %c0_46 = arith.constant 0 : index
    %c0_47 = arith.constant 0 : index
    %126 = vector.load %arg16[%c0_46, %c0_47] : memref<16x32xf32, #tpu.memory_space<vmem>>, vector<16x32xf32>
    %127 = arith.truncf %126 : vector<16x32xf32> to vector<16x32xbf16>
    %c0_48 = arith.constant 0 : index
    %c0_49 = arith.constant 0 : index
    %c0_50 = arith.constant 0 : index
    %128 = vector.load %arg7[%c0_48, %c0_49, %c0_50] : memref<1x32x32xbf16, #tpu.memory_space<vmem>>, vector<1x32x32xbf16>
    %129 = vector.shape_cast %128 : vector<1x32x32xbf16> to vector<32x32xbf16>
    %cst_51 = arith.constant dense<0.000000e+00> : vector<16x32xf32>
    %130 = tpu.matmul %127, %129, %cst_51 {dimension_numbers = #tpu.dot_dimension_numbers<[1], [0], [0], [1], [0, 0, 1, 1], [], []>} : vector<16x32xbf16>, vector<32x32xbf16>, vector<16x32xf32> -> vector<16x32xf32>
    %c0_52 = arith.constant 0 : index
    %c0_53 = arith.constant 0 : index
    %c0_54 = arith.constant 0 : index
    %131 = vector.load %arg8[%c0_52, %c0_53, %c0_54] : memref<1x1x32xf32, #tpu.memory_space<vmem>>, vector<1x1x32xf32>
    %132 = vector.shape_cast %131 : vector<1x1x32xf32> to vector<1x32xf32>
    %133 = vector.broadcast %132 : vector<1x32xf32> to vector<16x32xf32>
    %134 = arith.addf %130, %133 : vector<16x32xf32>
    %135 = arith.addf %4, %134 : vector<16x32xf32>
    %c0_55 = arith.constant 0 : index
    %c0_56 = arith.constant 0 : index
    %c0_57 = arith.constant 0 : index
    %136 = vector.load %arg9[%c0_55, %c0_56, %c0_57] : memref<1x1x32xf32, #tpu.memory_space<vmem>>, vector<1x1x32xf32>
    %137 = vector.shape_cast %136 : vector<1x1x32xf32> to vector<1x32xf32>
    %c0_58 = arith.constant 0 : index
    %c0_59 = arith.constant 0 : index
    %c0_60 = arith.constant 0 : index
    %138 = vector.load %arg10[%c0_58, %c0_59, %c0_60] : memref<1x1x32xf32, #tpu.memory_space<vmem>>, vector<1x1x32xf32>
    %139 = vector.shape_cast %138 : vector<1x1x32xf32> to vector<1x32xf32>
    %cst_61 = arith.constant dense<0.000000e+00> : vector<16xf32>
    %140 = vector.multi_reduction <add>, %135, %cst_61 [1] : vector<16x32xf32> to vector<16xf32>
    %141 = vector.shape_cast %140 : vector<16xf32> to vector<16x1xf32>
    %cst_62 = arith.constant 3.200000e+01 : f32
    %142 = vector.broadcast %cst_62 : f32 to vector<16x1xf32>
    %143 = arith.divf %141, %142 : vector<16x1xf32>
    %144 = vector.broadcast %143 : vector<16x1xf32> to vector<16x32xf32>
    %145 = arith.subf %135, %144 : vector<16x32xf32>
    %146 = arith.mulf %145, %145 : vector<16x32xf32>
    %cst_63 = arith.constant dense<0.000000e+00> : vector<16xf32>
    %147 = vector.multi_reduction <add>, %146, %cst_63 [1] : vector<16x32xf32> to vector<16xf32>
    %148 = vector.shape_cast %147 : vector<16xf32> to vector<16x1xf32>
    %cst_64 = arith.constant 3.200000e+01 : f32
    %149 = vector.broadcast %cst_64 : f32 to vector<16x1xf32>
    %150 = arith.divf %148, %149 : vector<16x1xf32>
    %151 = vector.broadcast %143 : vector<16x1xf32> to vector<16x32xf32>
    %152 = arith.subf %135, %151 : vector<16x32xf32>
    %cst_65 = arith.constant 9.99999974E-6 : f32
    %153 = vector.broadcast %cst_65 : f32 to vector<16x1xf32>
    %154 = arith.addf %150, %153 : vector<16x1xf32>
    %155 = math.rsqrt %154 : vector<16x1xf32>
    %156 = vector.broadcast %155 : vector<16x1xf32> to vector<16x32xf32>
    %157 = arith.mulf %152, %156 : vector<16x32xf32>
    %158 = vector.broadcast %137 : vector<1x32xf32> to vector<16x32xf32>
    %159 = arith.mulf %157, %158 : vector<16x32xf32>
    %160 = vector.broadcast %139 : vector<1x32xf32> to vector<16x32xf32>
    %161 = arith.addf %159, %160 : vector<16x32xf32>
    %162 = arith.truncf %161 : vector<16x32xf32> to vector<16x32xbf16>
    %c0_66 = arith.constant 0 : index
    %c0_67 = arith.constant 0 : index
    %c0_68 = arith.constant 0 : index
    %163 = vector.load %arg11[%c0_66, %c0_67, %c0_68] : memref<1x32x128xbf16, #tpu.memory_space<vmem>>, vector<1x32x128xbf16>
    %164 = vector.shape_cast %163 : vector<1x32x128xbf16> to vector<32x128xbf16>
    %cst_69 = arith.constant dense<0.000000e+00> : vector<16x128xf32>
    %165 = tpu.matmul %162, %164, %cst_69 {dimension_numbers = #tpu.dot_dimension_numbers<[1], [0], [0], [1], [0, 0, 1, 1], [], []>} : vector<16x32xbf16>, vector<32x128xbf16>, vector<16x128xf32> -> vector<16x128xf32>
    %c0_70 = arith.constant 0 : index
    %c0_71 = arith.constant 0 : index
    %c0_72 = arith.constant 0 : index
    %166 = vector.load %arg12[%c0_70, %c0_71, %c0_72] : memref<1x1x128xf32, #tpu.memory_space<vmem>>, vector<1x1x128xf32>
    %167 = vector.shape_cast %166 : vector<1x1x128xf32> to vector<1x128xf32>
    %168 = vector.broadcast %167 : vector<1x128xf32> to vector<16x128xf32>
    %169 = arith.addf %165, %168 : vector<16x128xf32>
    %cst_73 = arith.constant 1.702000e+00 : f32
    %170 = vector.broadcast %cst_73 : f32 to vector<16x128xf32>
    %171 = arith.mulf %170, %169 : vector<16x128xf32>
    %172 = arith.negf %171 : vector<16x128xf32>
    %173 = math.exp %172 : vector<16x128xf32>
    %cst_74 = arith.constant 1.000000e+00 : f32
    %174 = vector.broadcast %cst_74 : f32 to vector<16x128xf32>
    %175 = arith.addf %174, %173 : vector<16x128xf32>
    %176 = arith.divf %174, %175 : vector<16x128xf32>
    %177 = arith.mulf %169, %176 : vector<16x128xf32>
    %178 = arith.truncf %177 : vector<16x128xf32> to vector<16x128xbf16>
    %c0_75 = arith.constant 0 : index
    %c0_76 = arith.constant 0 : index
    %c0_77 = arith.constant 0 : index
    %179 = vector.load %arg13[%c0_75, %c0_76, %c0_77] : memref<1x128x32xbf16, #tpu.memory_space<vmem>>, vector<1x128x32xbf16>
    %180 = vector.shape_cast %179 : vector<1x128x32xbf16> to vector<128x32xbf16>
    %cst_78 = arith.constant dense<0.000000e+00> : vector<16x32xf32>
    %181 = tpu.matmul %178, %180, %cst_78 {dimension_numbers = #tpu.dot_dimension_numbers<[1], [0], [0], [1], [0, 0, 1, 1], [], []>} : vector<16x128xbf16>, vector<128x32xbf16>, vector<16x32xf32> -> vector<16x32xf32>
    %c0_79 = arith.constant 0 : index
    %c0_80 = arith.constant 0 : index
    %c0_81 = arith.constant 0 : index
    %182 = vector.load %arg14[%c0_79, %c0_80, %c0_81] : memref<1x1x32xf32, #tpu.memory_space<vmem>>, vector<1x1x32xf32>
    %183 = vector.shape_cast %182 : vector<1x1x32xf32> to vector<1x32xf32>
    %184 = vector.broadcast %183 : vector<1x32xf32> to vector<16x32xf32>
    %185 = arith.addf %181, %184 : vector<16x32xf32>
    %186 = arith.addf %135, %185 : vector<16x32xf32>
    %c0_82 = arith.constant 0 : index
    %c0_83 = arith.constant 0 : index
    %c0_84 = arith.constant 0 : index
    %187 = vector.load %arg15[%c0_82, %c0_83, %c0_84] : memref<1x16x32xf32, #tpu.memory_space<vmem>>, vector<1x16x32xf32>
    %188 = vector.shape_cast %187 : vector<1x16x32xf32> to vector<16x32xf32>
    %189 = vector.shape_cast %186 : vector<16x32xf32> to vector<1x16x32xf32>
    tpu.vector_store %arg15[%c0_82, %c0_83, %c0_84], %189 {strides = array<i32>} : memref<1x16x32xf32, #tpu.memory_space<vmem>>, vector<1x16x32xf32>,
    return
  }
  func.func @transform_0(%arg0: i32, %arg1: i32) -> (i32, i32, i32) {
    %c0_i32 = arith.constant 0 : i32
    %c0_i32_0 = arith.constant 0 : i32
    %c0_i32_1 = arith.constant 0 : i32
    return %arg0, %c0_i32, %c0_i32_0 : i32, i32, i32
  }
  func.func @transform_1(%arg0: i32, %arg1: i32) -> (i32, i32, i32) {
    %c0_i32 = arith.constant 0 : i32
    %c0_i32_0 = arith.constant 0 : i32
    %c0_i32_1 = arith.constant 0 : i32
    return %arg1, %c0_i32, %c0_i32_0 : i32, i32, i32
  }
  func.func @transform_2(%arg0: i32, %arg1: i32) -> (i32, i32, i32) {
    %c0_i32 = arith.constant 0 : i32
    %c0_i32_0 = arith.constant 0 : i32
    %c0_i32_1 = arith.constant 0 : i32
    return %arg1, %c0_i32, %c0_i32_0 : i32, i32, i32
  }
  func.func @transform_3(%arg0: i32, %arg1: i32) -> (i32, i32, i32) {
    %c0_i32 = arith.constant 0 : i32
    %c0_i32_0 = arith.constant 0 : i32
    %c0_i32_1 = arith.constant 0 : i32
    return %arg1, %c0_i32, %c0_i32_0 : i32, i32, i32
  }
  func.func @transform_4(%arg0: i32, %arg1: i32) -> (i32, i32, i32) {
    %c0_i32 = arith.constant 0 : i32
    %c0_i32_0 = arith.constant 0 : i32
    %c0_i32_1 = arith.constant 0 : i32
    return %arg1, %c0_i32, %c0_i32_0 : i32, i32, i32
  }
  func.func @transform_5(%arg0: i32, %arg1: i32) -> (i32, i32, i32) {
    %c0_i32 = arith.constant 0 : i32
    %c0_i32_0 = arith.constant 0 : i32
    %c0_i32_1 = arith.constant 0 : i32
    return %arg1, %c0_i32, %c0_i32_0 : i32, i32, i32
  }
  func.func @transform_6(%arg0: i32, %arg1: i32) -> (i32, i32, i32) {
    %c0_i32 = arith.constant 0 : i32
    %c0_i32_0 = arith.constant 0 : i32
    %c0_i32_1 = arith.constant 0 : i32
    return %arg1, %c0_i32, %c0_i32_0 : i32, i32, i32
  }
  func.func @transform_7(%arg0: i32, %arg1: i32) -> (i32, i32, i32) {
    %c0_i32 = arith.constant 0 : i32
    %c0_i32_0 = arith.constant 0 : i32
    %c0_i32_1 = arith.constant 0 : i32
    return %arg1, %c0_i32, %c0_i32_0 : i32, i32, i32
  }
  func.func @transform_8(%arg0: i32, %arg1: i32) -> (i32, i32, i32) {
    %c0_i32 = arith.constant 0 : i32
    %c0_i32_0 = arith.constant 0 : i32
    %c0_i32_1 = arith.constant 0 : i32
    return %arg1, %c0_i32, %c0_i32_0 : i32, i32, i32
  }
  func.func @transform_9(%arg0: i32, %arg1: i32) -> (i32, i32, i32) {
    %c0_i32 = arith.constant 0 : i32
    %c0_i32_0 = arith.constant 0 : i32
    %c0_i32_1 = arith.constant 0 : i32
    return %arg1, %c0_i32, %c0_i32_0 : i32, i32, i32
  }
  func.func @transform_10(%arg0: i32, %arg1: i32) -> (i32, i32, i32) {
    %c0_i32 = arith.constant 0 : i32
    %c0_i32_0 = arith.constant 0 : i32
    %c0_i32_1 = arith.constant 0 : i32
    return %arg1, %c0_i32, %c0_i32_0 : i32, i32, i32
  }
  func.func @transform_11(%arg0: i32, %arg1: i32) -> (i32, i32, i32) {
    %c0_i32 = arith.constant 0 : i32
    %c0_i32_0 = arith.constant 0 : i32
    %c0_i32_1 = arith.constant 0 : i32
    return %arg1, %c0_i32, %c0_i32_0 : i32, i32, i32
  }
  func.func @transform_12(%arg0: i32, %arg1: i32) -> (i32, i32, i32) {
    %c0_i32 = arith.constant 0 : i32
    %c0_i32_0 = arith.constant 0 : i32
    %c0_i32_1 = arith.constant 0 : i32
    return %arg1, %c0_i32, %c0_i32_0 : i32, i32, i32
  }
  func.func @transform_13(%arg0: i32, %arg1: i32) -> (i32, i32, i32) {
    %c0_i32 = arith.constant 0 : i32
    %c0_i32_0 = arith.constant 0 : i32
    %c0_i32_1 = arith.constant 0 : i32
    return %arg0, %c0_i32, %c0_i32_0 : i32, i32, i32
  }
}

</mosaic_0001>

<llo_original>
// kernel: vit_forward_pallas.3
$region0: #{vit_forward_pallas.3}
  #allocation0 [shape = 'u32[]', space=smem, size = 0x4, offset = 0x4, fixed_abs, tag = 'smem constant byte address 0x4 - core index']
  #allocation1 [shape = 'u32[72,128]{1,0:T(1,128)}', space=vmem, size = 0x9000, scoped, tag = 'internal scratch']
  %s0 = inlined_call_operand.vmem [shape: bf16[2,4,256], index: 0, kind: input, shape index: {}]
  %s1 = inlined_call_operand.vmem [shape: bf16[256,32], index: 1, kind: input, shape index: {}]
  %s2 = inlined_call_operand.vmem [shape: f32[1,32], index: 2, kind: input, shape index: {}]
  %s3 = inlined_call_operand.vmem [shape: f32[16,32], index: 3, kind: input, shape index: {}]
  %s4 = inlined_call_operand.vmem [shape: f32[1,32], index: 4, kind: input, shape index: {}]
  %s5 = inlined_call_operand.vmem [shape: f32[1,32], index: 5, kind: input, shape index: {}]
  %s6 = inlined_call_operand.vmem [shape: f32[2,16,32], index: 6, kind: output, shape index: {}]
  %s7 = sld [smem:[#allocation0]]
  $region57: #{vit_forward_pallas.3} parent=0
    _
  %s9 = ssub.s32 1, %s7
  %s10 = scalar_select 0, %s9, %s7
  loop: start=0, step=1, limit=4
  $region2: #{vit_forward_pallas.3} parent=0 // loop_pre_header
    _
  $region3: #{vit_forward_pallas.3} parent=0 // loop_header
    %s12 = sphi 0, %s16
    %p13 = scmp.ge.s32.totalorder %s12, 4
    %s22 = sphi 0, %s24
    %s25 = sphi 0, %s22
    %s26 = sphi 0, %s25
    %s42 = sphi 0, %s26
    %s46 = sphi 0, %s46
    %s48 = sphi 0, %s46
    %s49 = sphi 0, %s48
    %s63 = sphi 0, %s49
    %s67 = sphi 0, %s67
    %s69 = sphi 0, %s67
    %s70 = sphi 0, %s69
    %s84 = sphi 0, %s70
    %s88 = sphi 0, %s88
    %s90 = sphi 0, %s88
    %s91 = sphi 0, %s90
    %s105 = sphi 0, %s91
    %s109 = sphi 0, %s109
    %s111 = sphi 0, %s109
    %s112 = sphi 0, %s111
    %s126 = sphi 0, %s112
    %s130 = sphi 0, %s130
    %s132 = sphi 0, %s130
    %s133 = sphi 0, %s132
    %s147 = sphi 0, %s133
    %s153 = sphi 0, %s155
    %s156 = sphi 0, %s153
    %s157 = sphi 0, %s156
    %s173 = sphi 0, %s157
  $region4: #{vit_forward_pallas.3} parent=0 // loop_header_branch
    %15 = sbr.rel (%p13) target = $region8
  $region5: #{vit_forward_pallas.3} parent=0 // loop_body
    %s17 = ssub.s32 %s12, 1
    %s18 = ssub.s32 %s12, 2
    %s19 = sadd.s32 %s12, 1
    %s20 = ssub.s32 %s12, %s19
    %p21 = scmp.eq.s32.totalorder %s20, 0
    %s23 = sadd.s32 %s22, 1
    %s24 = scalar_select %p21, %s22, %s23
    %p27 = pneg %p21
    %p28 = scmp.eq.s32.totalorder %s12, 1
    %p29 = por %p27, %p28
    %p30 = scmp.ne.s32.totalorder %s22, %s25
    %p31 = scmp.eq.s32.totalorder %s12, 0
    %p32 = por %p30, %p31
    %p33 = scmp.ne.s32.totalorder %s22, %s25
    %p34 = scmp.eq.s32.totalorder %s17, 1
    %p35 = por %p33, %p34
    %p36 = scmp.ne.s32.totalorder %s25, %s26
    %p37 = scmp.eq.s32.totalorder %s17, 0
    %p38 = por %p36, %p37
    %p39 = scmp.ne.s32.totalorder %s25, %s26
    %p40 = scmp.eq.s32.totalorder %s18, 1
    %p41 = por %p39, %p40
    %p43 = scmp.ne.s32.totalorder %s26, %s42
    %p44 = scmp.eq.s32.totalorder %s18, 0
    %p45 = por %p43, %p44
    %s47 = sadd.s32 %s46, 1
    %p50 = scmp.eq.s32.totalorder %s12, 1
    %p51 = scmp.ne.s32.totalorder %s46, %s48
    %p52 = scmp.eq.s32.totalorder %s12, 0
    %p53 = por %p51, %p52
    %p54 = scmp.ne.s32.totalorder %s46, %s48
    %p55 = scmp.eq.s32.totalorder %s17, 1
    %p56 = por %p54, %p55
    %p57 = scmp.ne.s32.totalorder %s48, %s49
    %p58 = scmp.eq.s32.totalorder %s17, 0
    %p59 = por %p57, %p58
    %p60 = scmp.ne.s32.totalorder %s48, %s49
    %p61 = scmp.eq.s32.totalorder %s18, 1
    %p62 = por %p60, %p61
    %p64 = scmp.ne.s32.totalorder %s49, %s63
    %p65 = scmp.eq.s32.totalorder %s18, 0
    %p66 = por %p64, %p65
    %s68 = sadd.s32 %s67, 1
    %p71 = scmp.eq.s32.totalorder %s12, 1
    %p72 = scmp.ne.s32.totalorder %s67, %s69
    %p73 = scmp.eq.s32.totalorder %s12, 0
    %p74 = por %p72, %p73
    %p75 = scmp.ne.s32.totalorder %s67, %s69
    %p76 = scmp.eq.s32.totalorder %s17, 1
    %p77 = por %p75, %p76
    %p78 = scmp.ne.s32.totalorder %s69, %s70
    %p79 = scmp.eq.s32.totalorder %s17, 0
    %p80 = por %p78, %p79
    %p81 = scmp.ne.s32.totalorder %s69, %s70
    %p82 = scmp.eq.s32.totalorder %s18, 1
    %p83 = por %p81, %p82
    %p85 = scmp.ne.s32.totalorder %s70, %s84
    %p86 = scmp.eq.s32.totalorder %s18, 0
    %p87 = por %p85, %p86
    %s89 = sadd.s32 %s88, 1
    %p92 = scmp.eq.s32.totalorder %s12, 1
    %p93 = scmp.ne.s32.totalorder %s88, %s90
    %p94 = scmp.eq.s32.totalorder %s12, 0
    %p95 = por %p93, %p94
    %p96 = scmp.ne.s32.totalorder %s88, %s90
    %p97 = scmp.eq.s32.totalorder %s17, 1
    %p98 = por %p96, %p97
    %p99 = scmp.ne.s32.totalorder %s90, %s91
    %p100 = scmp.eq.s32.totalorder %s17, 0
    %p101 = por %p99, %p100
    %p102 = scmp.ne.s32.totalorder %s90, %s91
    %p103 = scmp.eq.s32.totalorder %s18, 1
    %p104 = por %p102, %p103
    %p106 = scmp.ne.s32.totalorder %s91, %s105
    %p107 = scmp.eq.s32.totalorder %s18, 0
    %p108 = por %p106, %p107
    %s110 = sadd.s32 %s109, 1
    %p113 = scmp.eq.s32.totalorder %s12, 1
    %p114 = scmp.ne.s32.totalorder %s109, %s111
    %p115 = scmp.eq.s32.totalorder %s12, 0
    %p116 = por %p114, %p115
    %p117 = scmp.ne.s32.totalorder %s109, %s111
    %p118 = scmp.eq.s32.totalorder %s17, 1
    %p119 = por %p117, %p118
    %p120 = scmp.ne.s32.totalorder %s111, %s112
    %p121 = scmp.eq.s32.totalorder %s17, 0
    %p122 = por %p120, %p121
    %p123 = scmp.ne.s32.totalorder %s111, %s112
    %p124 = scmp.eq.s32.totalorder %s18, 1
    %p125 = por %p123, %p124
    %p127 = scmp.ne.s32.totalorder %s112, %s126
    %p128 = scmp.eq.s32.totalorder %s18, 0
    %p129 = por %p127, %p128
    %s131 = sadd.s32 %s130, 1
    %p134 = scmp.eq.s32.totalorder %s12, 1
    %p135 = scmp.ne.s32.totalorder %s130, %s132
    %p136 = scmp.eq.s32.totalorder %s12, 0
    %p137 = por %p135, %p136
    %p138 = scmp.ne.s32.totalorder %s130, %s132
    %p139 = scmp.eq.s32.totalorder %s17, 1
    %p140 = por %p138, %p139
    %p141 = scmp.ne.s32.totalorder %s132, %s133
    %p142 = scmp.eq.s32.totalorder %s17, 0
    %p143 = por %p141, %p142
    %p144 = scmp.ne.s32.totalorder %s132, %s133
    %p145 = scmp.eq.s32.totalorder %s18, 1
    %p146 = por %p144, %p145
    %p148 = scmp.ne.s32.totalorder %s133, %s147
    %p149 = scmp.eq.s32.totalorder %s18, 0
    %p150 = por %p148, %p149
    %s151 = ssub.s32 %s12, %s19
    %p152 = scmp.eq.s32.totalorder %s151, 0
    %s154 = sadd.s32 %s153, 1
    %s155 = scalar_select %p152, %s153, %s154
    %p158 = pneg %p152
    %p159 = scmp.eq.s32.totalorder %s12, 1
    %p160 = por %p158, %p159
    %p161 = scmp.ne.s32.totalorder %s153, %s156
    %p162 = scmp.eq.s32.totalorder %s12, 0
    %p163 = por %p161, %p162
    %p164 = scmp.ne.s32.totalorder %s153, %s156
    %p165 = scmp.eq.s32.totalorder %s17, 1
    %p166 = por %p164, %p165
    %p167 = scmp.ne.s32.totalorder %s156, %s157
    %p168 = scmp.eq.s32.totalorder %s17, 0
    %p169 = por %p167, %p168
    %p170 = scmp.ne.s32.totalorder %s156, %s157
    %p171 = scmp.eq.s32.totalorder %s18, 1
    %p172 = por %p170, %p171
    %p174 = scmp.ne.s32.totalorder %s157, %s173
    %p175 = scmp.eq.s32.totalorder %s18, 0
    %p176 = por %p174, %p175
    %p177 = scmp.le.s32.totalorder 1, %s12
    %p178 = scmp.lt.s32.totalorder %s12, 3
    %p179 = pnand %p177, %p178
    %p180 = pneg %p179
    // Predicated region
    $region9: #{vit_forward_pallas.3} parent=5 // pred_check
      _
    $region10: #{vit_forward_pallas.3} parent=5 // pred_check_branch
      %182 = sbr.rel (%p179) target = $region12
    $region11: #{vit_forward_pallas.3} parent=5 // pred_region
      %s183 = ssub.s32 %s12, 1
      // Predicated region
      $region13: #{vit_forward_pallas.3} parent=11 // pred_check
        %p184 = pneg %p59
      $region14: #{vit_forward_pallas.3} parent=11 // pred_check_branch
        %186 = sbr.rel (%p184) target = $region16
      $region15: #{vit_forward_pallas.3} parent=11 // pred_region
        _
      $region16: #{vit_forward_pallas.3} parent=11 // pred_fallthru
        _
      // Predicated region
      $region17: #{vit_forward_pallas.3} parent=11 // pred_check
        %p187 = pneg %p80
      $region18: #{vit_forward_pallas.3} parent=11 // pred_check_branch
        %189 = sbr.rel (%p187) target = $region20
      $region19: #{vit_forward_pallas.3} parent=11 // pred_region
        _
      $region20: #{vit_forward_pallas.3} parent=11 // pred_fallthru
        _
      // Predicated region
      $region21: #{vit_forward_pallas.3} parent=11 // pred_check
        %p190 = pneg %p101
      $region22: #{vit_forward_pallas.3} parent=11 // pred_check_branch
        %192 = sbr.rel (%p190) target = $region24
      $region23: #{vit_forward_pallas.3} parent=11 // pred_region
        _
      $region24: #{vit_forward_pallas.3} parent=11 // pred_fallthru
        _
      // Predicated region
      $region25: #{vit_forward_pallas.3} parent=11 // pred_check
        %p193 = pneg %p122
      $region26: #{vit_forward_pallas.3} parent=11 // pred_check_branch
        %195 = sbr.rel (%p193) target = $region28
      $region27: #{vit_forward_pallas.3} parent=11 // pred_region
        _
      $region28: #{vit_forward_pallas.3} parent=11 // pred_fallthru
        _
      // Predicated region
      $region29: #{vit_forward_pallas.3} parent=11 // pred_check
        %p196 = pneg %p143
      $region30: #{vit_forward_pallas.3} parent=11 // pred_check_branch
        %198 = sbr.rel (%p196) target = $region32
      $region31: #{vit_forward_pallas.3} parent=11 // pred_region
        _
      $region32: #{vit_forward_pallas.3} parent=11 // pred_fallthru
        _
    $region12: #{vit_forward_pallas.3} parent=5 // pred_fallthru
      _
    %p199 = scmp.lt.s32.totalorder %s12, 2
    // Predicated region
    $region33: #{vit_forward_pallas.3} parent=5 // pred_check
      %p200 = pneg %p199
    $region34: #{vit_forward_pallas.3} parent=5 // pred_check_branch
      %202 = sbr.rel (%p200) target = $region36
    $region35: #{vit_forward_pallas.3} parent=5 // pred_region
      // Predicated region
      $region37: #{vit_forward_pallas.3} parent=35 // pred_check
        %p203 = pneg %p32
      $region38: #{vit_forward_pallas.3} parent=35 // pred_check_branch
        %205 = sbr.rel (%p203) target = $region40
      $region39: #{vit_forward_pallas.3} parent=35 // pred_region
        %p206 = scmp.lt.s32.totalorder %s12, 1
        %s207 = scalar_select %p206, %s12, 1
        %s208 = smul.addr %s207, 2
        %s209 = smul.addr %s208, 2
        %s210 = scalar_lea.vmem %s0, %s209
      $region40: #{vit_forward_pallas.3} parent=35 // pred_fallthru
        _
    $region36: #{vit_forward_pallas.3} parent=5 // pred_fallthru
      _
    %p211 = scmp.le.s32.totalorder 1, %s12
    %p212 = scmp.lt.s32.totalorder %s12, 3
    %p213 = pnand %p211, %p212
    %p214 = pneg %p213
    // Predicated region
    $region41: #{vit_forward_pallas.3} parent=5 // pred_check
      _
    $region42: #{vit_forward_pallas.3} parent=5 // pred_check_branch
      %216 = sbr.rel (%p213) target = $region44
    $region43: #{vit_forward_pallas.3} parent=5 // pred_region
      %s217 = ssub.s32 %s12, 1
      %p218 = scmp.lt.s32.totalorder %s17, 1
      %s219 = scalar_select %p218, %s17, 1
      %s220 = smul.addr %s219, 2
      %s221 = smul.addr %s220, 2
      %s222 = scalar_lea.vmem %s0, %s221
      %p223 = pneg %p38
      %p224 = pneg %p35
      %p225 = pneg %p59
      %p226 = pneg %p56
      %p227 = pneg %p80
      %p228 = pneg %p77
      %p229 = pneg %p101
      %p230 = pneg %p98
      %p231 = pneg %p122
      %p232 = pneg %p119
      %p233 = pneg %p143
      %p234 = pneg %p140
      %p235 = pneg %p169
      %p236 = pneg %p166
      %p237 = scmp.lt.s32.totalorder %s17, 1
      %s238 = scalar_select %p237, %s17, 1
      %s239 = smul.addr %s238, 2
      %s240 = smul.addr %s239, 8
      %s241 = scalar_lea.vmem %s6, %s240
      %p242 = scmp.lt.s32.totalorder %s17, 1
      %s243 = scalar_select %p242, %s17, 1
      %s244 = smul.addr %s243, 2
      %s245 = smul.addr %s244, 2
      %s246 = scalar_lea.vmem %s0, %s245
      %p247 = scmp.lt.s32.totalorder %s17, 1
      %s248 = scalar_select %p247, %s17, 1
      %s249 = smul.addr %s248, 2
      %s250 = smul.addr %s249, 8
      %s251 = scalar_lea.vmem %s6, %s250
      %v252 = vld [vmem:[%s4] sm:$0x1]
      %v253 = vld [vmem:[%s5] sm:$0x1]
      %v254 = vld [vmem:[%s246] sm:$0xf]
      %v255 = vld [vmem:[%s1] sm:$0xf]
      %v256 = vld [vmem:[%s1 + $0x4] sm:$0xf]
      %v257 = vld [vmem:[%s1 + $0x8] sm:$0xf]
      %v258 = vld [vmem:[%s1 + $0xc] sm:$0xf]
      %v259 = vld [vmem:[%s1 + $0x10] sm:$0xf]
      %v260 = vld [vmem:[%s1 + $0x14] sm:$0xf]
      %v261 = vld [vmem:[%s1 + $0x18] sm:$0xf]
      %v262 = vld [vmem:[%s1 + $0x1c] sm:$0xf]
      %v263 = vld [vmem:[%s1 + $0x20] sm:$0xf]
      %v264 = vld [vmem:[%s1 + $0x24] sm:$0xf]
      %v265 = vld [vmem:[%s1 + $0x28] sm:$0xf]
      %v266 = vld [vmem:[%s1 + $0x2c] sm:$0xf]
      %v267 = vld [vmem:[%s1 + $0x30] sm:$0xf]
      %v268 = vld [vmem:[%s1 + $0x34] sm:$0xf]
      %v269 = vld [vmem:[%s1 + $0x38] sm:$0xf]
      %v270 = vld [vmem:[%s1 + $0x3c] sm:$0xf]
      %v271 = vld [vmem:[%s1 + $0x40] sm:$0xf]
      %v272 = vld [vmem:[%s1 + $0x44] sm:$0xf]
      %v273 = vld [vmem:[%s1 + $0x48] sm:$0xf]
      %v274 = vld [vmem:[%s1 + $0x4c] sm:$0xf]
      %v275 = vld [vmem:[%s1 + $0x50] sm:$0xf]
      %v276 = vld [vmem:[%s1 + $0x54] sm:$0xf]
      %v277 = vld [vmem:[%s1 + $0x58] sm:$0xf]
      %v278 = vld [vmem:[%s1 + $0x5c] sm:$0xf]
      %v279 = vld [vmem:[%s1 + $0x60] sm:$0xf]
      %v280 = vld [vmem:[%s1 + $0x64] sm:$0xf]
      %v281 = vld [vmem:[%s1 + $0x68] sm:$0xf]
      %v282 = vld [vmem:[%s1 + $0x6c] sm:$0xf]
      %v283 = vld [vmem:[%s1 + $0x70] sm:$0xf]
      %v284 = vld [vmem:[%s1 + $0x74] sm:$0xf]
      %v285 = vld [vmem:[%s1 + $0x78] sm:$0xf]
      %v286 = vld [vmem:[%s1 + $0x7c] sm:$0xf]
      %v287 = vld [vmem:[%s2] sm:$0x1]
      %v288 = vld [vmem:[%s3] sm:$0x1]
      %v289 = vadd.f32 %v287, %v288
      %vm290 = vcmask 253952
      %v291 = vsel %vm290, %v289, 0.0
      %292 = vadd.xlane.f32.xlu0 %v291
      %v293 = vpop.xlane.xlu0 %292
      %v294 = vrcp.pop 32.0
      %v295 = vmul.f32 32.0, %v294
      %v296 = vsub.f32 1.0, %v295
      %v297 = vmul.f32 %v294, %v296
      %v298 = vadd.f32 %v294, %v297
      %vm299 = vweird.f32 %v294
      %v300 = vsel %vm299, %v294, %v298
      %v301 = vmul.f32 %v293, %v300
      %v302 = vsub.f32 %v289, %v301
      %v303 = vmul.f32 %v302, %v302
      %v304 = vsel %vm290, %v303, 0.0
      %305 = vadd.xlane.f32.xlu0 %v304
      %v306 = vpop.xlane.xlu0 %305
      %v307 = vmul.f32 %v306, %v300
      %v308 = vadd.f32 %v307, 1e-05
      %v309 = vrsqrt.pop %v308
      %v310 = vmul.f32 %v309, %v308
      %v311 = vmul.f32 %v310, %v309
      %v312 = vmul.f32 0.5, %v311
      %v313 = vsub.f32 1.5, %v312
      %v314 = vmul.f32 %v309, %v313
      %vm315 = vweird.f32 %v308
      %vm316 = vweird.f32 %v309
      %vm317 = vmor %vm315, %vm316
      %v318 = vsel %vm317, %v309, %v314
      %v319 = vmul.f32 %v302, %v318
      %v320 = vmul.f32 %v319, %v252
      %v321 = vadd.f32 %v320, %v253
      %322 = vst.msk [vmem:[%s251] sm:$0x1] %vm290, %v321
      %v323 = vld [vmem:[%s3 + $0x1] sm:$0xf]
      %325 = vst [vmem:[#allocation1] ss:$4 sm:$0xff] %v254
      %v326 = vld.sshfl [vmem:[#allocation1] sm:$0xff pattern:$0x73625140]
      %v327 = vld.sshfl [vmem:[#allocation1 + $0x8] sm:$0xff pattern:$0x73625140]
      %v362 = vunpack.c.l.b16 %v255
      %v363 = vunpack.c.l.b16 %v256
      %v364 = vunpack.c.l.b16 %v257
      %v365 = vunpack.c.l.b16 %v258
      %v366 = vunpack.c.l.b16 %v259
      %v367 = vunpack.c.l.b16 %v260
      %v368 = vunpack.c.l.b16 %v261
      %v369 = vunpack.c.l.b16 %v262
      %v370 = vunpack.c.l.b16 %v263
      %v371 = vunpack.c.l.b16 %v264
      %v372 = vunpack.c.l.b16 %v265
      %v373 = vunpack.c.l.b16 %v266
      %v374 = vunpack.c.l.b16 %v267
      %v375 = vunpack.c.l.b16 %v268
      %v376 = vunpack.c.l.b16 %v269
      %v377 = vunpack.c.l.b16 %v270
      %v378 = vunpack.c.l.b16 %v271
      %v379 = vunpack.c.l.b16 %v272
      %v380 = vunpack.c.l.b16 %v273
      %v381 = vunpack.c.l.b16 %v274
      %v382 = vunpack.c.l.b16 %v275
      %v383 = vunpack.c.l.b16 %v276
      %v384 = vunpack.c.l.b16 %v277
      %v385 = vunpack.c.l.b16 %v278
      %v386 = vunpack.c.l.b16 %v279
      %v387 = vunpack.c.l.b16 %v280
      %v388 = vunpack.c.l.b16 %v281
      %v389 = vunpack.c.l.b16 %v282
      %v390 = vunpack.c.l.b16 %v283
      %v391 = vunpack.c.l.b16 %v284
      %v392 = vunpack.c.l.b16 %v285
      %v393 = vunpack.c.l.b16 %v286
      %v394 = vpack.c.b16 %v363, %v362
      %v395 = vpack.c.b16 %v365, %v364
      %v396 = vpack.c.b16 %v367, %v366
      %v397 = vpack.c.b16 %v369, %v368
      %v398 = vpack.c.b16 %v371, %v370
      %v399 = vpack.c.b16 %v373, %v372
      %v400 = vpack.c.b16 %v375, %v374
      %v401 = vpack.c.b16 %v377, %v376
      %v402 = vpack.c.b16 %v379, %v378
      %v403 = vpack.c.b16 %v381, %v380
      %v404 = vpack.c.b16 %v383, %v382
      %v405 = vpack.c.b16 %v385, %v384
      %v406 = vpack.c.b16 %v387, %v386
      %v407 = vpack.c.b16 %v389, %v388
      %v408 = vpack.c.b16 %v391, %v390
      %v409 = vpack.c.b16 %v393, %v392
      %426 = vmatpush.bf16.msra.mxu0 %v401
      %427 = vmatpush.bf16.msra.mxu0 %v400
      %428 = vmatpush.bf16.msra.mxu0 %v399
      %429 = vmatpush.bf16.msra.mxu0 %v398
      %430 = vmatpush.bf16.msra.mxu0 %v397
      %431 = vmatpush.bf16.msra.mxu0 %v396
      %432 = vmatpush.bf16.msra.mxu0 %v395
      %433 = vmatpush.bf16.msra.mxu0 %v394
      %434 = vmatmul.bf16.gmra.mxu0 %v326
      %v435 = vpop.f32.mrf.mxu0
      %v436 = vadd.f32 %v323, %v435
      %v437 = vpop.f32.mrf.mxu0
      %438 = vdwg.mxu0
      %439 = vmatpush.bf16.msra.mxu0 %v409
      %440 = vmatpush.bf16.msra.mxu0 %v408
      %441 = vmatpush.bf16.msra.mxu0 %v407
      %442 = vmatpush.bf16.msra.mxu0 %v406
      %443 = vmatpush.bf16.msra.mxu0 %v405
      %444 = vmatpush.bf16.msra.mxu0 %v404
      %445 = vmatpush.bf16.msra.mxu0 %v403
      %446 = vmatpush.bf16.msra.mxu0 %v402
      %447 = vmatmul.bf16.gmra.mxu0 %v327
      %v448 = vpop.f32.mrf.mxu0
      %v449 = vadd.f32 %v436, %v448
      %v450 = vpop.f32.mrf.mxu0
      %451 = vdwg.mxu0
      %vm452 = vcmask 257024
      %v453 = vsel %vm452, %v449, 0.0
      %454 = vadd.xlane.f32.xlu0 %v453
      %v455 = vpop.xlane.xlu0 %454
      %v456 = vmul.f32 %v455, %v300
      %v457 = vsub.f32 %v449, %v456
      %v458 = vmul.f32 %v457, %v457
      %v459 = vsel %vm452, %v458, 0.0
      %460 = vadd.xlane.f32.xlu0 %v459
      %v461 = vpop.xlane.xlu0 %460
      %v462 = vmul.f32 %v461, %v300
      %v463 = vadd.f32 %v462, 1e-05
      %v464 = vrsqrt.pop %v463
      %v465 = vmul.f32 %v464, %v463
      %v466 = vmul.f32 %v465, %v464
      %v467 = vmul.f32 0.5, %v466
      %v468 = vsub.f32 1.5, %v467
      %v469 = vmul.f32 %v464, %v468
      %vm470 = vweird.f32 %v463
      %vm471 = vweird.f32 %v464
      %vm472 = vmor %vm470, %vm471
      %v473 = vsel %vm472, %v464, %v469
      %v474 = vmul.f32 %v457, %v473
      %v476 = vperm.slane %v252, 0
      %v478 = vmul.f32 %v474, %v476
      %v480 = vperm.slane %v253, 0
      %v482 = vadd.f32 %v478, %v480
      %483 = vst.msk [vmem:[%s251 + $0x1] sm:$0xf] %vm452, %v482
      %vm484 = vcmask 261120
      %485 = vst.msk [vmem:[%s251 + $0x5] sm:$0xff] %vm484, 0.0
      %vm486 = vcmask 256000
      %487 = vst.msk [vmem:[%s251 + $0xd] sm:$0x7] %vm486, 0.0
      %p488 = scmp.lt.s32.totalorder %s17, 1
      %s489 = scalar_select %p488, %s17, 1
      %s490 = smul.addr %s489, 2
      %s491 = smul.addr %s490, 8
      %s492 = scalar_lea.vmem %s6, %s491
      // Predicated region
      $region45: #{vit_forward_pallas.3} parent=43 // pred_check
        %p493 = pneg %p166
      $region46: #{vit_forward_pallas.3} parent=43 // pred_check_branch
        %495 = sbr.rel (%p493) target = $region48
      $region47: #{vit_forward_pallas.3} parent=43 // pred_region
        _
      $region48: #{vit_forward_pallas.3} parent=43 // pred_fallthru
        _
    $region44: #{vit_forward_pallas.3} parent=5 // pred_fallthru
      _
    %p496 = scmp.le.s32.totalorder 2, %s12
    // Predicated region
    $region49: #{vit_forward_pallas.3} parent=5 // pred_check
      %p497 = pneg %p496
    $region50: #{vit_forward_pallas.3} parent=5 // pred_check_branch
      %499 = sbr.rel (%p497) target = $region52
    $region51: #{vit_forward_pallas.3} parent=5 // pred_region
      %s500 = ssub.s32 %s12, 2
      // Predicated region
      $region53: #{vit_forward_pallas.3} parent=51 // pred_check
        %p501 = pneg %p172
      $region54: #{vit_forward_pallas.3} parent=51 // pred_check_branch
        %503 = sbr.rel (%p501) target = $region56
      $region55: #{vit_forward_pallas.3} parent=51 // pred_region
        %p504 = scmp.lt.s32.totalorder %s18, 1
        %s505 = scalar_select %p504, %s18, 1
        %s506 = smul.addr %s505, 2
        %s507 = smul.addr %s506, 8
        %s508 = scalar_lea.vmem %s6, %s507
      $region56: #{vit_forward_pallas.3} parent=51 // pred_fallthru
        _
    $region52: #{vit_forward_pallas.3} parent=5 // pred_fallthru
      _
  $region6: #{vit_forward_pallas.3} parent=0 // loop_footer
    %s16 = sadd.s32 1, %s12
  $region7: #{vit_forward_pallas.3} parent=0 // loop_footer_branch
    %11 = sbr.rel target = $region3
  $region8: #{vit_forward_pallas.3} parent=0 // loop_exit
    _

// kernel: vit_forward_pallas.5
$region0: #{vit_forward_pallas.5}
  #allocation0 [shape = 'u32[]', space=smem, size = 0x4, offset = 0x4, fixed_abs, tag = 'smem constant byte address 0x4 - core index']
  #allocation1 [shape = 'u32[72,128]{1,0:T(1,128)}', space=vmem, size = 0x9000, scoped, tag = 'internal scratch']
  %s0 = inlined_call_operand.vmem [shape: f32[2,16,32], index: 0, kind: input, shape index: {}]
  %s1 = inlined_call_operand.vmem [shape: f32[2,1,32], index: 1, kind: input, shape index: {}]
  %s2 = inlined_call_operand.vmem [shape: f32[2,1,32], index: 2, kind: input, shape index: {}]
  %s3 = inlined_call_operand.vmem [shape: bf16[2,32,96], index: 3, kind: input, shape index: {}]
  %s4 = inlined_call_operand.vmem [shape: f32[2,1,96], index: 4, kind: input, shape index: {}]
  %s5 = inlined_call_operand.vmem [shape: bf16[2,32,32], index: 5, kind: input, shape index: {}]
  %s6 = inlined_call_operand.vmem [shape: f32[2,1,32], index: 6, kind: input, shape index: {}]
  %s7 = inlined_call_operand.vmem [shape: f32[2,1,32], index: 7, kind: input, shape index: {}]
  %s8 = inlined_call_operand.vmem [shape: f32[2,1,32], index: 8, kind: input, shape index: {}]
  %s9 = inlined_call_operand.vmem [shape: bf16[2,32,128], index: 9, kind: input, shape index: {}]
  %s10 = inlined_call_operand.vmem [shape: f32[2,1,128], index: 10, kind: input, shape index: {}]
  %s11 = inlined_call_operand.vmem [shape: bf16[2,128,32], index: 11, kind: input, shape index: {}]
  %s12 = inlined_call_operand.vmem [shape: f32[2,1,32], index: 12, kind: input, shape index: {}]
  %s13 = inlined_call_operand.vmem [shape: f32[1,32], index: 13, kind: input, shape index: {}]
  %s14 = inlined_call_operand.vmem [shape: f32[1,32], index: 14, kind: input, shape index: {}]
  %s15 = inlined_call_operand.hbm [shape: f32[2,1,32], index: 15, kind: output, shape index: {}]
  %s16 = sld [smem:[#allocation0]]
  $region93: #{vit_forward_pallas.5} parent=0
    _
  %s18 = ssub.s32 1, %s16
  %s19 = scalar_select 0, %s18, %s16
  $region1: #{vit_forward_pallas.5} parent=0
    #allocation2 [shape = 'u8[1024]{0}', space=vmem, size = 0x400, scoped, tag = 'output window, operand 0']
    #allocation3 [shape = 's32[2]{0}', space=sflag, size = 0x8, scoped, tag = 'scoped memory for vit_forward_pallas.5']
    %20 = vsyncpa [#allocation3], 0
    %s21 = scalar_lea.sflag [#allocation3], 1
    %22 = vsyncpa %s21, 0
    loop: start=0, step=1, limit=4
    $region2: #{vit_forward_pallas.5} parent=1 // loop_pre_header
      _
    $region3: #{vit_forward_pallas.5} parent=1 // loop_header
      %s24 = sphi 0, %s28
      %p25 = scmp.ge.s32.totalorder %s24, 4
      %s34 = sphi 0, %s36
      %s37 = sphi 0, %s34
      %s38 = sphi 0, %s37
      %s54 = sphi 0, %s38
      %s58 = sphi 0, %s58
      %s60 = sphi 0, %s58
      %s61 = sphi 0, %s60
      %s75 = sphi 0, %s61
      %s79 = sphi 0, %s79
      %s81 = sphi 0, %s79
      %s82 = sphi 0, %s81
      %s96 = sphi 0, %s82
      %s100 = sphi 0, %s100
      %s102 = sphi 0, %s100
      %s103 = sphi 0, %s102
      %s117 = sphi 0, %s103
      %s121 = sphi 0, %s121
      %s123 = sphi 0, %s121
      %s124 = sphi 0, %s123
      %s138 = sphi 0, %s124
      %s142 = sphi 0, %s142
      %s144 = sphi 0, %s142
      %s145 = sphi 0, %s144
      %s159 = sphi 0, %s145
      %s163 = sphi 0, %s163
      %s165 = sphi 0, %s163
      %s166 = sphi 0, %s165
      %s180 = sphi 0, %s166
      %s184 = sphi 0, %s184
      %s186 = sphi 0, %s184
      %s187 = sphi 0, %s186
      %s201 = sphi 0, %s187
      %s205 = sphi 0, %s205
      %s207 = sphi 0, %s205
      %s208 = sphi 0, %s207
      %s222 = sphi 0, %s208
      %s226 = sphi 0, %s226
      %s228 = sphi 0, %s226
      %s229 = sphi 0, %s228
      %s243 = sphi 0, %s229
      %s247 = sphi 0, %s247
      %s249 = sphi 0, %s247
      %s250 = sphi 0, %s249
      %s264 = sphi 0, %s250
      %s268 = sphi 0, %s268
      %s270 = sphi 0, %s268
      %s271 = sphi 0, %s270
      %s285 = sphi 0, %s271
      %s289 = sphi 0, %s289
      %s291 = sphi 0, %s289
      %s292 = sphi 0, %s291
      %s306 = sphi 0, %s292
      %s310 = sphi 0, %s310
      %s312 = sphi 0, %s310
      %s313 = sphi 0, %s312
      %s327 = sphi 0, %s313
      %s331 = sphi 0, %s331
      %s333 = sphi 0, %s331
      %s334 = sphi 0, %s333
      %s348 = sphi 0, %s334
      %s354 = sphi 0, %s356
      %s357 = sphi 0, %s354
      %s358 = sphi 0, %s357
      %s374 = sphi 0, %s358
    $region4: #{vit_forward_pallas.5} parent=1 // loop_header_branch
      %27 = sbr.rel (%p25) target = $region8
    $region5: #{vit_forward_pallas.5} parent=1 // loop_body
      %s29 = ssub.s32 %s24, 1
      %s30 = ssub.s32 %s24, 2
      %s31 = sadd.s32 %s24, 1
      %s32 = ssub.s32 %s24, %s31
      %p33 = scmp.eq.s32.totalorder %s32, 0
      %s35 = sadd.s32 %s34, 1
      %s36 = scalar_select %p33, %s34, %s35
      %p39 = pneg %p33
      %p40 = scmp.eq.s32.totalorder %s24, 1
      %p41 = por %p39, %p40
      %p42 = scmp.ne.s32.totalorder %s34, %s37
      %p43 = scmp.eq.s32.totalorder %s24, 0
      %p44 = por %p42, %p43
      %p45 = scmp.ne.s32.totalorder %s34, %s37
      %p46 = scmp.eq.s32.totalorder %s29, 1
      %p47 = por %p45, %p46
      %p48 = scmp.ne.s32.totalorder %s37, %s38
      %p49 = scmp.eq.s32.totalorder %s29, 0
      %p50 = por %p48, %p49
      %p51 = scmp.ne.s32.totalorder %s37, %s38
      %p52 = scmp.eq.s32.totalorder %s30, 1
      %p53 = por %p51, %p52
      %p55 = scmp.ne.s32.totalorder %s38, %s54
      %p56 = scmp.eq.s32.totalorder %s30, 0
      %p57 = por %p55, %p56
      %s59 = sadd.s32 %s58, 1
      %p62 = scmp.eq.s32.totalorder %s24, 1
      %p63 = scmp.ne.s32.totalorder %s58, %s60
      %p64 = scmp.eq.s32.totalorder %s24, 0
      %p65 = por %p63, %p64
      %p66 = scmp.ne.s32.totalorder %s58, %s60
      %p67 = scmp.eq.s32.totalorder %s29, 1
      %p68 = por %p66, %p67
      %p69 = scmp.ne.s32.totalorder %s60, %s61
      %p70 = scmp.eq.s32.totalorder %s29, 0
      %p71 = por %p69, %p70
      %p72 = scmp.ne.s32.totalorder %s60, %s61
      %p73 = scmp.eq.s32.totalorder %s30, 1
      %p74 = por %p72, %p73
      %p76 = scmp.ne.s32.totalorder %s61, %s75
      %p77 = scmp.eq.s32.totalorder %s30, 0
      %p78 = por %p76, %p77
      %s80 = sadd.s32 %s79, 1
      %p83 = scmp.eq.s32.totalorder %s24, 1
      %p84 = scmp.ne.s32.totalorder %s79, %s81
      %p85 = scmp.eq.s32.totalorder %s24, 0
      %p86 = por %p84, %p85
      %p87 = scmp.ne.s32.totalorder %s79, %s81
      %p88 = scmp.eq.s32.totalorder %s29, 1
      %p89 = por %p87, %p88
      %p90 = scmp.ne.s32.totalorder %s81, %s82
      %p91 = scmp.eq.s32.totalorder %s29, 0
      %p92 = por %p90, %p91
      %p93 = scmp.ne.s32.totalorder %s81, %s82
      %p94 = scmp.eq.s32.totalorder %s30, 1
      %p95 = por %p93, %p94
      %p97 = scmp.ne.s32.totalorder %s82, %s96
      %p98 = scmp.eq.s32.totalorder %s30, 0
      %p99 = por %p97, %p98
      %s101 = sadd.s32 %s100, 1
      %p104 = scmp.eq.s32.totalorder %s24, 1
      %p105 = scmp.ne.s32.totalorder %s100, %s102
      %p106 = scmp.eq.s32.totalorder %s24, 0
      %p107 = por %p105, %p106
      %p108 = scmp.ne.s32.totalorder %s100, %s102
      %p109 = scmp.eq.s32.totalorder %s29, 1
      %p110 = por %p108, %p109
      %p111 = scmp.ne.s32.totalorder %s102, %s103
      %p112 = scmp.eq.s32.totalorder %s29, 0
      %p113 = por %p111, %p112
      %p114 = scmp.ne.s32.totalorder %s102, %s103
      %p115 = scmp.eq.s32.totalorder %s30, 1
      %p116 = por %p114, %p115
      %p118 = scmp.ne.s32.totalorder %s103, %s117
      %p119 = scmp.eq.s32.totalorder %s30, 0
      %p120 = por %p118, %p119
      %s122 = sadd.s32 %s121, 1
      %p125 = scmp.eq.s32.totalorder %s24, 1
      %p126 = scmp.ne.s32.totalorder %s121, %s123
      %p127 = scmp.eq.s32.totalorder %s24, 0
      %p128 = por %p126, %p127
      %p129 = scmp.ne.s32.totalorder %s121, %s123
      %p130 = scmp.eq.s32.totalorder %s29, 1
      %p131 = por %p129, %p130
      %p132 = scmp.ne.s32.totalorder %s123, %s124
      %p133 = scmp.eq.s32.totalorder %s29, 0
      %p134 = por %p132, %p133
      %p135 = scmp.ne.s32.totalorder %s123, %s124
      %p136 = scmp.eq.s32.totalorder %s30, 1
      %p137 = por %p135, %p136
      %p139 = scmp.ne.s32.totalorder %s124, %s138
      %p140 = scmp.eq.s32.totalorder %s30, 0
      %p141 = por %p139, %p140
      %s143 = sadd.s32 %s142, 1
      %p146 = scmp.eq.s32.totalorder %s24, 1
      %p147 = scmp.ne.s32.totalorder %s142, %s144
      %p148 = scmp.eq.s32.totalorder %s24, 0
      %p149 = por %p147, %p148
      %p150 = scmp.ne.s32.totalorder %s142, %s144
      %p151 = scmp.eq.s32.totalorder %s29, 1
      %p152 = por %p150, %p151
      %p153 = scmp.ne.s32.totalorder %s144, %s145
      %p154 = scmp.eq.s32.totalorder %s29, 0
      %p155 = por %p153, %p154
      %p156 = scmp.ne.s32.totalorder %s144, %s145
      %p157 = scmp.eq.s32.totalorder %s30, 1
      %p158 = por %p156, %p157
      %p160 = scmp.ne.s32.totalorder %s145, %s159
      %p161 = scmp.eq.s32.totalorder %s30, 0
      %p162 = por %p160, %p161
      %s164 = sadd.s32 %s163, 1
      %p167 = scmp.eq.s32.totalorder %s24, 1
      %p168 = scmp.ne.s32.totalorder %s163, %s165
      %p169 = scmp.eq.s32.totalorder %s24, 0
      %p170 = por %p168, %p169
      %p171 = scmp.ne.s32.totalorder %s163, %s165
      %p172 = scmp.eq.s32.totalorder %s29, 1
      %p173 = por %p171, %p172
      %p174 = scmp.ne.s32.totalorder %s165, %s166
      %p175 = scmp.eq.s32.totalorder %s29, 0
      %p176 = por %p174, %p175
      %p177 = scmp.ne.s32.totalorder %s165, %s166
      %p178 = scmp.eq.s32.totalorder %s30, 1
      %p179 = por %p177, %p178
      %p181 = scmp.ne.s32.totalorder %s166, %s180
      %p182 = scmp.eq.s32.totalorder %s30, 0
      %p183 = por %p181, %p182
      %s185 = sadd.s32 %s184, 1
      %p188 = scmp.eq.s32.totalorder %s24, 1
      %p189 = scmp.ne.s32.totalorder %s184, %s186
      %p190 = scmp.eq.s32.totalorder %s24, 0
      %p191 = por %p189, %p190
      %p192 = scmp.ne.s32.totalorder %s184, %s186
      %p193 = scmp.eq.s32.totalorder %s29, 1
      %p194 = por %p192, %p193
      %p195 = scmp.ne.s32.totalorder %s186, %s187
      %p196 = scmp.eq.s32.totalorder %s29, 0
      %p197 = por %p195, %p196
      %p198 = scmp.ne.s32.totalorder %s186, %s187
      %p199 = scmp.eq.s32.totalorder %s30, 1
      %p200 = por %p198, %p199
      %p202 = scmp.ne.s32.totalorder %s187, %s201
      %p203 = scmp.eq.s32.totalorder %s30, 0
      %p204 = por %p202, %p203
      %s206 = sadd.s32 %s205, 1
      %p209 = scmp.eq.s32.totalorder %s24, 1
      %p210 = scmp.ne.s32.totalorder %s205, %s207
      %p211 = scmp.eq.s32.totalorder %s24, 0
      %p212 = por %p210, %p211
      %p213 = scmp.ne.s32.totalorder %s205, %s207
      %p214 = scmp.eq.s32.totalorder %s29, 1
      %p215 = por %p213, %p214
      %p216 = scmp.ne.s32.totalorder %s207, %s208
      %p217 = scmp.eq.s32.totalorder %s29, 0
      %p218 = por %p216, %p217
      %p219 = scmp.ne.s32.totalorder %s207, %s208
      %p220 = scmp.eq.s32.totalorder %s30, 1
      %p221 = por %p219, %p220
      %p223 = scmp.ne.s32.totalorder %s208, %s222
      %p224 = scmp.eq.s32.totalorder %s30, 0
      %p225 = por %p223, %p224
      %s227 = sadd.s32 %s226, 1
      %p230 = scmp.eq.s32.totalorder %s24, 1
      %p231 = scmp.ne.s32.totalorder %s226, %s228
      %p232 = scmp.eq.s32.totalorder %s24, 0
      %p233 = por %p231, %p232
      %p234 = scmp.ne.s32.totalorder %s226, %s228
      %p235 = scmp.eq.s32.totalorder %s29, 1
      %p236 = por %p234, %p235
      %p237 = scmp.ne.s32.totalorder %s228, %s229
      %p238 = scmp.eq.s32.totalorder %s29, 0
      %p239 = por %p237, %p238
      %p240 = scmp.ne.s32.totalorder %s228, %s229
      %p241 = scmp.eq.s32.totalorder %s30, 1
      %p242 = por %p240, %p241
      %p244 = scmp.ne.s32.totalorder %s229, %s243
      %p245 = scmp.eq.s32.totalorder %s30, 0
      %p246 = por %p244, %p245
      %s248 = sadd.s32 %s247, 1
      %p251 = scmp.eq.s32.totalorder %s24, 1
      %p252 = scmp.ne.s32.totalorder %s247, %s249
      %p253 = scmp.eq.s32.totalorder %s24, 0
      %p254 = por %p252, %p253
      %p255 = scmp.ne.s32.totalorder %s247, %s249
      %p256 = scmp.eq.s32.totalorder %s29, 1
      %p257 = por %p255, %p256
      %p258 = scmp.ne.s32.totalorder %s249, %s250
      %p259 = scmp.eq.s32.totalorder %s29, 0
      %p260 = por %p258, %p259
      %p261 = scmp.ne.s32.totalorder %s249, %s250
      %p262 = scmp.eq.s32.totalorder %s30, 1
      %p263 = por %p261, %p262
      %p265 = scmp.ne.s32.totalorder %s250, %s264
      %p266 = scmp.eq.s32.totalorder %s30, 0
      %p267 = por %p265, %p266
      %s269 = sadd.s32 %s268, 1
      %p272 = scmp.eq.s32.totalorder %s24, 1
      %p273 = scmp.ne.s32.totalorder %s268, %s270
      %p274 = scmp.eq.s32.totalorder %s24, 0
      %p275 = por %p273, %p274
      %p276 = scmp.ne.s32.totalorder %s268, %s270
      %p277 = scmp.eq.s32.totalorder %s29, 1
      %p278 = por %p276, %p277
      %p279 = scmp.ne.s32.totalorder %s270, %s271
      %p280 = scmp.eq.s32.totalorder %s29, 0
      %p281 = por %p279, %p280
      %p282 = scmp.ne.s32.totalorder %s270, %s271
      %p283 = scmp.eq.s32.totalorder %s30, 1
      %p284 = por %p282, %p283
      %p286 = scmp.ne.s32.totalorder %s271, %s285
      %p287 = scmp.eq.s32.totalorder %s30, 0
      %p288 = por %p286, %p287
      %s290 = sadd.s32 %s289, 1
      %p293 = scmp.eq.s32.totalorder %s24, 1
      %p294 = scmp.ne.s32.totalorder %s289, %s291
      %p295 = scmp.eq.s32.totalorder %s24, 0
      %p296 = por %p294, %p295
      %p297 = scmp.ne.s32.totalorder %s289, %s291
      %p298 = scmp.eq.s32.totalorder %s29, 1
      %p299 = por %p297, %p298
      %p300 = scmp.ne.s32.totalorder %s291, %s292
      %p301 = scmp.eq.s32.totalorder %s29, 0
      %p302 = por %p300, %p301
      %p303 = scmp.ne.s32.totalorder %s291, %s292
      %p304 = scmp.eq.s32.totalorder %s30, 1
      %p305 = por %p303, %p304
      %p307 = scmp.ne.s32.totalorder %s292, %s306
      %p308 = scmp.eq.s32.totalorder %s30, 0
      %p309 = por %p307, %p308
      %s311 = sadd.s32 %s310, 1
      %p314 = scmp.eq.s32.totalorder %s24, 1
      %p315 = scmp.ne.s32.totalorder %s310, %s312
      %p316 = scmp.eq.s32.totalorder %s24, 0
      %p317 = por %p315, %p316
      %p318 = scmp.ne.s32.totalorder %s310, %s312
      %p319 = scmp.eq.s32.totalorder %s29, 1
      %p320 = por %p318, %p319
      %p321 = scmp.ne.s32.totalorder %s312, %s313
      %p322 = scmp.eq.s32.totalorder %s29, 0
      %p323 = por %p321, %p322
      %p324 = scmp.ne.s32.totalorder %s312, %s313
      %p325 = scmp.eq.s32.totalorder %s30, 1
      %p326 = por %p324, %p325
      %p328 = scmp.ne.s32.totalorder %s313, %s327
      %p329 = scmp.eq.s32.totalorder %s30, 0
      %p330 = por %p328, %p329
      %s332 = sadd.s32 %s331, 1
      %p335 = scmp.eq.s32.totalorder %s24, 1
      %p336 = scmp.ne.s32.totalorder %s331, %s333
      %p337 = scmp.eq.s32.totalorder %s24, 0
      %p338 = por %p336, %p337
      %p339 = scmp.ne.s32.totalorder %s331, %s333
      %p340 = scmp.eq.s32.totalorder %s29, 1
      %p341 = por %p339, %p340
      %p342 = scmp.ne.s32.totalorder %s333, %s334
      %p343 = scmp.eq.s32.totalorder %s29, 0
      %p344 = por %p342, %p343
      %p345 = scmp.ne.s32.totalorder %s333, %s334
      %p346 = scmp.eq.s32.totalorder %s30, 1
      %p347 = por %p345, %p346
      %p349 = scmp.ne.s32.totalorder %s334, %s348
      %p350 = scmp.eq.s32.totalorder %s30, 0
      %p351 = por %p349, %p350
      %s352 = ssub.s32 %s24, %s31
      %p353 = scmp.eq.s32.totalorder %s352, 0
      %s355 = sadd.s32 %s354, 1
      %s356 = scalar_select %p353, %s354, %s355
      %p359 = pneg %p353
      %p360 = scmp.eq.s32.totalorder %s24, 1
      %p361 = por %p359, %p360
      %p362 = scmp.ne.s32.totalorder %s354, %s357
      %p363 = scmp.eq.s32.totalorder %s24, 0
      %p364 = por %p362, %p363
      %p365 = scmp.ne.s32.totalorder %s354, %s357
      %p366 = scmp.eq.s32.totalorder %s29, 1
      %p367 = por %p365, %p366
      %p368 = scmp.ne.s32.totalorder %s357, %s358
      %p369 = scmp.eq.s32.totalorder %s29, 0
      %p370 = por %p368, %p369
      %p371 = scmp.ne.s32.totalorder %s357, %s358
      %p372 = scmp.eq.s32.totalorder %s30, 1
      %p373 = por %p371, %p372
      %p375 = scmp.ne.s32.totalorder %s358, %s374
      %p376 = scmp.eq.s32.totalorder %s30, 0
      %p377 = por %p375, %p376
      %p378 = scmp.le.s32.totalorder 1, %s24
      %p379 = scmp.lt.s32.totalorder %s24, 3
      %p380 = pnand %p378, %p379
      %p381 = pneg %p380
      // Predicated region
      $region9: #{vit_forward_pallas.5} parent=5 // pred_check
        _
      $region10: #{vit_forward_pallas.5} parent=5 // pred_check_branch
        %383 = sbr.rel (%p380) target = $region12
      $region11: #{vit_forward_pallas.5} parent=5 // pred_region
        %s384 = ssub.s32 %s24, 1
        // Predicated region
        $region13: #{vit_forward_pallas.5} parent=11 // pred_check
          %p385 = pneg %p71
        $region14: #{vit_forward_pallas.5} parent=11 // pred_check_branch
          %387 = sbr.rel (%p385) target = $region16
        $region15: #{vit_forward_pallas.5} parent=11 // pred_region
          %s388 = scalar_lea.vmem %s1, 1
        $region16: #{vit_forward_pallas.5} parent=11 // pred_fallthru
          _
        // Predicated region
        $region17: #{vit_forward_pallas.5} parent=11 // pred_check
          %p389 = pneg %p92
        $region18: #{vit_forward_pallas.5} parent=11 // pred_check_branch
          %391 = sbr.rel (%p389) target = $region20
        $region19: #{vit_forward_pallas.5} parent=11 // pred_region
          %s392 = scalar_lea.vmem %s2, 1
        $region20: #{vit_forward_pallas.5} parent=11 // pred_fallthru
          _
        // Predicated region
        $region21: #{vit_forward_pallas.5} parent=11 // pred_check
          %p393 = pneg %p113
        $region22: #{vit_forward_pallas.5} parent=11 // pred_check_branch
          %395 = sbr.rel (%p393) target = $region24
        $region23: #{vit_forward_pallas.5} parent=11 // pred_region
          %s396 = scalar_lea.vmem %s3, 16
        $region24: #{vit_forward_pallas.5} parent=11 // pred_fallthru
          _
        // Predicated region
        $region25: #{vit_forward_pallas.5} parent=11 // pred_check
          %p397 = pneg %p134
        $region26: #{vit_forward_pallas.5} parent=11 // pred_check_branch
          %399 = sbr.rel (%p397) target = $region28
        $region27: #{vit_forward_pallas.5} parent=11 // pred_region
          %s400 = scalar_lea.vmem %s4, 1
        $region28: #{vit_forward_pallas.5} parent=11 // pred_fallthru
          _
        // Predicated region
        $region29: #{vit_forward_pallas.5} parent=11 // pred_check
          %p401 = pneg %p155
        $region30: #{vit_forward_pallas.5} parent=11 // pred_check_branch
          %403 = sbr.rel (%p401) target = $region32
        $region31: #{vit_forward_pallas.5} parent=11 // pred_region
          %s404 = scalar_lea.vmem %s5, 16
        $region32: #{vit_forward_pallas.5} parent=11 // pred_fallthru
          _
        // Predicated region
        $region33: #{vit_forward_pallas.5} parent=11 // pred_check
          %p405 = pneg %p176
        $region34: #{vit_forward_pallas.5} parent=11 // pred_check_branch
          %407 = sbr.rel (%p405) target = $region36
        $region35: #{vit_forward_pallas.5} parent=11 // pred_region
          %s408 = scalar_lea.vmem %s6, 1
        $region36: #{vit_forward_pallas.5} parent=11 // pred_fallthru
          _
        // Predicated region
        $region37: #{vit_forward_pallas.5} parent=11 // pred_check
          %p409 = pneg %p197
        $region38: #{vit_forward_pallas.5} parent=11 // pred_check_branch
          %411 = sbr.rel (%p409) target = $region40
        $region39: #{vit_forward_pallas.5} parent=11 // pred_region
          %s412 = scalar_lea.vmem %s7, 1
        $region40: #{vit_forward_pallas.5} parent=11 // pred_fallthru
          _
        // Predicated region
        $region41: #{vit_forward_pallas.5} parent=11 // pred_check
          %p413 = pneg %p218
        $region42: #{vit_forward_pallas.5} parent=11 // pred_check_branch
          %415 = sbr.rel (%p413) target = $region44
        $region43: #{vit_forward_pallas.5} parent=11 // pred_region
          %s416 = scalar_lea.vmem %s8, 1
        $region44: #{vit_forward_pallas.5} parent=11 // pred_fallthru
          _
        // Predicated region
        $region45: #{vit_forward_pallas.5} parent=11 // pred_check
          %p417 = pneg %p239
        $region46: #{vit_forward_pallas.5} parent=11 // pred_check_branch
          %419 = sbr.rel (%p417) target = $region48
        $region47: #{vit_forward_pallas.5} parent=11 // pred_region
          %s420 = scalar_lea.vmem %s9, 16
        $region48: #{vit_forward_pallas.5} parent=11 // pred_fallthru
          _
        // Predicated region
        $region49: #{vit_forward_pallas.5} parent=11 // pred_check
          %p421 = pneg %p260
        $region50: #{vit_forward_pallas.5} parent=11 // pred_check_branch
          %423 = sbr.rel (%p421) target = $region52
        $region51: #{vit_forward_pallas.5} parent=11 // pred_region
          %s424 = scalar_lea.vmem %s10, 1
        $region52: #{vit_forward_pallas.5} parent=11 // pred_fallthru
          _
        // Predicated region
        $region53: #{vit_forward_pallas.5} parent=11 // pred_check
          %p425 = pneg %p281
        $region54: #{vit_forward_pallas.5} parent=11 // pred_check_branch
          %427 = sbr.rel (%p425) target = $region56
        $region55: #{vit_forward_pallas.5} parent=11 // pred_region
          %s428 = scalar_lea.vmem %s11, 64
        $region56: #{vit_forward_pallas.5} parent=11 // pred_fallthru
          _
        // Predicated region
        $region57: #{vit_forward_pallas.5} parent=11 // pred_check
          %p429 = pneg %p302
        $region58: #{vit_forward_pallas.5} parent=11 // pred_check_branch
          %431 = sbr.rel (%p429) target = $region60
        $region59: #{vit_forward_pallas.5} parent=11 // pred_region
          %s432 = scalar_lea.vmem %s12, 1
        $region60: #{vit_forward_pallas.5} parent=11 // pred_fallthru
          _
        // Predicated region
        $region61: #{vit_forward_pallas.5} parent=11 // pred_check
          %p433 = pneg %p323
        $region62: #{vit_forward_pallas.5} parent=11 // pred_check_branch
          %435 = sbr.rel (%p433) target = $region64
        $region63: #{vit_forward_pallas.5} parent=11 // pred_region
          _
        $region64: #{vit_forward_pallas.5} parent=11 // pred_fallthru
          _
        // Predicated region
        $region65: #{vit_forward_pallas.5} parent=11 // pred_check
          %p436 = pneg %p344
        $region66: #{vit_forward_pallas.5} parent=11 // pred_check_branch
          %438 = sbr.rel (%p436) target = $region68
        $region67: #{vit_forward_pallas.5} parent=11 // pred_region
          _
        $region68: #{vit_forward_pallas.5} parent=11 // pred_fallthru
          _
      $region12: #{vit_forward_pallas.5} parent=5 // pred_fallthru
        _
      %p439 = scmp.lt.s32.totalorder %s24, 2
      // Predicated region
      $region69: #{vit_forward_pallas.5} parent=5 // pred_check
        %p440 = pneg %p439
      $region70: #{vit_forward_pallas.5} parent=5 // pred_check_branch
        %442 = sbr.rel (%p440) target = $region72
      $region71: #{vit_forward_pallas.5} parent=5 // pred_region
        // Predicated region
        $region73: #{vit_forward_pallas.5} parent=71 // pred_check
          %p443 = pneg %p44
        $region74: #{vit_forward_pallas.5} parent=71 // pred_check_branch
          %445 = sbr.rel (%p443) target = $region76
        $region75: #{vit_forward_pallas.5} parent=71 // pred_region
          %p446 = scmp.lt.s32.totalorder %s24, 1
          %s447 = scalar_select %p446, %s24, 1
          %s448 = smul.addr %s447, 2
          %s449 = smul.addr %s448, 8
          %s450 = scalar_lea.vmem %s0, %s449
        $region76: #{vit_forward_pallas.5} parent=71 // pred_fallthru
          _
      $region72: #{vit_forward_pallas.5} parent=5 // pred_fallthru
        _
      %p451 = scmp.le.s32.totalorder 1, %s24
      %p452 = scmp.lt.s32.totalorder %s24, 3
      %p453 = pnand %p451, %p452
      %p454 = pneg %p453
      // Predicated region
      $region77: #{vit_forward_pallas.5} parent=5 // pred_check
        _
      $region78: #{vit_forward_pallas.5} parent=5 // pred_check_branch
        %456 = sbr.rel (%p453) target = $region80
      $region79: #{vit_forward_pallas.5} parent=5 // pred_region
        %s457 = ssub.s32 %s24, 1
        %p458 = scmp.lt.s32.totalorder %s29, 1
        %s459 = scalar_select %p458, %s29, 1
        %s460 = smul.addr %s459, 2
        %s461 = smul.addr %s460, 8
        %s462 = scalar_lea.vmem %s0, %s461
        %p463 = pneg %p50
        %p464 = pneg %p47
        %s465 = scalar_lea.vmem %s1, 1
        %p466 = pneg %p71
        %p467 = pneg %p68
        %s468 = scalar_lea.vmem %s2, 1
        %p469 = pneg %p92
        %p470 = pneg %p89
        %s471 = scalar_lea.vmem %s3, 16
        %p472 = pneg %p113
        %p473 = pneg %p110
        %s474 = scalar_lea.vmem %s4, 1
        %p475 = pneg %p134
        %p476 = pneg %p131
        %s477 = scalar_lea.vmem %s5, 16
        %p478 = pneg %p155
        %p479 = pneg %p152
        %s480 = scalar_lea.vmem %s6, 1
        %p481 = pneg %p176
        %p482 = pneg %p173
        %s483 = scalar_lea.vmem %s7, 1
        %p484 = pneg %p197
        %p485 = pneg %p194
        %s486 = scalar_lea.vmem %s8, 1
        %p487 = pneg %p218
        %p488 = pneg %p215
        %s489 = scalar_lea.vmem %s9, 16
        %p490 = pneg %p239
        %p491 = pneg %p236
        %s492 = scalar_lea.vmem %s10, 1
        %p493 = pneg %p260
        %p494 = pneg %p257
        %s495 = scalar_lea.vmem %s11, 64
        %p496 = pneg %p281
        %p497 = pneg %p278
        %s498 = scalar_lea.vmem %s12, 1
        %p499 = pneg %p302
        %p500 = pneg %p299
        %p501 = pneg %p323
        %p502 = pneg %p320
        %p503 = pneg %p344
        %p504 = pneg %p341
        %p505 = pneg %p370
        %p506 = pneg %p367
        %s507 = sand.u32 %s357, 1
        %s508 = scalar_lea.sflag [#allocation3], %s507
        %s509 = sand.u32 %s357, 1
        %s510 = scalar_lea.vmem [#allocation2], %s509
        %p511 = scmp.lt.s32.totalorder %s29, 1
        %s512 = scalar_select %p511, %s29, 1
        %s513 = smul.addr %s512, 2
        %s514 = smul.addr %s513, 8
        %s515 = scalar_lea.vmem %s0, %s514
        %s516 = scalar_lea.vmem %s1, 1
        %s517 = scalar_lea.vmem %s2, 1
        %s518 = scalar_lea.vmem %s3, 16
        %s519 = scalar_lea.vmem %s4, 1
        %s520 = scalar_lea.vmem %s5, 16
        %s521 = scalar_lea.vmem %s6, 1
        %s522 = scalar_lea.vmem %s7, 1
        %s523 = scalar_lea.vmem %s8, 1
        %s524 = scalar_lea.vmem %s9, 16
        %s525 = scalar_lea.vmem %s10, 1
        %s526 = scalar_lea.vmem %s11, 64
        %s527 = scalar_lea.vmem %s12, 1
        %v529 = vld [vmem:[%s515] sm:$0xff]
        %v530 = vld [vmem:[%s515 + $0x8] sm:$0xff]
        %v531 = vld [vmem:[%s516] sm:$0x1]
        %v532 = vld [vmem:[%s517] sm:$0x1]
        %vm533 = vcmask 261120
        %v534 = vsel %vm533, %v529, 0.0
        %535 = vadd.xlane.f32.xlu0 %v534
        %v536 = vpop.xlane.xlu0 %535
        %v537 = vsel %vm533, %v530, 0.0
        %538 = vadd.xlane.f32.xlu0 %v537
        %v539 = vpop.xlane.xlu0 %538
        %v540 = vrcp.pop 32.0
        %v541 = vmul.f32 32.0, %v540
        %v542 = vsub.f32 1.0, %v541
        %v543 = vmul.f32 %v540, %v542
        %v544 = vadd.f32 %v540, %v543
        %vm545 = vweird.f32 %v540
        %v546 = vsel %vm545, %v540, %v544
        %v547 = vmul.f32 %v536, %v546
        %v548 = vmul.f32 %v539, %v546
        %v549 = vsub.f32 %v529, %v547
        %v550 = vsub.f32 %v530, %v548
        %v551 = vmul.f32 %v549, %v549
        %v552 = vmul.f32 %v550, %v550
        %v553 = vsel %vm533, %v551, 0.0
        %554 = vadd.xlane.f32.xlu0 %v553
        %v555 = vpop.xlane.xlu0 %554
        %v556 = vsel %vm533, %v552, 0.0
        %557 = vadd.xlane.f32.xlu0 %v556
        %v558 = vpop.xlane.xlu0 %557
        %v559 = vmul.f32 %v555, %v546
        %v560 = vmul.f32 %v558, %v546
        %v561 = vadd.f32 %v559, 1e-05
        %v562 = vadd.f32 %v560, 1e-05
        %v563 = vrsqrt.pop %v561
        %v564 = vmul.f32 %v563, %v561
        %v565 = vmul.f32 %v564, %v563
        %v566 = vmul.f32 0.5, %v565
        %v567 = vsub.f32 1.5, %v566
        %v568 = vmul.f32 %v563, %v567
        %vm569 = vweird.f32 %v561
        %vm570 = vweird.f32 %v563
        %vm571 = vmor %vm569, %vm570
        %v572 = vsel %vm571, %v563, %v568
        %v573 = vrsqrt.pop %v562
        %v574 = vmul.f32 %v573, %v562
        %v575 = vmul.f32 %v574, %v573
        %v576 = vmul.f32 0.5, %v575
        %v577 = vsub.f32 1.5, %v576
        %v578 = vmul.f32 %v573, %v577
        %vm579 = vweird.f32 %v562
        %vm580 = vweird.f32 %v573
        %vm581 = vmor %vm579, %vm580
        %v582 = vsel %vm581, %v573, %v578
        %v583 = vmul.f32 %v549, %v572
        %v584 = vmul.f32 %v550, %v582
        %v586 = vperm.slane %v531, 0
        %v588 = vmul.f32 %v583, %v586
        %v589 = vmul.f32 %v584, %v586
        %v591 = vperm.slane %v532, 0
        %v593 = vadd.f32 %v588, %v591
        %v594 = vadd.f32 %v589, %v591
        %v595 = vpack.c.bf16 %v593, %v593
        %v596 = vpack.c.bf16 %v594, %v594
        %v597 = vld [vmem:[%s518] sm:$0xf]
        %v598 = vld [vmem:[%s518 + $0x4] sm:$0xf]
        %v599 = vld [vmem:[%s518 + $0x8] sm:$0xf]
        %v600 = vld [vmem:[%s518 + $0xc] sm:$0xf]
        %v601 = vld [vmem:[%s519] sm:$0x1]
        %v606 = vunpack.c.l.b16 %v597
        %v607 = vunpack.c.l.b16 %v598
        %v608 = vunpack.c.l.b16 %v599
        %v609 = vunpack.c.l.b16 %v600
        %v610 = vpack.c.b16 %v607, %v606
        %v611 = vpack.c.b16 %v609, %v608
        %v615 = vsel %vm533, %v595, 0
        %617 = vmatpush.bf16.msra.mxu0 0
        %618 = vmatpush.bf16.msra.mxu0 0
        %619 = vmatpush.bf16.msra.mxu0 0
        %620 = vmatpush.bf16.msra.mxu0 0
        %621 = vmatpush.bf16.msra.mxu0 0
        %622 = vmatpush.bf16.msra.mxu0 0
        %623 = vmatpush.bf16.msra.mxu0 %v611
        %624 = vmatpush.bf16.msra.mxu0 %v610
        %625 = vmatmul.bf16.gmra.mxu0 %v615
        %v626 = vpop.f32.mrf.mxu0
        %v627 = vadd.f32 %v601, %v626
        %v628 = vpop.f32.mrf.mxu0
        %629 = vdwg.mxu0
        %v630 = vmul.f32 %v627, 0.35355338
        %v632 = vperm.slane %v601, 0
        %v635 = vunpack.c.l.b16 %v595
        %v636 = vunpack.c.l.b16 %v596
        %v637 = vpack.c.b16 %v636, %v635
        %638 = vrot.lane.b32.xlu0 %v610, 96
        %v639 = vpop.permute.xlu0 %638
        %640 = vrot.lane.b32.xlu0 %v611, 96
        %v641 = vpop.permute.xlu0 %640
        %644 = vrot.lane.b32.xlu0 %v632, 96
        %v645 = vpop.permute.xlu0 %644
        %v648 = vsel %vm533, %v637, 0
        %650 = vmatpush.bf16.msra.mxu0 0
        %651 = vmatpush.bf16.msra.mxu0 0
        %652 = vmatpush.bf16.msra.mxu0 0
        %653 = vmatpush.bf16.msra.mxu0 0
        %654 = vmatpush.bf16.msra.mxu0 0
        %655 = vmatpush.bf16.msra.mxu0 0
        %656 = vmatpush.bf16.msra.mxu0 %v641
        %657 = vmatpush.bf16.msra.mxu0 %v639
        %658 = vmatmul.bf16.gmra.mxu0 %v648
        %v659 = vpop.f32.mrf.mxu0
        %v660 = vadd.f32 %v645, %v659
        %v661 = vpop.f32.mrf.mxu0
        %v662 = vadd.f32 %v645, %v661
        %663 = vdwg.mxu0
        %664 = vrot.lane.b32.xlu0 %v610, 64
        %v665 = vpop.permute.xlu0 %664
        %666 = vrot.lane.b32.xlu0 %v611, 64
        %v667 = vpop.permute.xlu0 %666
        %670 = vrot.lane.b32.xlu0 %v632, 64
        %v671 = vpop.permute.xlu0 %670
        %673 = vmatpush.bf16.msra.mxu0 0
        %674 = vmatpush.bf16.msra.mxu0 0
        %675 = vmatpush.bf16.msra.mxu0 0
        %676 = vmatpush.bf16.msra.mxu0 0
        %677 = vmatpush.bf16.msra.mxu0 0
        %678 = vmatpush.bf16.msra.mxu0 0
        %679 = vmatpush.bf16.msra.mxu0 %v667
        %680 = vmatpush.bf16.msra.mxu0 %v665
        %681 = vmatmul.bf16.gmra.mxu0 %v648
        %v682 = vpop.f32.mrf.mxu0
        %v683 = vadd.f32 %v671, %v682
        %v684 = vpop.f32.mrf.mxu0
        %v685 = vadd.f32 %v671, %v684
        %686 = vdwg.mxu0
        %v687 = vlaneseq
        %v688 = vand.u32 %v687, 127
        %vm689 = vcmp.lt.s32.totalorder %v688, 5
        %v690 = vpack.c.bf16 %v630, %v630
        %v691 = vpack.c.bf16 %v662, %v660
        %vm692 = vcmask 64512
        %v694 = vsel %vm692, %v690, 0
        %v697 = vsel %vm692, %v691, 0
        %699 = vmatpush.bf16.xpose.msra.mxu0 0
        %700 = vmatpush.bf16.xpose.msra.mxu0 0
        %701 = vmatpush.bf16.xpose.msra.mxu0 0
        %702 = vmatpush.bf16.xpose.msra.mxu0 0
        %703 = vmatpush.bf16.xpose.msra.mxu0 0
        %704 = vmatpush.bf16.xpose.msra.mxu0 0
        %705 = vmatpush.bf16.xpose.msra.mxu0 0
        %706 = vmatpush.bf16.xpose.msra.mxu0 %v697
        %707 = vmatmul.bf16.gmra.mxu0 %v694
        %v708 = vpop.f32.mrf.mxu0
        %v709 = vadd.f32 0.0, %v708
        %v710 = vpop.f32.mrf.mxu0
        %711 = vdwg.mxu0
        %v712 = vsel %vm689, %v709, -1e+30
        %vm713 = vcmask 122880
        %v714 = vsel %vm713, %v712, -inf
        %715 = vmax.xlane.f32.xlu0 %v714
        %v716 = vpop.xlane.xlu0 %715
        %v717 = vsub.f32 %v712, %v716
        %v718 = vmul.f32 %v717, 1.442695
        %v719 = vpow.pop %v718
        %v720 = vsel %vm713, %v719, 0.0
        %721 = vadd.xlane.f32.xlu0 %v720
        %v722 = vpop.xlane.xlu0 %721
        %v723 = vrcp.pop %v722
        %v724 = vmul.f32 %v719, %v723
        %v725 = vpack.c.bf16 %v724, %v724
        %v726 = vpack.c.bf16 %v685, %v683
        %vm727 = vcmask 130048
        %v729 = vsel %vm727, %v725, 0
        %731 = vmatpush.bf16.msra.mxu0 0
        %732 = vmatpush.bf16.msra.mxu0 0
        %733 = vmatpush.bf16.msra.mxu0 0
        %734 = vmatpush.bf16.msra.mxu0 0
        %735 = vmatpush.bf16.msra.mxu0 0
        %736 = vmatpush.bf16.msra.mxu0 0
        %737 = vmatpush.bf16.msra.mxu0 0
        %738 = vmatpush.bf16.msra.mxu0 %v726
        %739 = vmatmul.bf16.gmra.mxu0 %v729
        %v740 = vpop.f32.mrf.mxu0
        %v741 = vadd.f32 0.0, %v740
        %v742 = vpop.f32.mrf.mxu0
        %743 = vdwg.mxu0
        %v744 = vpack.c.bf16 %v741, %v741
        %v745 = vld [vmem:[%s520] sm:$0xf]
        %747 = vrot.lane.b32.xlu0 %v690, 120
        %v748 = vpop.permute.xlu0 %747
        %750 = vrot.lane.b32.xlu0 %v691, 120
        %v751 = vpop.permute.xlu0 %750
        %v753 = vsel %vm692, %v748, 0
        %v756 = vsel %vm692, %v751, 0
        %758 = vmatpush.bf16.xpose.msra.mxu0 0
        %759 = vmatpush.bf16.xpose.msra.mxu0 0
        %760 = vmatpush.bf16.xpose.msra.mxu0 0
        %761 = vmatpush.bf16.xpose.msra.mxu0 0
        %762 = vmatpush.bf16.xpose.msra.mxu0 0
        %763 = vmatpush.bf16.xpose.msra.mxu0 0
        %764 = vmatpush.bf16.xpose.msra.mxu0 0
        %765 = vmatpush.bf16.xpose.msra.mxu0 %v756
        %766 = vmatmul.bf16.gmra.mxu0 %v753
        %v767 = vpop.f32.mrf.mxu0
        %v768 = vadd.f32 0.0, %v767
        %v769 = vpop.f32.mrf.mxu0
        %770 = vdwg.mxu0
        %v771 = vsel %vm689, %v768, -1e+30
        %v772 = vsel %vm713, %v771, -inf
        %773 = vmax.xlane.f32.xlu0 %v772
        %v774 = vpop.xlane.xlu0 %773
        %v775 = vsub.f32 %v771, %v774
        %v776 = vmul.f32 %v775, 1.442695
        %v777 = vpow.pop %v776
        %v778 = vsel %vm713, %v777, 0.0
        %779 = vadd.xlane.f32.xlu0 %v778
        %v780 = vpop.xlane.xlu0 %779
        %v781 = vrcp.pop %v780
        %v782 = vmul.f32 %v777, %v781
        %v783 = vpack.c.bf16 %v782, %v782
        %785 = vrot.lane.b32.xlu0 %v726, 120
        %v786 = vpop.permute.xlu0 %785
        %v789 = vsel %vm727, %v783, 0
        %791 = vmatpush.bf16.msra.mxu0 0
        %792 = vmatpush.bf16.msra.mxu0 0
        %793 = vmatpush.bf16.msra.mxu0 0
        %794 = vmatpush.bf16.msra.mxu0 0
        %795 = vmatpush.bf16.msra.mxu0 0
        %796 = vmatpush.bf16.msra.mxu0 0
        %797 = vmatpush.bf16.msra.mxu0 0
        %798 = vmatpush.bf16.msra.mxu0 %v786
        %799 = vmatmul.bf16.gmra.mxu0 %v789
        %v800 = vpop.f32.mrf.mxu0
        %v801 = vadd.f32 0.0, %v800
        %v802 = vpop.f32.mrf.mxu0
        %803 = vdwg.mxu0
        %v804 = vpack.c.bf16 %v801, %v801
        %v805 = vld [vmem:[%s520 + $0x4] sm:$0xf]
        %v807 = vsel %vm692, %v804, 0
        %vm809 = vcmask 1043456
        %v811 = vsel %vm809, %v805, 0
        %813 = vmatpush.bf16.msra.mxu0 0
        %814 = vmatpush.bf16.msra.mxu0 0
        %815 = vmatpush.bf16.msra.mxu0 0
        %816 = vmatpush.bf16.msra.mxu0 0
        %817 = vmatpush.bf16.msra.mxu0 0
        %818 = vmatpush.bf16.msra.mxu0 0
        %819 = vmatpush.bf16.msra.mxu0 0
        %820 = vmatpush.bf16.msra.mxu0 %v811
        %821 = vmatmul.bf16.gmra.mxu0 %v807
        %v822 = vpop.f32.mrf.mxu0
        %v823 = vadd.f32 0.0, %v822
        %v824 = vpop.f32.mrf.mxu0
        %825 = vdwg.mxu0
        %v827 = vsel %vm692, %v744, 0
        %v830 = vsel %vm809, %v745, 0
        %832 = vmatpush.bf16.msra.mxu0 0
        %833 = vmatpush.bf16.msra.mxu0 0
        %834 = vmatpush.bf16.msra.mxu0 0
        %835 = vmatpush.bf16.msra.mxu0 0
        %836 = vmatpush.bf16.msra.mxu0 0
        %837 = vmatpush.bf16.msra.mxu0 0
        %838 = vmatpush.bf16.msra.mxu0 0
        %839 = vmatpush.bf16.msra.mxu0 %v830
        %840 = vmatmul.bf16.gmra.mxu0 %v827
        %v841 = vpop.f32.mrf.mxu0
        %v842 = vadd.f32 %v823, %v841
        %v843 = vpop.f32.mrf.mxu0
        %844 = vdwg.mxu0
        %845 = vrot.lane.b32.xlu0 %v690, 112
        %v846 = vpop.permute.xlu0 %845
        %847 = vrot.lane.b32.xlu0 %v691, 112
        %v848 = vpop.permute.xlu0 %847
        %v850 = vsel %vm692, %v846, 0
        %v853 = vsel %vm692, %v848, 0
        %855 = vmatpush.bf16.xpose.msra.mxu0 0
        %856 = vmatpush.bf16.xpose.msra.mxu0 0
        %857 = vmatpush.bf16.xpose.msra.mxu0 0
        %858 = vmatpush.bf16.xpose.msra.mxu0 0
        %859 = vmatpush.bf16.xpose.msra.mxu0 0
        %860 = vmatpush.bf16.xpose.msra.mxu0 0
        %861 = vmatpush.bf16.xpose.msra.mxu0 0
        %862 = vmatpush.bf16.xpose.msra.mxu0 %v853
        %863 = vmatmul.bf16.gmra.mxu0 %v850
        %v864 = vpop.f32.mrf.mxu0
        %v865 = vadd.f32 0.0, %v864
        %v866 = vpop.f32.mrf.mxu0
        %867 = vdwg.mxu0
        %v868 = vsel %vm689, %v865, -1e+30
        %v869 = vsel %vm713, %v868, -inf
        %870 = vmax.xlane.f32.xlu0 %v869
        %v871 = vpop.xlane.xlu0 %870
        %v872 = vsub.f32 %v868, %v871
        %v873 = vmul.f32 %v872, 1.442695
        %v874 = vpow.pop %v873
        %v875 = vsel %vm713, %v874, 0.0
        %876 = vadd.xlane.f32.xlu0 %v875
        %v877 = vpop.xlane.xlu0 %876
        %v878 = vrcp.pop %v877
        %v879 = vmul.f32 %v874, %v878
        %v880 = vpack.c.bf16 %v879, %v879
        %881 = vrot.lane.b32.xlu0 %v726, 112
        %v882 = vpop.permute.xlu0 %881
        %v885 = vsel %vm727, %v880, 0
        %887 = vmatpush.bf16.msra.mxu0 0
        %888 = vmatpush.bf16.msra.mxu0 0
        %889 = vmatpush.bf16.msra.mxu0 0
        %890 = vmatpush.bf16.msra.mxu0 0
        %891 = vmatpush.bf16.msra.mxu0 0
        %892 = vmatpush.bf16.msra.mxu0 0
        %893 = vmatpush.bf16.msra.mxu0 0
        %894 = vmatpush.bf16.msra.mxu0 %v882
        %895 = vmatmul.bf16.gmra.mxu0 %v885
        %v896 = vpop.f32.mrf.mxu0
        %v897 = vadd.f32 0.0, %v896
        %v898 = vpop.f32.mrf.mxu0
        %899 = vdwg.mxu0
        %v900 = vpack.c.bf16 %v897, %v897
        %v901 = vld [vmem:[%s520 + $0x8] sm:$0xf]
        %v903 = vsel %vm692, %v900, 0
        %v906 = vsel %vm809, %v901, 0
        %908 = vmatpush.bf16.msra.mxu0 0
        %909 = vmatpush.bf16.msra.mxu0 0
        %910 = vmatpush.bf16.msra.mxu0 0
        %911 = vmatpush.bf16.msra.mxu0 0
        %912 = vmatpush.bf16.msra.mxu0 0
        %913 = vmatpush.bf16.msra.mxu0 0
        %914 = vmatpush.bf16.msra.mxu0 0
        %915 = vmatpush.bf16.msra.mxu0 %v906
        %916 = vmatmul.bf16.gmra.mxu0 %v903
        %v917 = vpop.f32.mrf.mxu0
        %v918 = vadd.f32 0.0, %v917
        %v919 = vpop.f32.mrf.mxu0
        %920 = vdwg.mxu0
        %v921 = vadd.f32 %v842, %v918
        %922 = vrot.lane.b32.xlu0 %v690, 104
        %v923 = vpop.permute.xlu0 %922
        %924 = vrot.lane.b32.xlu0 %v691, 104
        %v925 = vpop.permute.xlu0 %924
        %v927 = vsel %vm692, %v923, 0
        %v930 = vsel %vm692, %v925, 0
        %932 = vmatpush.bf16.xpose.msra.mxu0 0
        %933 = vmatpush.bf16.xpose.msra.mxu0 0
        %934 = vmatpush.bf16.xpose.msra.mxu0 0
        %935 = vmatpush.bf16.xpose.msra.mxu0 0
        %936 = vmatpush.bf16.xpose.msra.mxu0 0
        %937 = vmatpush.bf16.xpose.msra.mxu0 0
        %938 = vmatpush.bf16.xpose.msra.mxu0 0
        %939 = vmatpush.bf16.xpose.msra.mxu0 %v930
        %940 = vmatmul.bf16.gmra.mxu0 %v927
        %v941 = vpop.f32.mrf.mxu0
        %v942 = vadd.f32 0.0, %v941
        %v943 = vpop.f32.mrf.mxu0
        %944 = vdwg.mxu0
        %v945 = vsel %vm689, %v942, -1e+30
        %v946 = vsel %vm713, %v945, -inf
        %947 = vmax.xlane.f32.xlu0 %v946
        %v948 = vpop.xlane.xlu0 %947
        %v949 = vsub.f32 %v945, %v948
        %v950 = vmul.f32 %v949, 1.442695
        %v951 = vpow.pop %v950
        %v952 = vsel %vm713, %v951, 0.0
        %953 = vadd.xlane.f32.xlu0 %v952
        %v954 = vpop.xlane.xlu0 %953
        %v955 = vrcp.pop %v954
        %v956 = vmul.f32 %v951, %v955
        %v957 = vpack.c.bf16 %v956, %v956
        %958 = vrot.lane.b32.xlu0 %v726, 104
        %v959 = vpop.permute.xlu0 %958
        %v962 = vsel %vm727, %v957, 0
        %964 = vmatpush.bf16.msra.mxu0 0
        %965 = vmatpush.bf16.msra.mxu0 0
        %966 = vmatpush.bf16.msra.mxu0 0
        %967 = vmatpush.bf16.msra.mxu0 0
        %968 = vmatpush.bf16.msra.mxu0 0
        %969 = vmatpush.bf16.msra.mxu0 0
        %970 = vmatpush.bf16.msra.mxu0 0
        %971 = vmatpush.bf16.msra.mxu0 %v959
        %972 = vmatmul.bf16.gmra.mxu0 %v962
        %v973 = vpop.f32.mrf.mxu0
        %v974 = vadd.f32 0.0, %v973
        %v975 = vpop.f32.mrf.mxu0
        %976 = vdwg.mxu0
        %v977 = vpack.c.bf16 %v974, %v974
        %v978 = vld [vmem:[%s520 + $0xc] sm:$0xf]
        %v980 = vsel %vm692, %v977, 0
        %v983 = vsel %vm809, %v978, 0
        %985 = vmatpush.bf16.msra.mxu0 0
        %986 = vmatpush.bf16.msra.mxu0 0
        %987 = vmatpush.bf16.msra.mxu0 0
        %988 = vmatpush.bf16.msra.mxu0 0
        %989 = vmatpush.bf16.msra.mxu0 0
        %990 = vmatpush.bf16.msra.mxu0 0
        %991 = vmatpush.bf16.msra.mxu0 0
        %992 = vmatpush.bf16.msra.mxu0 %v983
        %993 = vmatmul.bf16.gmra.mxu0 %v980
        %v994 = vpop.f32.mrf.mxu0
        %v995 = vadd.f32 0.0, %v994
        %v996 = vpop.f32.mrf.mxu0
        %997 = vdwg.mxu0
        %v998 = vadd.f32 %v921, %v995
        %v999 = vadd.f32 %v529, %v998
        %v1000 = vld [vmem:[%s521] sm:$0x1]
        %v1001 = vadd.f32 %v999, %v1000
        %v1002 = vld [vmem:[%s522] sm:$0x1]
        %v1003 = vld [vmem:[%s523] sm:$0x1]
        %vm1004 = vcmask 253952
        %v1005 = vsel %vm1004, %v1001, 0.0
        %1006 = vadd.xlane.f32.xlu0 %v1005
        %v1007 = vpop.xlane.xlu0 %1006
        %v1008 = vmul.f32 %v1007, %v546
        %v1009 = vsub.f32 %v1001, %v1008
        %v1010 = vmul.f32 %v1009, %v1009
        %v1011 = vsel %vm1004, %v1010, 0.0
        %1012 = vadd.xlane.f32.xlu0 %v1011
        %v1013 = vpop.xlane.xlu0 %1012
        %v1014 = vmul.f32 %v1013, %v546
        %v1015 = vadd.f32 %v1014, 1e-05
        %v1016 = vrsqrt.pop %v1015
        %v1017 = vmul.f32 %v1016, %v1015
        %v1018 = vmul.f32 %v1017, %v1016
        %v1019 = vmul.f32 0.5, %v1018
        %v1020 = vsub.f32 1.5, %v1019
        %v1021 = vmul.f32 %v1016, %v1020
        %vm1022 = vweird.f32 %v1015
        %vm1023 = vweird.f32 %v1016
        %vm1024 = vmor %vm1022, %vm1023
        %v1025 = vsel %vm1024, %v1016, %v1021
        %v1026 = vmul.f32 %v1009, %v1025
        %v1027 = vmul.f32 %v1026, %v1002
        %v1028 = vadd.f32 %v1027, %v1003
        %v1029 = vpack.c.bf16 %v1028, %v1028
        %v1030 = vld [vmem:[%s524] sm:$0xf]
        %v1031 = vld [vmem:[%s524 + $0x4] sm:$0xf]
        %v1032 = vld [vmem:[%s524 + $0x8] sm:$0xf]
        %v1033 = vld [vmem:[%s524 + $0xc] sm:$0xf]
        %v1034 = vld [vmem:[%s525] sm:$0x1]
        %v1039 = vunpack.c.l.b16 %v1030
        %v1040 = vunpack.c.l.b16 %v1031
        %v1041 = vunpack.c.l.b16 %v1032
        %v1042 = vunpack.c.l.b16 %v1033
        %v1043 = vpack.c.b16 %v1040, %v1039
        %v1044 = vpack.c.b16 %v1042, %v1041
        %v1048 = vsel %vm533, %v1029, 0
        %1050 = vmatpush.bf16.msra.mxu0 0
        %1051 = vmatpush.bf16.msra.mxu0 0
        %1052 = vmatpush.bf16.msra.mxu0 0
        %1053 = vmatpush.bf16.msra.mxu0 0
        %1054 = vmatpush.bf16.msra.mxu0 0
        %1055 = vmatpush.bf16.msra.mxu0 0
        %1056 = vmatpush.bf16.msra.mxu0 %v1044
        %1057 = vmatpush.bf16.msra.mxu0 %v1043
        %1058 = vmatmul.bf16.gmra.mxu0 %v1048
        %v1059 = vpop.f32.mrf.mxu0
        %v1060 = vadd.f32 %v1034, %v1059
        %v1061 = vpop.f32.mrf.mxu0
        %1062 = vdwg.mxu0
        %v1063 = vmul.f32 %v1060, 1.702
        %v1064 = vxor.u32 %v1063, 2147483648
        %v1065 = vmul.f32 %v1064, 1.442695
        %v1066 = vpow.pop %v1065
        %v1067 = vadd.f32 %v1066, 1.0
        %v1068 = vrcp.pop %v1067
        %v1069 = vmul.f32 %v1067, %v1068
        %v1070 = vsub.f32 1.0, %v1069
        %v1071 = vmul.f32 %v1068, %v1070
        %v1072 = vadd.f32 %v1068, %v1071
        %vm1073 = vweird.f32 %v1067
        %vm1074 = vweird.f32 %v1068
        %vm1075 = vmor %vm1073, %vm1074
        %v1076 = vsel %vm1075, %v1068, %v1072
        %v1077 = vand.u32 2147483647, %v1067
        %vm1078 = vcmp.eq.f32.partialorder %v1077, 8.507059e+37
        %v1079 = vand.u32 %v1067, 2147483648
        %v1080 = vor.u32 1.1754944e-38, %v1079
        %v1081 = vsel %vm1078, %v1080, %v1076
        %v1082 = vmul.f32 1.0, %v1081
        %v1083 = vmul.f32 %v1060, %v1082
        %v1084 = vpack.c.bf16 %v1083, %v1083
        %v1085 = vld [vmem:[%s526] sm:$0xf]
        %v1086 = vld [vmem:[%s526 + $0x4] sm:$0xf]
        %v1087 = vld [vmem:[%s526 + $0x8] sm:$0xf]
        %v1088 = vld [vmem:[%s526 + $0xc] sm:$0xf]
        %v1089 = vld [vmem:[%s526 + $0x10] sm:$0xf]
        %v1090 = vld [vmem:[%s526 + $0x14] sm:$0xf]
        %v1091 = vld [vmem:[%s526 + $0x18] sm:$0xf]
        %v1092 = vld [vmem:[%s526 + $0x1c] sm:$0xf]
        %v1093 = vld [vmem:[%s526 + $0x20] sm:$0xf]
        %v1094 = vld [vmem:[%s526 + $0x24] sm:$0xf]
        %v1095 = vld [vmem:[%s526 + $0x28] sm:$0xf]
        %v1096 = vld [vmem:[%s526 + $0x2c] sm:$0xf]
        %v1097 = vld [vmem:[%s526 + $0x30] sm:$0xf]
        %v1098 = vld [vmem:[%s526 + $0x34] sm:$0xf]
        %v1099 = vld [vmem:[%s526 + $0x38] sm:$0xf]
        %v1100 = vld [vmem:[%s526 + $0x3c] sm:$0xf]
        %v1117 = vunpack.c.l.b16 %v1085
        %v1118 = vunpack.c.l.b16 %v1086
        %v1119 = vunpack.c.l.b16 %v1087
        %v1120 = vunpack.c.l.b16 %v1088
        %v1121 = vunpack.c.l.b16 %v1089
        %v1122 = vunpack.c.l.b16 %v1090
        %v1123 = vunpack.c.l.b16 %v1091
        %v1124 = vunpack.c.l.b16 %v1092
        %v1125 = vunpack.c.l.b16 %v1093
        %v1126 = vunpack.c.l.b16 %v1094
        %v1127 = vunpack.c.l.b16 %v1095
        %v1128 = vunpack.c.l.b16 %v1096
        %v1129 = vunpack.c.l.b16 %v1097
        %v1130 = vunpack.c.l.b16 %v1098
        %v1131 = vunpack.c.l.b16 %v1099
        %v1132 = vunpack.c.l.b16 %v1100
        %v1133 = vpack.c.b16 %v1118, %v1117
        %v1134 = vpack.c.b16 %v1120, %v1119
        %v1135 = vpack.c.b16 %v1122, %v1121
        %v1136 = vpack.c.b16 %v1124, %v1123
        %v1137 = vpack.c.b16 %v1126, %v1125
        %v1138 = vpack.c.b16 %v1128, %v1127
        %v1139 = vpack.c.b16 %v1130, %v1129
        %v1140 = vpack.c.b16 %v1132, %v1131
        %1149 = vmatpush.bf16.msra.mxu0 %v1140
        %1150 = vmatpush.bf16.msra.mxu0 %v1139
        %1151 = vmatpush.bf16.msra.mxu0 %v1138
        %1152 = vmatpush.bf16.msra.mxu0 %v1137
        %1153 = vmatpush.bf16.msra.mxu0 %v1136
        %1154 = vmatpush.bf16.msra.mxu0 %v1135
        %1155 = vmatpush.bf16.msra.mxu0 %v1134
        %1156 = vmatpush.bf16.msra.mxu0 %v1133
        %1157 = vmatmul.bf16.gmra.mxu0 %v1084
        %v1158 = vpop.f32.mrf.mxu0
        %v1159 = vadd.f32 0.0, %v1158
        %v1160 = vpop.f32.mrf.mxu0
        %1161 = vdwg.mxu0
        %v1162 = vadd.f32 %v1001, %v1159
        %v1163 = vld [vmem:[%s527] sm:$0x1]
        %v1164 = vadd.f32 %v1162, %v1163
        %v1165 = vld [vmem:[%s13] sm:$0x1]
        %v1166 = vld [vmem:[%s14] sm:$0x1]
        %v1167 = vsel %vm1004, %v1164, 0.0
        %1168 = vadd.xlane.f32.xlu0 %v1167
        %v1169 = vpop.xlane.xlu0 %1168
        %v1170 = vmul.f32 %v1169, %v546
        %v1171 = vsub.f32 %v1164, %v1170
        %v1172 = vmul.f32 %v1171, %v1171
        %v1173 = vsel %vm1004, %v1172, 0.0
        %1174 = vadd.xlane.f32.xlu0 %v1173
        %v1175 = vpop.xlane.xlu0 %1174
        %v1176 = vmul.f32 %v1175, %v546
        %v1177 = vadd.f32 %v1176, 1e-05
        %v1178 = vrsqrt.pop %v1177
        %v1179 = vmul.f32 %v1178, %v1177
        %v1180 = vmul.f32 %v1179, %v1178
        %v1181 = vmul.f32 0.5, %v1180
        %v1182 = vsub.f32 1.5, %v1181
        %v1183 = vmul.f32 %v1178, %v1182
        %vm1184 = vweird.f32 %v1177
        %vm1185 = vweird.f32 %v1178
        %vm1186 = vmor %vm1184, %vm1185
        %v1187 = vsel %vm1186, %v1178, %v1183
        %v1188 = vmul.f32 %v1171, %v1187
        %v1189 = vmul.f32 %v1188, %v1165
        %v1190 = vadd.f32 %v1189, %v1166
        %1191 = vst.msk [vmem:[%s510] sm:$0x1] %vm1004, %v1190
        %s1192 = sand.u32 %s357, 1
        %s1193 = scalar_lea.sflag [#allocation3], %s1192
        %s1194 = sand.u32 %s357, 1
        %s1195 = scalar_lea.vmem [#allocation2], %s1194
        // Predicated region
        $region81: #{vit_forward_pallas.5} parent=79 // pred_check
          %p1196 = pneg %p367
        $region82: #{vit_forward_pallas.5} parent=79 // pred_check_branch
          %1198 = sbr.rel (%p1196) target = $region84
        $region83: #{vit_forward_pallas.5} parent=79 // pred_region
          %1200 = vsyncadd %s1193, 0
          %s1201 = scalar_lea.hbm %s15, %s29
          %s1203 = sshll.u32 %s1195, 4
          %s1204 = int_to_ptr.vmem [resolvable:$true] %s1203
          %s1205 = sshll.u32 %s1201, 4
          %s1206 = int_to_ptr.hbm [resolvable:$true] %s1205
          %1208 = dma.vmem_to_hbm [thread:$0]  %s1204, 16, %s1206, %s1193
        $region84: #{vit_forward_pallas.5} parent=79 // pred_fallthru
          _
      $region80: #{vit_forward_pallas.5} parent=5 // pred_fallthru
        _
      %p1209 = scmp.le.s32.totalorder 2, %s24
      // Predicated region
      $region85: #{vit_forward_pallas.5} parent=5 // pred_check
        %p1210 = pneg %p1209
      $region86: #{vit_forward_pallas.5} parent=5 // pred_check_branch
        %1212 = sbr.rel (%p1210) target = $region88
      $region87: #{vit_forward_pallas.5} parent=5 // pred_region
        %s1213 = ssub.s32 %s24, 2
        // Predicated region
        $region89: #{vit_forward_pallas.5} parent=87 // pred_check
          %p1214 = pneg %p373
        $region90: #{vit_forward_pallas.5} parent=87 // pred_check_branch
          %1216 = sbr.rel (%p1214) target = $region92
        $region91: #{vit_forward_pallas.5} parent=87 // pred_region
          %s1217 = sand.u32 %s358, 1
          %s1218 = scalar_lea.sflag [#allocation3], %s1217
          %s1219 = sand.u32 %s358, 1
          %s1220 = scalar_lea.vmem [#allocation2], %s1219
          %1222 = dma.done %s1218, 16
        $region92: #{vit_forward_pallas.5} parent=87 // pred_fallthru
          _
      $region88: #{vit_forward_pallas.5} parent=5 // pred_fallthru
        _
    $region6: #{vit_forward_pallas.5} parent=1 // loop_footer
      %s28 = sadd.s32 1, %s24
    $region7: #{vit_forward_pallas.5} parent=1 // loop_footer_branch
      %23 = sbr.rel target = $region3
    $region8: #{vit_forward_pallas.5} parent=1 // loop_exit
      _
    %1223 = vsyncpa [#allocation3], 1
    %s1224 = scalar_lea.sflag [#allocation3], 1
    %1225 = vsyncpa %s1224, 1

// kernel: vit_forward_pallas.4
$region0: #{vit_forward_pallas.4}
  #allocation0 [shape = 'u32[]', space=smem, size = 0x4, offset = 0x4, fixed_abs, tag = 'smem constant byte address 0x4 - core index']
  #allocation1 [shape = 'u32[72,128]{1,0:T(1,128)}', space=vmem, size = 0x9000, scoped, tag = 'internal scratch']
  #allocation2 [shape = 'f32[16,32]{1,0:T(8,128)}', space=vmem, size = 0x2000, scoped, tag = 'scratch operand']
  %s0 = inlined_call_operand.vmem [shape: f32[2,16,32], index: 0, kind: input, shape index: {}, may-alias: {0,13}]
  %s1 = inlined_call_operand.vmem [shape: f32[2,1,32], index: 1, kind: input, shape index: {}]
  %s2 = inlined_call_operand.vmem [shape: f32[2,1,32], index: 2, kind: input, shape index: {}]
  %s3 = inlined_call_operand.vmem [shape: bf16[2,32,96], index: 3, kind: input, shape index: {}]
  %s4 = inlined_call_operand.vmem [shape: f32[2,1,96], index: 4, kind: input, shape index: {}]
  %s5 = inlined_call_operand.vmem [shape: bf16[2,32,32], index: 5, kind: input, shape index: {}]
  %s6 = inlined_call_operand.vmem [shape: f32[2,1,32], index: 6, kind: input, shape index: {}]
  %s7 = inlined_call_operand.vmem [shape: f32[2,1,32], index: 7, kind: input, shape index: {}]
  %s8 = inlined_call_operand.vmem [shape: f32[2,1,32], index: 8, kind: input, shape index: {}]
  %s9 = inlined_call_operand.vmem [shape: bf16[2,32,128], index: 9, kind: input, shape index: {}]
  %s10 = inlined_call_operand.vmem [shape: f32[2,1,128], index: 10, kind: input, shape index: {}]
  %s11 = inlined_call_operand.vmem [shape: bf16[2,128,32], index: 11, kind: input, shape index: {}]
  %s12 = inlined_call_operand.vmem [shape: f32[2,1,32], index: 12, kind: input, shape index: {}]
  %s13 = inlined_call_operand.vmem [shape: f32[2,16,32], index: 13, kind: output, shape index: {}, may-alias: {0,13}]
  %s14 = sld [smem:[#allocation0]]
  $region89: #{vit_forward_pallas.4} parent=0
    _
  %s16 = ssub.s32 1, %s14
  %s17 = scalar_select 0, %s16, %s14
  loop: start=0, step=1, limit=4
  $region2: #{vit_forward_pallas.4} parent=0 // loop_pre_header
    _
  $region3: #{vit_forward_pallas.4} parent=0 // loop_header
    %s19 = sphi 0, %s23
    %p20 = scmp.ge.s32.totalorder %s19, 4
    %s26 = sphi 0, %s38
    %s27 = sphi 0, %s34
    %s28 = sphi 0, %s26
    %s29 = sphi 0, %s27
    %s30 = sphi 0, %s28
    %s31 = sphi 0, %s29
    %s41 = sphi 0, %s43
    %s44 = sphi 0, %s41
    %s45 = sphi 0, %s44
    %s61 = sphi 0, %s45
    %s67 = sphi 0, %s69
    %s70 = sphi 0, %s67
    %s71 = sphi 0, %s70
    %s87 = sphi 0, %s71
    %s93 = sphi 0, %s95
    %s96 = sphi 0, %s93
    %s97 = sphi 0, %s96
    %s113 = sphi 0, %s97
    %s119 = sphi 0, %s121
    %s122 = sphi 0, %s119
    %s123 = sphi 0, %s122
    %s139 = sphi 0, %s123
    %s145 = sphi 0, %s147
    %s148 = sphi 0, %s145
    %s149 = sphi 0, %s148
    %s165 = sphi 0, %s149
    %s171 = sphi 0, %s173
    %s174 = sphi 0, %s171
    %s175 = sphi 0, %s174
    %s191 = sphi 0, %s175
    %s197 = sphi 0, %s199
    %s200 = sphi 0, %s197
    %s201 = sphi 0, %s200
    %s217 = sphi 0, %s201
    %s223 = sphi 0, %s225
    %s226 = sphi 0, %s223
    %s227 = sphi 0, %s226
    %s243 = sphi 0, %s227
    %s249 = sphi 0, %s251
    %s252 = sphi 0, %s249
    %s253 = sphi 0, %s252
    %s269 = sphi 0, %s253
    %s275 = sphi 0, %s277
    %s278 = sphi 0, %s275
    %s279 = sphi 0, %s278
    %s295 = sphi 0, %s279
    %s301 = sphi 0, %s303
    %s304 = sphi 0, %s301
    %s305 = sphi 0, %s304
    %s321 = sphi 0, %s305
    %s327 = sphi 0, %s329
    %s330 = sphi 0, %s327
    %s331 = sphi 0, %s330
    %s347 = sphi 0, %s331
    %s353 = sphi 0, %s355
    %s356 = sphi 0, %s353
    %s357 = sphi 0, %s356
    %s373 = sphi 0, %s357
    %s379 = sphi 0, %s381
    %s382 = sphi 0, %s379
    %s383 = sphi 0, %s382
    %s399 = sphi 0, %s383
  $region4: #{vit_forward_pallas.4} parent=0 // loop_header_branch
    %22 = sbr.rel (%p20) target = $region8
  $region5: #{vit_forward_pallas.4} parent=0 // loop_body
    %s24 = ssub.s32 %s19, 1
    %s25 = ssub.s32 %s19, 2
    %s32 = sadd.s32 1, %s27
    %p33 = scmp.ge.s32.totalorder %s32, 1
    %s34 = scalar_select %p33, 0, %s32
    %s35 = sadd.s32 1, %s26
    %s36 = scalar_select %p33, %s35, %s26
    %p37 = scmp.ge.s32.totalorder %s36, 2
    %s38 = scalar_select %p37, 0, %s36
    %s39 = ssub.s32 %s26, %s38
    %p40 = scmp.eq.s32.totalorder %s39, 0
    %s42 = sadd.s32 %s41, 1
    %s43 = scalar_select %p40, %s41, %s42
    %p46 = pneg %p40
    %p47 = scmp.eq.s32.totalorder %s19, 1
    %p48 = por %p46, %p47
    %p49 = scmp.ne.s32.totalorder %s41, %s44
    %p50 = scmp.eq.s32.totalorder %s19, 0
    %p51 = por %p49, %p50
    %p52 = scmp.ne.s32.totalorder %s41, %s44
    %p53 = scmp.eq.s32.totalorder %s24, 1
    %p54 = por %p52, %p53
    %p55 = scmp.ne.s32.totalorder %s44, %s45
    %p56 = scmp.eq.s32.totalorder %s24, 0
    %p57 = por %p55, %p56
    %p58 = scmp.ne.s32.totalorder %s44, %s45
    %p59 = scmp.eq.s32.totalorder %s25, 1
    %p60 = por %p58, %p59
    %p62 = scmp.ne.s32.totalorder %s45, %s61
    %p63 = scmp.eq.s32.totalorder %s25, 0
    %p64 = por %p62, %p63
    %s65 = ssub.s32 %s27, %s34
    %p66 = scmp.eq.s32.totalorder %s65, 0
    %s68 = sadd.s32 %s67, 1
    %s69 = scalar_select %p66, %s67, %s68
    %p72 = pneg %p66
    %p73 = scmp.eq.s32.totalorder %s19, 1
    %p74 = por %p72, %p73
    %p75 = scmp.ne.s32.totalorder %s67, %s70
    %p76 = scmp.eq.s32.totalorder %s19, 0
    %p77 = por %p75, %p76
    %p78 = scmp.ne.s32.totalorder %s67, %s70
    %p79 = scmp.eq.s32.totalorder %s24, 1
    %p80 = por %p78, %p79
    %p81 = scmp.ne.s32.totalorder %s70, %s71
    %p82 = scmp.eq.s32.totalorder %s24, 0
    %p83 = por %p81, %p82
    %p84 = scmp.ne.s32.totalorder %s70, %s71
    %p85 = scmp.eq.s32.totalorder %s25, 1
    %p86 = por %p84, %p85
    %p88 = scmp.ne.s32.totalorder %s71, %s87
    %p89 = scmp.eq.s32.totalorder %s25, 0
    %p90 = por %p88, %p89
    %s91 = ssub.s32 %s27, %s34
    %p92 = scmp.eq.s32.totalorder %s91, 0
    %s94 = sadd.s32 %s93, 1
    %s95 = scalar_select %p92, %s93, %s94
    %p98 = pneg %p92
    %p99 = scmp.eq.s32.totalorder %s19, 1
    %p100 = por %p98, %p99
    %p101 = scmp.ne.s32.totalorder %s93, %s96
    %p102 = scmp.eq.s32.totalorder %s19, 0
    %p103 = por %p101, %p102
    %p104 = scmp.ne.s32.totalorder %s93, %s96
    %p105 = scmp.eq.s32.totalorder %s24, 1
    %p106 = por %p104, %p105
    %p107 = scmp.ne.s32.totalorder %s96, %s97
    %p108 = scmp.eq.s32.totalorder %s24, 0
    %p109 = por %p107, %p108
    %p110 = scmp.ne.s32.totalorder %s96, %s97
    %p111 = scmp.eq.s32.totalorder %s25, 1
    %p112 = por %p110, %p111
    %p114 = scmp.ne.s32.totalorder %s97, %s113
    %p115 = scmp.eq.s32.totalorder %s25, 0
    %p116 = por %p114, %p115
    %s117 = ssub.s32 %s27, %s34
    %p118 = scmp.eq.s32.totalorder %s117, 0
    %s120 = sadd.s32 %s119, 1
    %s121 = scalar_select %p118, %s119, %s120
    %p124 = pneg %p118
    %p125 = scmp.eq.s32.totalorder %s19, 1
    %p126 = por %p124, %p125
    %p127 = scmp.ne.s32.totalorder %s119, %s122
    %p128 = scmp.eq.s32.totalorder %s19, 0
    %p129 = por %p127, %p128
    %p130 = scmp.ne.s32.totalorder %s119, %s122
    %p131 = scmp.eq.s32.totalorder %s24, 1
    %p132 = por %p130, %p131
    %p133 = scmp.ne.s32.totalorder %s122, %s123
    %p134 = scmp.eq.s32.totalorder %s24, 0
    %p135 = por %p133, %p134
    %p136 = scmp.ne.s32.totalorder %s122, %s123
    %p137 = scmp.eq.s32.totalorder %s25, 1
    %p138 = por %p136, %p137
    %p140 = scmp.ne.s32.totalorder %s123, %s139
    %p141 = scmp.eq.s32.totalorder %s25, 0
    %p142 = por %p140, %p141
    %s143 = ssub.s32 %s27, %s34
    %p144 = scmp.eq.s32.totalorder %s143, 0
    %s146 = sadd.s32 %s145, 1
    %s147 = scalar_select %p144, %s145, %s146
    %p150 = pneg %p144
    %p151 = scmp.eq.s32.totalorder %s19, 1
    %p152 = por %p150, %p151
    %p153 = scmp.ne.s32.totalorder %s145, %s148
    %p154 = scmp.eq.s32.totalorder %s19, 0
    %p155 = por %p153, %p154
    %p156 = scmp.ne.s32.totalorder %s145, %s148
    %p157 = scmp.eq.s32.totalorder %s24, 1
    %p158 = por %p156, %p157
    %p159 = scmp.ne.s32.totalorder %s148, %s149
    %p160 = scmp.eq.s32.totalorder %s24, 0
    %p161 = por %p159, %p160
    %p162 = scmp.ne.s32.totalorder %s148, %s149
    %p163 = scmp.eq.s32.totalorder %s25, 1
    %p164 = por %p162, %p163
    %p166 = scmp.ne.s32.totalorder %s149, %s165
    %p167 = scmp.eq.s32.totalorder %s25, 0
    %p168 = por %p166, %p167
    %s169 = ssub.s32 %s27, %s34
    %p170 = scmp.eq.s32.totalorder %s169, 0
    %s172 = sadd.s32 %s171, 1
    %s173 = scalar_select %p170, %s171, %s172
    %p176 = pneg %p170
    %p177 = scmp.eq.s32.totalorder %s19, 1
    %p178 = por %p176, %p177
    %p179 = scmp.ne.s32.totalorder %s171, %s174
    %p180 = scmp.eq.s32.totalorder %s19, 0
    %p181 = por %p179, %p180
    %p182 = scmp.ne.s32.totalorder %s171, %s174
    %p183 = scmp.eq.s32.totalorder %s24, 1
    %p184 = por %p182, %p183
    %p185 = scmp.ne.s32.totalorder %s174, %s175
    %p186 = scmp.eq.s32.totalorder %s24, 0
    %p187 = por %p185, %p186
    %p188 = scmp.ne.s32.totalorder %s174, %s175
    %p189 = scmp.eq.s32.totalorder %s25, 1
    %p190 = por %p188, %p189
    %p192 = scmp.ne.s32.totalorder %s175, %s191
    %p193 = scmp.eq.s32.totalorder %s25, 0
    %p194 = por %p192, %p193
    %s195 = ssub.s32 %s27, %s34
    %p196 = scmp.eq.s32.totalorder %s195, 0
    %s198 = sadd.s32 %s197, 1
    %s199 = scalar_select %p196, %s197, %s198
    %p202 = pneg %p196
    %p203 = scmp.eq.s32.totalorder %s19, 1
    %p204 = por %p202, %p203
    %p205 = scmp.ne.s32.totalorder %s197, %s200
    %p206 = scmp.eq.s32.totalorder %s19, 0
    %p207 = por %p205, %p206
    %p208 = scmp.ne.s32.totalorder %s197, %s200
    %p209 = scmp.eq.s32.totalorder %s24, 1
    %p210 = por %p208, %p209
    %p211 = scmp.ne.s32.totalorder %s200, %s201
    %p212 = scmp.eq.s32.totalorder %s24, 0
    %p213 = por %p211, %p212
    %p214 = scmp.ne.s32.totalorder %s200, %s201
    %p215 = scmp.eq.s32.totalorder %s25, 1
    %p216 = por %p214, %p215
    %p218 = scmp.ne.s32.totalorder %s201, %s217
    %p219 = scmp.eq.s32.totalorder %s25, 0
    %p220 = por %p218, %p219
    %s221 = ssub.s32 %s27, %s34
    %p222 = scmp.eq.s32.totalorder %s221, 0
    %s224 = sadd.s32 %s223, 1
    %s225 = scalar_select %p222, %s223, %s224
    %p228 = pneg %p222
    %p229 = scmp.eq.s32.totalorder %s19, 1
    %p230 = por %p228, %p229
    %p231 = scmp.ne.s32.totalorder %s223, %s226
    %p232 = scmp.eq.s32.totalorder %s19, 0
    %p233 = por %p231, %p232
    %p234 = scmp.ne.s32.totalorder %s223, %s226
    %p235 = scmp.eq.s32.totalorder %s24, 1
    %p236 = por %p234, %p235
    %p237 = scmp.ne.s32.totalorder %s226, %s227
    %p238 = scmp.eq.s32.totalorder %s24, 0
    %p239 = por %p237, %p238
    %p240 = scmp.ne.s32.totalorder %s226, %s227
    %p241 = scmp.eq.s32.totalorder %s25, 1
    %p242 = por %p240, %p241
    %p244 = scmp.ne.s32.totalorder %s227, %s243
    %p245 = scmp.eq.s32.totalorder %s25, 0
    %p246 = por %p244, %p245
    %s247 = ssub.s32 %s27, %s34
    %p248 = scmp.eq.s32.totalorder %s247, 0
    %s250 = sadd.s32 %s249, 1
    %s251 = scalar_select %p248, %s249, %s250
    %p254 = pneg %p248
    %p255 = scmp.eq.s32.totalorder %s19, 1
    %p256 = por %p254, %p255
    %p257 = scmp.ne.s32.totalorder %s249, %s252
    %p258 = scmp.eq.s32.totalorder %s19, 0
    %p259 = por %p257, %p258
    %p260 = scmp.ne.s32.totalorder %s249, %s252
    %p261 = scmp.eq.s32.totalorder %s24, 1
    %p262 = por %p260, %p261
    %p263 = scmp.ne.s32.totalorder %s252, %s253
    %p264 = scmp.eq.s32.totalorder %s24, 0
    %p265 = por %p263, %p264
    %p266 = scmp.ne.s32.totalorder %s252, %s253
    %p267 = scmp.eq.s32.totalorder %s25, 1
    %p268 = por %p266, %p267
    %p270 = scmp.ne.s32.totalorder %s253, %s269
    %p271 = scmp.eq.s32.totalorder %s25, 0
    %p272 = por %p270, %p271
    %s273 = ssub.s32 %s27, %s34
    %p274 = scmp.eq.s32.totalorder %s273, 0
    %s276 = sadd.s32 %s275, 1
    %s277 = scalar_select %p274, %s275, %s276
    %p280 = pneg %p274
    %p281 = scmp.eq.s32.totalorder %s19, 1
    %p282 = por %p280, %p281
    %p283 = scmp.ne.s32.totalorder %s275, %s278
    %p284 = scmp.eq.s32.totalorder %s19, 0
    %p285 = por %p283, %p284
    %p286 = scmp.ne.s32.totalorder %s275, %s278
    %p287 = scmp.eq.s32.totalorder %s24, 1
    %p288 = por %p286, %p287
    %p289 = scmp.ne.s32.totalorder %s278, %s279
    %p290 = scmp.eq.s32.totalorder %s24, 0
    %p291 = por %p289, %p290
    %p292 = scmp.ne.s32.totalorder %s278, %s279
    %p293 = scmp.eq.s32.totalorder %s25, 1
    %p294 = por %p292, %p293
    %p296 = scmp.ne.s32.totalorder %s279, %s295
    %p297 = scmp.eq.s32.totalorder %s25, 0
    %p298 = por %p296, %p297
    %s299 = ssub.s32 %s27, %s34
    %p300 = scmp.eq.s32.totalorder %s299, 0
    %s302 = sadd.s32 %s301, 1
    %s303 = scalar_select %p300, %s301, %s302
    %p306 = pneg %p300
    %p307 = scmp.eq.s32.totalorder %s19, 1
    %p308 = por %p306, %p307
    %p309 = scmp.ne.s32.totalorder %s301, %s304
    %p310 = scmp.eq.s32.totalorder %s19, 0
    %p311 = por %p309, %p310
    %p312 = scmp.ne.s32.totalorder %s301, %s304
    %p313 = scmp.eq.s32.totalorder %s24, 1
    %p314 = por %p312, %p313
    %p315 = scmp.ne.s32.totalorder %s304, %s305
    %p316 = scmp.eq.s32.totalorder %s24, 0
    %p317 = por %p315, %p316
    %p318 = scmp.ne.s32.totalorder %s304, %s305
    %p319 = scmp.eq.s32.totalorder %s25, 1
    %p320 = por %p318, %p319
    %p322 = scmp.ne.s32.totalorder %s305, %s321
    %p323 = scmp.eq.s32.totalorder %s25, 0
    %p324 = por %p322, %p323
    %s325 = ssub.s32 %s27, %s34
    %p326 = scmp.eq.s32.totalorder %s325, 0
    %s328 = sadd.s32 %s327, 1
    %s329 = scalar_select %p326, %s327, %s328
    %p332 = pneg %p326
    %p333 = scmp.eq.s32.totalorder %s19, 1
    %p334 = por %p332, %p333
    %p335 = scmp.ne.s32.totalorder %s327, %s330
    %p336 = scmp.eq.s32.totalorder %s19, 0
    %p337 = por %p335, %p336
    %p338 = scmp.ne.s32.totalorder %s327, %s330
    %p339 = scmp.eq.s32.totalorder %s24, 1
    %p340 = por %p338, %p339
    %p341 = scmp.ne.s32.totalorder %s330, %s331
    %p342 = scmp.eq.s32.totalorder %s24, 0
    %p343 = por %p341, %p342
    %p344 = scmp.ne.s32.totalorder %s330, %s331
    %p345 = scmp.eq.s32.totalorder %s25, 1
    %p346 = por %p344, %p345
    %p348 = scmp.ne.s32.totalorder %s331, %s347
    %p349 = scmp.eq.s32.totalorder %s25, 0
    %p350 = por %p348, %p349
    %s351 = ssub.s32 %s27, %s34
    %p352 = scmp.eq.s32.totalorder %s351, 0
    %s354 = sadd.s32 %s353, 1
    %s355 = scalar_select %p352, %s353, %s354
    %p358 = pneg %p352
    %p359 = scmp.eq.s32.totalorder %s19, 1
    %p360 = por %p358, %p359
    %p361 = scmp.ne.s32.totalorder %s353, %s356
    %p362 = scmp.eq.s32.totalorder %s19, 0
    %p363 = por %p361, %p362
    %p364 = scmp.ne.s32.totalorder %s353, %s356
    %p365 = scmp.eq.s32.totalorder %s24, 1
    %p366 = por %p364, %p365
    %p367 = scmp.ne.s32.totalorder %s356, %s357
    %p368 = scmp.eq.s32.totalorder %s24, 0
    %p369 = por %p367, %p368
    %p370 = scmp.ne.s32.totalorder %s356, %s357
    %p371 = scmp.eq.s32.totalorder %s25, 1
    %p372 = por %p370, %p371
    %p374 = scmp.ne.s32.totalorder %s357, %s373
    %p375 = scmp.eq.s32.totalorder %s25, 0
    %p376 = por %p374, %p375
    %s377 = ssub.s32 %s26, %s38
    %p378 = scmp.eq.s32.totalorder %s377, 0
    %s380 = sadd.s32 %s379, 1
    %s381 = scalar_select %p378, %s379, %s380
    %p384 = pneg %p378
    %p385 = scmp.eq.s32.totalorder %s19, 1
    %p386 = por %p384, %p385
    %p387 = scmp.ne.s32.totalorder %s379, %s382
    %p388 = scmp.eq.s32.totalorder %s19, 0
    %p389 = por %p387, %p388
    %p390 = scmp.ne.s32.totalorder %s379, %s382
    %p391 = scmp.eq.s32.totalorder %s24, 1
    %p392 = por %p390, %p391
    %p393 = scmp.ne.s32.totalorder %s382, %s383
    %p394 = scmp.eq.s32.totalorder %s24, 0
    %p395 = por %p393, %p394
    %p396 = scmp.ne.s32.totalorder %s382, %s383
    %p397 = scmp.eq.s32.totalorder %s25, 1
    %p398 = por %p396, %p397
    %p400 = scmp.ne.s32.totalorder %s383, %s399
    %p401 = scmp.eq.s32.totalorder %s25, 0
    %p402 = por %p400, %p401
    %p403 = scmp.le.s32.totalorder 1, %s19
    %p404 = scmp.lt.s32.totalorder %s19, 3
    %p405 = pnand %p403, %p404
    %p406 = pneg %p405
    // Predicated region
    $region9: #{vit_forward_pallas.4} parent=5 // pred_check
      _
    $region10: #{vit_forward_pallas.4} parent=5 // pred_check_branch
      %408 = sbr.rel (%p405) target = $region12
    $region11: #{vit_forward_pallas.4} parent=5 // pred_region
      %s409 = ssub.s32 %s19, 1
      // Predicated region
      $region13: #{vit_forward_pallas.4} parent=11 // pred_check
        %p410 = pneg %p83
      $region14: #{vit_forward_pallas.4} parent=11 // pred_check_branch
        %412 = sbr.rel (%p410) target = $region16
      $region15: #{vit_forward_pallas.4} parent=11 // pred_region
        %p413 = scmp.lt.s32.totalorder %s29, 1
        %s414 = scalar_select %p413, %s29, 1
        %s415 = scalar_lea.vmem %s1, %s414
      $region16: #{vit_forward_pallas.4} parent=11 // pred_fallthru
        _
      // Predicated region
      $region17: #{vit_forward_pallas.4} parent=11 // pred_check
        %p416 = pneg %p109
      $region18: #{vit_forward_pallas.4} parent=11 // pred_check_branch
        %418 = sbr.rel (%p416) target = $region20
      $region19: #{vit_forward_pallas.4} parent=11 // pred_region
        %p419 = scmp.lt.s32.totalorder %s29, 1
        %s420 = scalar_select %p419, %s29, 1
        %s421 = scalar_lea.vmem %s2, %s420
      $region20: #{vit_forward_pallas.4} parent=11 // pred_fallthru
        _
      // Predicated region
      $region21: #{vit_forward_pallas.4} parent=11 // pred_check
        %p422 = pneg %p135
      $region22: #{vit_forward_pallas.4} parent=11 // pred_check_branch
        %424 = sbr.rel (%p422) target = $region24
      $region23: #{vit_forward_pallas.4} parent=11 // pred_region
        %p425 = scmp.lt.s32.totalorder %s29, 1
        %s426 = scalar_select %p425, %s29, 1
        %s427 = smul.addr %s426, 4
        %s428 = smul.addr %s427, 4
        %s429 = scalar_lea.vmem %s3, %s428
      $region24: #{vit_forward_pallas.4} parent=11 // pred_fallthru
        _
      // Predicated region
      $region25: #{vit_forward_pallas.4} parent=11 // pred_check
        %p430 = pneg %p161
      $region26: #{vit_forward_pallas.4} parent=11 // pred_check_branch
        %432 = sbr.rel (%p430) target = $region28
      $region27: #{vit_forward_pallas.4} parent=11 // pred_region
        %p433 = scmp.lt.s32.totalorder %s29, 1
        %s434 = scalar_select %p433, %s29, 1
        %s435 = scalar_lea.vmem %s4, %s434
      $region28: #{vit_forward_pallas.4} parent=11 // pred_fallthru
        _
      // Predicated region
      $region29: #{vit_forward_pallas.4} parent=11 // pred_check
        %p436 = pneg %p187
      $region30: #{vit_forward_pallas.4} parent=11 // pred_check_branch
        %438 = sbr.rel (%p436) target = $region32
      $region31: #{vit_forward_pallas.4} parent=11 // pred_region
        %p439 = scmp.lt.s32.totalorder %s29, 1
        %s440 = scalar_select %p439, %s29, 1
        %s441 = smul.addr %s440, 4
        %s442 = smul.addr %s441, 4
        %s443 = scalar_lea.vmem %s5, %s442
      $region32: #{vit_forward_pallas.4} parent=11 // pred_fallthru
        _
      // Predicated region
      $region33: #{vit_forward_pallas.4} parent=11 // pred_check
        %p444 = pneg %p213
      $region34: #{vit_forward_pallas.4} parent=11 // pred_check_branch
        %446 = sbr.rel (%p444) target = $region36
      $region35: #{vit_forward_pallas.4} parent=11 // pred_region
        %p447 = scmp.lt.s32.totalorder %s29, 1
        %s448 = scalar_select %p447, %s29, 1
        %s449 = scalar_lea.vmem %s6, %s448
      $region36: #{vit_forward_pallas.4} parent=11 // pred_fallthru
        _
      // Predicated region
      $region37: #{vit_forward_pallas.4} parent=11 // pred_check
        %p450 = pneg %p239
      $region38: #{vit_forward_pallas.4} parent=11 // pred_check_branch
        %452 = sbr.rel (%p450) target = $region40
      $region39: #{vit_forward_pallas.4} parent=11 // pred_region
        %p453 = scmp.lt.s32.totalorder %s29, 1
        %s454 = scalar_select %p453, %s29, 1
        %s455 = scalar_lea.vmem %s7, %s454
      $region40: #{vit_forward_pallas.4} parent=11 // pred_fallthru
        _
      // Predicated region
      $region41: #{vit_forward_pallas.4} parent=11 // pred_check
        %p456 = pneg %p265
      $region42: #{vit_forward_pallas.4} parent=11 // pred_check_branch
        %458 = sbr.rel (%p456) target = $region44
      $region43: #{vit_forward_pallas.4} parent=11 // pred_region
        %p459 = scmp.lt.s32.totalorder %s29, 1
        %s460 = scalar_select %p459, %s29, 1
        %s461 = scalar_lea.vmem %s8, %s460
      $region44: #{vit_forward_pallas.4} parent=11 // pred_fallthru
        _
      // Predicated region
      $region45: #{vit_forward_pallas.4} parent=11 // pred_check
        %p462 = pneg %p291
      $region46: #{vit_forward_pallas.4} parent=11 // pred_check_branch
        %464 = sbr.rel (%p462) target = $region48
      $region47: #{vit_forward_pallas.4} parent=11 // pred_region
        %p465 = scmp.lt.s32.totalorder %s29, 1
        %s466 = scalar_select %p465, %s29, 1
        %s467 = smul.addr %s466, 4
        %s468 = smul.addr %s467, 4
        %s469 = scalar_lea.vmem %s9, %s468
      $region48: #{vit_forward_pallas.4} parent=11 // pred_fallthru
        _
      // Predicated region
      $region49: #{vit_forward_pallas.4} parent=11 // pred_check
        %p470 = pneg %p317
      $region50: #{vit_forward_pallas.4} parent=11 // pred_check_branch
        %472 = sbr.rel (%p470) target = $region52
      $region51: #{vit_forward_pallas.4} parent=11 // pred_region
        %p473 = scmp.lt.s32.totalorder %s29, 1
        %s474 = scalar_select %p473, %s29, 1
        %s475 = scalar_lea.vmem %s10, %s474
      $region52: #{vit_forward_pallas.4} parent=11 // pred_fallthru
        _
      // Predicated region
      $region53: #{vit_forward_pallas.4} parent=11 // pred_check
        %p476 = pneg %p343
      $region54: #{vit_forward_pallas.4} parent=11 // pred_check_branch
        %478 = sbr.rel (%p476) target = $region56
      $region55: #{vit_forward_pallas.4} parent=11 // pred_region
        %p479 = scmp.lt.s32.totalorder %s29, 1
        %s480 = scalar_select %p479, %s29, 1
        %s481 = smul.addr %s480, 16
        %s482 = smul.addr %s481, 4
        %s483 = scalar_lea.vmem %s11, %s482
      $region56: #{vit_forward_pallas.4} parent=11 // pred_fallthru
        _
      // Predicated region
      $region57: #{vit_forward_pallas.4} parent=11 // pred_check
        %p484 = pneg %p369
      $region58: #{vit_forward_pallas.4} parent=11 // pred_check_branch
        %486 = sbr.rel (%p484) target = $region60
      $region59: #{vit_forward_pallas.4} parent=11 // pred_region
        %p487 = scmp.lt.s32.totalorder %s29, 1
        %s488 = scalar_select %p487, %s29, 1
        %s489 = scalar_lea.vmem %s12, %s488
      $region60: #{vit_forward_pallas.4} parent=11 // pred_fallthru
        _
    $region12: #{vit_forward_pallas.4} parent=5 // pred_fallthru
      _
    %p490 = scmp.lt.s32.totalorder %s19, 2
    // Predicated region
    $region61: #{vit_forward_pallas.4} parent=5 // pred_check
      %p491 = pneg %p490
    $region62: #{vit_forward_pallas.4} parent=5 // pred_check_branch
      %493 = sbr.rel (%p491) target = $region64
    $region63: #{vit_forward_pallas.4} parent=5 // pred_region
      // Predicated region
      $region65: #{vit_forward_pallas.4} parent=63 // pred_check
        %p494 = pneg %p51
      $region66: #{vit_forward_pallas.4} parent=63 // pred_check_branch
        %496 = sbr.rel (%p494) target = $region68
      $region67: #{vit_forward_pallas.4} parent=63 // pred_region
        %p497 = scmp.lt.s32.totalorder %s26, 1
        %s498 = scalar_select %p497, %s26, 1
        %s499 = smul.addr %s498, 2
        %s500 = smul.addr %s499, 8
        %s501 = scalar_lea.vmem %s0, %s500
      $region68: #{vit_forward_pallas.4} parent=63 // pred_fallthru
        _
    $region64: #{vit_forward_pallas.4} parent=5 // pred_fallthru
      _
    %p502 = scmp.le.s32.totalorder 1, %s19
    %p503 = scmp.lt.s32.totalorder %s19, 3
    %p504 = pnand %p502, %p503
    %p505 = pneg %p504
    // Predicated region
    $region69: #{vit_forward_pallas.4} parent=5 // pred_check
      _
    $region70: #{vit_forward_pallas.4} parent=5 // pred_check_branch
      %507 = sbr.rel (%p504) target = $region72
    $region71: #{vit_forward_pallas.4} parent=5 // pred_region
      %s508 = ssub.s32 %s19, 1
      %p509 = scmp.lt.s32.totalorder %s28, 1
      %s510 = scalar_select %p509, %s28, 1
      %s511 = smul.addr %s510, 2
      %s512 = smul.addr %s511, 8
      %s513 = scalar_lea.vmem %s0, %s512
      %p514 = pneg %p57
      %p515 = pneg %p54
      %p516 = scmp.lt.s32.totalorder %s29, 1
      %s517 = scalar_select %p516, %s29, 1
      %s518 = scalar_lea.vmem %s1, %s517
      %p519 = pneg %p83
      %p520 = pneg %p80
      %p521 = scmp.lt.s32.totalorder %s29, 1
      %s522 = scalar_select %p521, %s29, 1
      %s523 = scalar_lea.vmem %s2, %s522
      %p524 = pneg %p109
      %p525 = pneg %p106
      %p526 = scmp.lt.s32.totalorder %s29, 1
      %s527 = scalar_select %p526, %s29, 1
      %s528 = smul.addr %s527, 4
      %s529 = smul.addr %s528, 4
      %s530 = scalar_lea.vmem %s3, %s529
      %p531 = pneg %p135
      %p532 = pneg %p132
      %p533 = scmp.lt.s32.totalorder %s29, 1
      %s534 = scalar_select %p533, %s29, 1
      %s535 = scalar_lea.vmem %s4, %s534
      %p536 = pneg %p161
      %p537 = pneg %p158
      %p538 = scmp.lt.s32.totalorder %s29, 1
      %s539 = scalar_select %p538, %s29, 1
      %s540 = smul.addr %s539, 4
      %s541 = smul.addr %s540, 4
      %s542 = scalar_lea.vmem %s5, %s541
      %p543 = pneg %p187
      %p544 = pneg %p184
      %p545 = scmp.lt.s32.totalorder %s29, 1
      %s546 = scalar_select %p545, %s29, 1
      %s547 = scalar_lea.vmem %s6, %s546
      %p548 = pneg %p213
      %p549 = pneg %p210
      %p550 = scmp.lt.s32.totalorder %s29, 1
      %s551 = scalar_select %p550, %s29, 1
      %s552 = scalar_lea.vmem %s7, %s551
      %p553 = pneg %p239
      %p554 = pneg %p236
      %p555 = scmp.lt.s32.totalorder %s29, 1
      %s556 = scalar_select %p555, %s29, 1
      %s557 = scalar_lea.vmem %s8, %s556
      %p558 = pneg %p265
      %p559 = pneg %p262
      %p560 = scmp.lt.s32.totalorder %s29, 1
      %s561 = scalar_select %p560, %s29, 1
      %s562 = smul.addr %s561, 4
      %s563 = smul.addr %s562, 4
      %s564 = scalar_lea.vmem %s9, %s563
      %p565 = pneg %p291
      %p566 = pneg %p288
      %p567 = scmp.lt.s32.totalorder %s29, 1
      %s568 = scalar_select %p567, %s29, 1
      %s569 = scalar_lea.vmem %s10, %s568
      %p570 = pneg %p317
      %p571 = pneg %p314
      %p572 = scmp.lt.s32.totalorder %s29, 1
      %s573 = scalar_select %p572, %s29, 1
      %s574 = smul.addr %s573, 16
      %s575 = smul.addr %s574, 4
      %s576 = scalar_lea.vmem %s11, %s575
      %p577 = pneg %p343
      %p578 = pneg %p340
      %p579 = scmp.lt.s32.totalorder %s29, 1
      %s580 = scalar_select %p579, %s29, 1
      %s581 = scalar_lea.vmem %s12, %s580
      %p582 = pneg %p369
      %p583 = pneg %p366
      %p584 = pneg %p395
      %p585 = pneg %p392
      %p586 = scmp.lt.s32.totalorder %s28, 1
      %s587 = scalar_select %p586, %s28, 1
      %s588 = smul.addr %s587, 2
      %s589 = smul.addr %s588, 8
      %s590 = scalar_lea.vmem %s13, %s589
      %p591 = scmp.lt.s32.totalorder %s28, 1
      %s592 = scalar_select %p591, %s28, 1
      %s593 = smul.addr %s592, 2
      %s594 = smul.addr %s593, 8
      %s595 = scalar_lea.vmem %s0, %s594
      %p596 = scmp.lt.s32.totalorder %s29, 1
      %s597 = scalar_select %p596, %s29, 1
      %s598 = scalar_lea.vmem %s1, %s597
      %p599 = scmp.lt.s32.totalorder %s29, 1
      %s600 = scalar_select %p599, %s29, 1
      %s601 = scalar_lea.vmem %s2, %s600
      %p602 = scmp.lt.s32.totalorder %s29, 1
      %s603 = scalar_select %p602, %s29, 1
      %s604 = smul.addr %s603, 4
      %s605 = smul.addr %s604, 4
      %s606 = scalar_lea.vmem %s3, %s605
      %p607 = scmp.lt.s32.totalorder %s29, 1
      %s608 = scalar_select %p607, %s29, 1
      %s609 = scalar_lea.vmem %s4, %s608
      %p610 = scmp.lt.s32.totalorder %s29, 1
      %s611 = scalar_select %p610, %s29, 1
      %s612 = smul.addr %s611, 4
      %s613 = smul.addr %s612, 4
      %s614 = scalar_lea.vmem %s5, %s613
      %p615 = scmp.lt.s32.totalorder %s29, 1
      %s616 = scalar_select %p615, %s29, 1
      %s617 = scalar_lea.vmem %s6, %s616
      %p618 = scmp.lt.s32.totalorder %s29, 1
      %s619 = scalar_select %p618, %s29, 1
      %s620 = scalar_lea.vmem %s7, %s619
      %p621 = scmp.lt.s32.totalorder %s29, 1
      %s622 = scalar_select %p621, %s29, 1
      %s623 = scalar_lea.vmem %s8, %s622
      %p624 = scmp.lt.s32.totalorder %s29, 1
      %s625 = scalar_select %p624, %s29, 1
      %s626 = smul.addr %s625, 4
      %s627 = smul.addr %s626, 4
      %s628 = scalar_lea.vmem %s9, %s627
      %p629 = scmp.lt.s32.totalorder %s29, 1
      %s630 = scalar_select %p629, %s29, 1
      %s631 = scalar_lea.vmem %s10, %s630
      %p632 = scmp.lt.s32.totalorder %s29, 1
      %s633 = scalar_select %p632, %s29, 1
      %s634 = smul.addr %s633, 16
      %s635 = smul.addr %s634, 4
      %s636 = scalar_lea.vmem %s11, %s635
      %p637 = scmp.lt.s32.totalorder %s29, 1
      %s638 = scalar_select %p637, %s29, 1
      %s639 = scalar_lea.vmem %s12, %s638
      %p640 = scmp.lt.s32.totalorder %s28, 1
      %s641 = scalar_select %p640, %s28, 1
      %s642 = smul.addr %s641, 2
      %s643 = smul.addr %s642, 8
      %s644 = scalar_lea.vmem %s13, %s643
      %p646 = scmp.eq.s32.totalorder %s29, 0
      // Predicated region
      $region73: #{vit_forward_pallas.4} parent=71 // pred_check
        %p647 = pneg %p646
      $region74: #{vit_forward_pallas.4} parent=71 // pred_check_branch
        %649 = sbr.rel (%p647) target = $region76
      $region75: #{vit_forward_pallas.4} parent=71 // pred_region
        %v650 = vld [vmem:[%s595] sm:$0xff]
        %v651 = vld [vmem:[%s595 + $0x8] sm:$0xff]
        %vm652 = vcmask 261120
        %653 = vst.msk [vmem:[%s644] sm:$0xff] %vm652, %v650
        %654 = vst.msk [vmem:[%s644 + $0x8] sm:$0xff] %vm652, %v651
      $region76: #{vit_forward_pallas.4} parent=71 // pred_fallthru
        _
      %v655 = vld [vmem:[%s644] sm:$0xff]
      %v656 = vld [vmem:[%s644 + $0x8] sm:$0xff]
      %v657 = vld [vmem:[%s598] sm:$0x1]
      %v658 = vld [vmem:[%s601] sm:$0x1]
      %vm659 = vcmask 261120
      %v660 = vsel %vm659, %v655, 0.0
      %661 = vadd.xlane.f32.xlu0 %v660
      %v662 = vpop.xlane.xlu0 %661
      %v663 = vsel %vm659, %v656, 0.0
      %664 = vadd.xlane.f32.xlu0 %v663
      %v665 = vpop.xlane.xlu0 %664
      %v666 = vrcp.pop 32.0
      %v667 = vmul.f32 32.0, %v666
      %v668 = vsub.f32 1.0, %v667
      %v669 = vmul.f32 %v666, %v668
      %v670 = vadd.f32 %v666, %v669
      %vm671 = vweird.f32 %v666
      %v672 = vsel %vm671, %v666, %v670
      %v673 = vmul.f32 %v662, %v672
      %v674 = vmul.f32 %v665, %v672
      %v675 = vsub.f32 %v655, %v673
      %v676 = vsub.f32 %v656, %v674
      %v677 = vmul.f32 %v675, %v675
      %v678 = vmul.f32 %v676, %v676
      %v679 = vsel %vm659, %v677, 0.0
      %680 = vadd.xlane.f32.xlu0 %v679
      %v681 = vpop.xlane.xlu0 %680
      %v682 = vsel %vm659, %v678, 0.0
      %683 = vadd.xlane.f32.xlu0 %v682
      %v684 = vpop.xlane.xlu0 %683
      %v685 = vmul.f32 %v681, %v672
      %v686 = vmul.f32 %v684, %v672
      %v687 = vadd.f32 %v685, 1e-05
      %v688 = vadd.f32 %v686, 1e-05
      %v689 = vrsqrt.pop %v687
      %v690 = vmul.f32 %v689, %v687
      %v691 = vmul.f32 %v690, %v689
      %v692 = vmul.f32 0.5, %v691
      %v693 = vsub.f32 1.5, %v692
      %v694 = vmul.f32 %v689, %v693
      %vm695 = vweird.f32 %v687
      %vm696 = vweird.f32 %v689
      %vm697 = vmor %vm695, %vm696
      %v698 = vsel %vm697, %v689, %v694
      %v699 = vrsqrt.pop %v688
      %v700 = vmul.f32 %v699, %v688
      %v701 = vmul.f32 %v700, %v699
      %v702 = vmul.f32 0.5, %v701
      %v703 = vsub.f32 1.5, %v702
      %v704 = vmul.f32 %v699, %v703
      %vm705 = vweird.f32 %v688
      %vm706 = vweird.f32 %v699
      %vm707 = vmor %vm705, %vm706
      %v708 = vsel %vm707, %v699, %v704
      %v709 = vmul.f32 %v675, %v698
      %v710 = vmul.f32 %v676, %v708
      %v712 = vperm.slane %v657, 0
      %v714 = vmul.f32 %v709, %v712
      %v715 = vmul.f32 %v710, %v712
      %v717 = vperm.slane %v658, 0
      %v719 = vadd.f32 %v714, %v717
      %v720 = vadd.f32 %v715, %v717
      %v721 = vpack.c.bf16 %v720, %v719
      %v722 = vld [vmem:[%s606] sm:$0xf]
      %v723 = vld [vmem:[%s606 + $0x4] sm:$0xf]
      %v724 = vld [vmem:[%s606 + $0x8] sm:$0xf]
      %v725 = vld [vmem:[%s606 + $0xc] sm:$0xf]
      %v726 = vld [vmem:[%s609] sm:$0x1]
      %v728 = vperm.slane %v726, 0
      %v734 = vunpack.c.l.b16 %v722
      %v735 = vunpack.c.l.b16 %v723
      %v736 = vunpack.c.l.b16 %v724
      %v737 = vunpack.c.l.b16 %v725
      %v738 = vpack.c.b16 %v735, %v734
      %v739 = vpack.c.b16 %v737, %v736
      %v743 = vsel %vm659, %v721, 0
      %745 = vmatpush.bf16.msra.mxu0 0
      %746 = vmatpush.bf16.msra.mxu0 0
      %747 = vmatpush.bf16.msra.mxu0 0
      %748 = vmatpush.bf16.msra.mxu0 0
      %749 = vmatpush.bf16.msra.mxu0 0
      %750 = vmatpush.bf16.msra.mxu0 0
      %751 = vmatpush.bf16.msra.mxu0 %v739
      %752 = vmatpush.bf16.msra.mxu0 %v738
      %753 = vmatmul.bf16.gmra.mxu0 %v743
      %v754 = vpop.f32.mrf.mxu0
      %v755 = vadd.f32 %v728, %v754
      %v756 = vpop.f32.mrf.mxu0
      %v757 = vadd.f32 %v728, %v756
      %758 = vdwg.mxu0
      %v759 = vmul.f32 %v755, 0.35355338
      %v760 = vmul.f32 %v757, 0.35355338
      %v761 = vpack.c.bf16 %v759, %v759
      %v762 = vpack.c.bf16 %v760, %v760
      %v763 = vpack.c.bf16 %v755, %v755
      %v764 = vpack.c.bf16 %v757, %v757
      %v765 = vlaneseq
      %v766 = vand.u32 %v765, 127
      %vm767 = vcmp.lt.s32.totalorder %v766, 5
      %v770 = vunpack.c.l.b16 %v761
      %v771 = vunpack.c.l.b16 %v762
      %v772 = vpack.c.b16 %v771, %v770
      %v775 = vunpack.c.l.b16 %v763
      %v776 = vunpack.c.l.b16 %v764
      %v777 = vpack.c.b16 %v776, %v775
      %778 = vrot.lane.b32.xlu0 %v777, 96
      %v779 = vpop.permute.xlu0 %778
      %vm780 = vcmask 64512
      %v782 = vsel %vm780, %v772, 0
      %v785 = vsel %vm780, %v779, 0
      %787 = vmatpush.bf16.xpose.msra.mxu0 0
      %788 = vmatpush.bf16.xpose.msra.mxu0 0
      %789 = vmatpush.bf16.xpose.msra.mxu0 0
      %790 = vmatpush.bf16.xpose.msra.mxu0 0
      %791 = vmatpush.bf16.xpose.msra.mxu0 0
      %792 = vmatpush.bf16.xpose.msra.mxu0 0
      %793 = vmatpush.bf16.xpose.msra.mxu0 0
      %794 = vmatpush.bf16.xpose.msra.mxu0 %v785
      %795 = vmatmul.bf16.gmra.mxu0 %v782
      %v796 = vpop.f32.mrf.mxu0
      %v797 = vadd.f32 0.0, %v796
      %v798 = vpop.f32.mrf.mxu0
      %v799 = vadd.f32 0.0, %v798
      %800 = vdwg.mxu0
      %v801 = vsel %vm767, %v797, -1e+30
      %v802 = vsel %vm767, %v799, -1e+30
      %vm803 = vcmask 130048
      %v804 = vsel %vm803, %v801, -inf
      %805 = vmax.xlane.f32.xlu0 %v804
      %v806 = vpop.xlane.xlu0 %805
      %v807 = vsel %vm803, %v802, -inf
      %808 = vmax.xlane.f32.xlu0 %v807
      %v809 = vpop.xlane.xlu0 %808
      %v810 = vsub.f32 %v801, %v806
      %v811 = vsub.f32 %v802, %v809
      %v812 = vmul.f32 %v810, 1.442695
      %v813 = vpow.pop %v812
      %v814 = vmul.f32 %v811, 1.442695
      %v815 = vpow.pop %v814
      %v816 = vsel %vm803, %v813, 0.0
      %817 = vadd.xlane.f32.xlu0 %v816
      %v818 = vpop.xlane.xlu0 %817
      %v819 = vsel %vm803, %v815, 0.0
      %820 = vadd.xlane.f32.xlu0 %v819
      %v821 = vpop.xlane.xlu0 %820
      %v822 = vrcp.pop %v818
      %v823 = vrcp.pop %v821
      %v824 = vmul.f32 %v813, %v822
      %v825 = vmul.f32 %v815, %v823
      %v826 = vpack.c.bf16 %v825, %v824
      %827 = vrot.lane.b32.xlu0 %v777, 64
      %v828 = vpop.permute.xlu0 %827
      %v831 = vsel %vm803, %v826, 0
      %833 = vmatpush.bf16.msra.mxu0 0
      %834 = vmatpush.bf16.msra.mxu0 0
      %835 = vmatpush.bf16.msra.mxu0 0
      %836 = vmatpush.bf16.msra.mxu0 0
      %837 = vmatpush.bf16.msra.mxu0 0
      %838 = vmatpush.bf16.msra.mxu0 0
      %839 = vmatpush.bf16.msra.mxu0 0
      %840 = vmatpush.bf16.msra.mxu0 %v828
      %841 = vmatmul.bf16.gmra.mxu0 %v831
      %v842 = vpop.f32.mrf.mxu0
      %v843 = vadd.f32 0.0, %v842
      %v844 = vpop.f32.mrf.mxu0
      %v845 = vadd.f32 0.0, %v844
      %846 = vdwg.mxu0
      %847 = vst.msk [vmem:[#allocation2] sm:$0xff] %vm780, %v843
      %848 = vst.msk [vmem:[#allocation2 + $0x8] sm:$0xff] %vm780, %v845
      %849 = vrot.lane.b32.xlu0 %v772, 120
      %v850 = vpop.permute.xlu0 %849
      %851 = vrot.lane.b32.xlu0 %v777, 88
      %v852 = vpop.permute.xlu0 %851
      %v854 = vsel %vm780, %v850, 0
      %v857 = vsel %vm780, %v852, 0
      %859 = vmatpush.bf16.xpose.msra.mxu0 0
      %860 = vmatpush.bf16.xpose.msra.mxu0 0
      %861 = vmatpush.bf16.xpose.msra.mxu0 0
      %862 = vmatpush.bf16.xpose.msra.mxu0 0
      %863 = vmatpush.bf16.xpose.msra.mxu0 0
      %864 = vmatpush.bf16.xpose.msra.mxu0 0
      %865 = vmatpush.bf16.xpose.msra.mxu0 0
      %866 = vmatpush.bf16.xpose.msra.mxu0 %v857
      %867 = vmatmul.bf16.gmra.mxu0 %v854
      %v868 = vpop.f32.mrf.mxu0
      %v869 = vadd.f32 0.0, %v868
      %v870 = vpop.f32.mrf.mxu0
      %v871 = vadd.f32 0.0, %v870
      %872 = vdwg.mxu0
      %v873 = vsel %vm767, %v869, -1e+30
      %v874 = vsel %vm767, %v871, -1e+30
      %v875 = vsel %vm803, %v873, -inf
      %876 = vmax.xlane.f32.xlu0 %v875
      %v877 = vpop.xlane.xlu0 %876
      %v878 = vsel %vm803, %v874, -inf
      %879 = vmax.xlane.f32.xlu0 %v878
      %v880 = vpop.xlane.xlu0 %879
      %v881 = vsub.f32 %v873, %v877
      %v882 = vsub.f32 %v874, %v880
      %v883 = vmul.f32 %v881, 1.442695
      %v884 = vpow.pop %v883
      %v885 = vmul.f32 %v882, 1.442695
      %v886 = vpow.pop %v885
      %v887 = vsel %vm803, %v884, 0.0
      %888 = vadd.xlane.f32.xlu0 %v887
      %v889 = vpop.xlane.xlu0 %888
      %v890 = vsel %vm803, %v886, 0.0
      %891 = vadd.xlane.f32.xlu0 %v890
      %v892 = vpop.xlane.xlu0 %891
      %v893 = vrcp.pop %v889
      %v894 = vrcp.pop %v892
      %v895 = vmul.f32 %v884, %v893
      %v896 = vmul.f32 %v886, %v894
      %v897 = vpack.c.bf16 %v896, %v895
      %898 = vrot.lane.b32.xlu0 %v777, 56
      %v899 = vpop.permute.xlu0 %898
      %v902 = vsel %vm803, %v897, 0
      %904 = vmatpush.bf16.msra.mxu0 0
      %905 = vmatpush.bf16.msra.mxu0 0
      %906 = vmatpush.bf16.msra.mxu0 0
      %907 = vmatpush.bf16.msra.mxu0 0
      %908 = vmatpush.bf16.msra.mxu0 0
      %909 = vmatpush.bf16.msra.mxu0 0
      %910 = vmatpush.bf16.msra.mxu0 0
      %911 = vmatpush.bf16.msra.mxu0 %v899
      %912 = vmatmul.bf16.gmra.mxu0 %v902
      %v913 = vpop.f32.mrf.mxu0
      %v914 = vadd.f32 0.0, %v913
      %v915 = vpop.f32.mrf.mxu0
      %v916 = vadd.f32 0.0, %v915
      %917 = vdwg.mxu0
      %920 = vrot.lane.b32.xlu0 %v914, 8
      %v921 = vpop.permute.xlu0 %920
      %922 = vrot.lane.b32.xlu0 %v916, 8
      %v923 = vpop.permute.xlu0 %922
      %vm926 = vcmask 130112
      %927 = vst.msk [vmem:[#allocation2] sm:$0xff] %vm926, %v921
      %928 = vst.msk [vmem:[#allocation2 + $0x8] sm:$0xff] %vm926, %v923
      %929 = vrot.lane.b32.xlu0 %v772, 112
      %v930 = vpop.permute.xlu0 %929
      %931 = vrot.lane.b32.xlu0 %v777, 80
      %v932 = vpop.permute.xlu0 %931
      %v934 = vsel %vm780, %v930, 0
      %v937 = vsel %vm780, %v932, 0
      %939 = vmatpush.bf16.xpose.msra.mxu0 0
      %940 = vmatpush.bf16.xpose.msra.mxu0 0
      %941 = vmatpush.bf16.xpose.msra.mxu0 0
      %942 = vmatpush.bf16.xpose.msra.mxu0 0
      %943 = vmatpush.bf16.xpose.msra.mxu0 0
      %944 = vmatpush.bf16.xpose.msra.mxu0 0
      %945 = vmatpush.bf16.xpose.msra.mxu0 0
      %946 = vmatpush.bf16.xpose.msra.mxu0 %v937
      %947 = vmatmul.bf16.gmra.mxu0 %v934
      %v948 = vpop.f32.mrf.mxu0
      %v949 = vadd.f32 0.0, %v948
      %v950 = vpop.f32.mrf.mxu0
      %v951 = vadd.f32 0.0, %v950
      %952 = vdwg.mxu0
      %v953 = vsel %vm767, %v949, -1e+30
      %v954 = vsel %vm767, %v951, -1e+30
      %v955 = vsel %vm803, %v953, -inf
      %956 = vmax.xlane.f32.xlu0 %v955
      %v957 = vpop.xlane.xlu0 %956
      %v958 = vsel %vm803, %v954, -inf
      %959 = vmax.xlane.f32.xlu0 %v958
      %v960 = vpop.xlane.xlu0 %959
      %v961 = vsub.f32 %v953, %v957
      %v962 = vsub.f32 %v954, %v960
      %v963 = vmul.f32 %v961, 1.442695
      %v964 = vpow.pop %v963
      %v965 = vmul.f32 %v962, 1.442695
      %v966 = vpow.pop %v965
      %v967 = vsel %vm803, %v964, 0.0
      %968 = vadd.xlane.f32.xlu0 %v967
      %v969 = vpop.xlane.xlu0 %968
      %v970 = vsel %vm803, %v966, 0.0
      %971 = vadd.xlane.f32.xlu0 %v970
      %v972 = vpop.xlane.xlu0 %971
      %v973 = vrcp.pop %v969
      %v974 = vrcp.pop %v972
      %v975 = vmul.f32 %v964, %v973
      %v976 = vmul.f32 %v966, %v974
      %v977 = vpack.c.bf16 %v976, %v975
      %978 = vrot.lane.b32.xlu0 %v777, 48
      %v979 = vpop.permute.xlu0 %978
      %v982 = vsel %vm803, %v977, 0
      %984 = vmatpush.bf16.msra.mxu0 0
      %985 = vmatpush.bf16.msra.mxu0 0
      %986 = vmatpush.bf16.msra.mxu0 0
      %987 = vmatpush.bf16.msra.mxu0 0
      %988 = vmatpush.bf16.msra.mxu0 0
      %989 = vmatpush.bf16.msra.mxu0 0
      %990 = vmatpush.bf16.msra.mxu0 0
      %991 = vmatpush.bf16.msra.mxu0 %v979
      %992 = vmatmul.bf16.gmra.mxu0 %v982
      %v993 = vpop.f32.mrf.mxu0
      %v994 = vadd.f32 0.0, %v993
      %v995 = vpop.f32.mrf.mxu0
      %v996 = vadd.f32 0.0, %v995
      %997 = vdwg.mxu0
      %1000 = vrot.lane.b32.xlu0 %v994, 16
      %v1001 = vpop.permute.xlu0 %1000
      %1002 = vrot.lane.b32.xlu0 %v996, 16
      %v1003 = vpop.permute.xlu0 %1002
      %vm1006 = vcmask 195712
      %1007 = vst.msk [vmem:[#allocation2] sm:$0xff] %vm1006, %v1001
      %1008 = vst.msk [vmem:[#allocation2 + $0x8] sm:$0xff] %vm1006, %v1003
      %1009 = vrot.lane.b32.xlu0 %v772, 104
      %v1010 = vpop.permute.xlu0 %1009
      %1011 = vrot.lane.b32.xlu0 %v777, 72
      %v1012 = vpop.permute.xlu0 %1011
      %v1014 = vsel %vm780, %v1010, 0
      %v1017 = vsel %vm780, %v1012, 0
      %1019 = vmatpush.bf16.xpose.msra.mxu0 0
      %1020 = vmatpush.bf16.xpose.msra.mxu0 0
      %1021 = vmatpush.bf16.xpose.msra.mxu0 0
      %1022 = vmatpush.bf16.xpose.msra.mxu0 0
      %1023 = vmatpush.bf16.xpose.msra.mxu0 0
      %1024 = vmatpush.bf16.xpose.msra.mxu0 0
      %1025 = vmatpush.bf16.xpose.msra.mxu0 0
      %1026 = vmatpush.bf16.xpose.msra.mxu0 %v1017
      %1027 = vmatmul.bf16.gmra.mxu0 %v1014
      %v1028 = vpop.f32.mrf.mxu0
      %v1029 = vadd.f32 0.0, %v1028
      %v1030 = vpop.f32.mrf.mxu0
      %v1031 = vadd.f32 0.0, %v1030
      %1032 = vdwg.mxu0
      %v1033 = vsel %vm767, %v1029, -1e+30
      %v1034 = vsel %vm767, %v1031, -1e+30
      %v1035 = vsel %vm803, %v1033, -inf
      %1036 = vmax.xlane.f32.xlu0 %v1035
      %v1037 = vpop.xlane.xlu0 %1036
      %v1038 = vsel %vm803, %v1034, -inf
      %1039 = vmax.xlane.f32.xlu0 %v1038
      %v1040 = vpop.xlane.xlu0 %1039
      %v1041 = vsub.f32 %v1033, %v1037
      %v1042 = vsub.f32 %v1034, %v1040
      %v1043 = vmul.f32 %v1041, 1.442695
      %v1044 = vpow.pop %v1043
      %v1045 = vmul.f32 %v1042, 1.442695
      %v1046 = vpow.pop %v1045
      %v1047 = vsel %vm803, %v1044, 0.0
      %1048 = vadd.xlane.f32.xlu0 %v1047
      %v1049 = vpop.xlane.xlu0 %1048
      %v1050 = vsel %vm803, %v1046, 0.0
      %1051 = vadd.xlane.f32.xlu0 %v1050
      %v1052 = vpop.xlane.xlu0 %1051
      %v1053 = vrcp.pop %v1049
      %v1054 = vrcp.pop %v1052
      %v1055 = vmul.f32 %v1044, %v1053
      %v1056 = vmul.f32 %v1046, %v1054
      %v1057 = vpack.c.bf16 %v1056, %v1055
      %1058 = vrot.lane.b32.xlu0 %v777, 40
      %v1059 = vpop.permute.xlu0 %1058
      %v1062 = vsel %vm803, %v1057, 0
      %1064 = vmatpush.bf16.msra.mxu0 0
      %1065 = vmatpush.bf16.msra.mxu0 0
      %1066 = vmatpush.bf16.msra.mxu0 0
      %1067 = vmatpush.bf16.msra.mxu0 0
      %1068 = vmatpush.bf16.msra.mxu0 0
      %1069 = vmatpush.bf16.msra.mxu0 0
      %1070 = vmatpush.bf16.msra.mxu0 0
      %1071 = vmatpush.bf16.msra.mxu0 %v1059
      %1072 = vmatmul.bf16.gmra.mxu0 %v1062
      %v1073 = vpop.f32.mrf.mxu0
      %v1074 = vadd.f32 0.0, %v1073
      %v1075 = vpop.f32.mrf.mxu0
      %v1076 = vadd.f32 0.0, %v1075
      %1077 = vdwg.mxu0
      %1080 = vrot.lane.b32.xlu0 %v1074, 24
      %v1081 = vpop.permute.xlu0 %1080
      %1082 = vrot.lane.b32.xlu0 %v1076, 24
      %v1083 = vpop.permute.xlu0 %1082
      %vm1086 = vcmask 261312
      %1087 = vst.msk [vmem:[#allocation2] sm:$0xff] %vm1086, %v1081
      %1088 = vst.msk [vmem:[#allocation2 + $0x8] sm:$0xff] %vm1086, %v1083
      %v1089 = vld [vmem:[#allocation2] sm:$0xff]
      %v1090 = vld [vmem:[#allocation2 + $0x8] sm:$0xff]
      %v1091 = vpack.c.bf16 %v1090, %v1089
      %v1092 = vld [vmem:[%s614] sm:$0xf]
      %v1093 = vld [vmem:[%s614 + $0x4] sm:$0xf]
      %v1094 = vld [vmem:[%s614 + $0x8] sm:$0xf]
      %v1095 = vld [vmem:[%s614 + $0xc] sm:$0xf]
      %v1096 = vld [vmem:[%s617] sm:$0x1]
      %v1098 = vperm.slane %v1096, 0
      %v1104 = vunpack.c.l.b16 %v1092
      %v1105 = vunpack.c.l.b16 %v1093
      %v1106 = vunpack.c.l.b16 %v1094
      %v1107 = vunpack.c.l.b16 %v1095
      %v1108 = vpack.c.b16 %v1105, %v1104
      %v1109 = vpack.c.b16 %v1107, %v1106
      %v1113 = vsel %vm659, %v1091, 0
      %1115 = vmatpush.bf16.msra.mxu0 0
      %1116 = vmatpush.bf16.msra.mxu0 0
      %1117 = vmatpush.bf16.msra.mxu0 0
      %1118 = vmatpush.bf16.msra.mxu0 0
      %1119 = vmatpush.bf16.msra.mxu0 0
      %1120 = vmatpush.bf16.msra.mxu0 0
      %1121 = vmatpush.bf16.msra.mxu0 %v1109
      %1122 = vmatpush.bf16.msra.mxu0 %v1108
      %1123 = vmatmul.bf16.gmra.mxu0 %v1113
      %v1124 = vpop.f32.mrf.mxu0
      %v1125 = vadd.f32 %v1098, %v1124
      %v1126 = vpop.f32.mrf.mxu0
      %v1127 = vadd.f32 %v1098, %v1126
      %1128 = vdwg.mxu0
      %v1129 = vadd.f32 %v655, %v1125
      %v1130 = vadd.f32 %v656, %v1127
      %v1131 = vld [vmem:[%s620] sm:$0x1]
      %v1132 = vld [vmem:[%s623] sm:$0x1]
      %v1133 = vsel %vm659, %v1129, 0.0
      %1134 = vadd.xlane.f32.xlu0 %v1133
      %v1135 = vpop.xlane.xlu0 %1134
      %v1136 = vsel %vm659, %v1130, 0.0
      %1137 = vadd.xlane.f32.xlu0 %v1136
      %v1138 = vpop.xlane.xlu0 %1137
      %v1139 = vmul.f32 %v1135, %v672
      %v1140 = vmul.f32 %v1138, %v672
      %v1141 = vsub.f32 %v1129, %v1139
      %v1142 = vsub.f32 %v1130, %v1140
      %v1143 = vmul.f32 %v1141, %v1141
      %v1144 = vmul.f32 %v1142, %v1142
      %v1145 = vsel %vm659, %v1143, 0.0
      %1146 = vadd.xlane.f32.xlu0 %v1145
      %v1147 = vpop.xlane.xlu0 %1146
      %v1148 = vsel %vm659, %v1144, 0.0
      %1149 = vadd.xlane.f32.xlu0 %v1148
      %v1150 = vpop.xlane.xlu0 %1149
      %v1151 = vmul.f32 %v1147, %v672
      %v1152 = vmul.f32 %v1150, %v672
      %v1153 = vadd.f32 %v1151, 1e-05
      %v1154 = vadd.f32 %v1152, 1e-05
      %v1155 = vrsqrt.pop %v1153
      %v1156 = vmul.f32 %v1155, %v1153
      %v1157 = vmul.f32 %v1156, %v1155
      %v1158 = vmul.f32 0.5, %v1157
      %v1159 = vsub.f32 1.5, %v1158
      %v1160 = vmul.f32 %v1155, %v1159
      %vm1161 = vweird.f32 %v1153
      %vm1162 = vweird.f32 %v1155
      %vm1163 = vmor %vm1161, %vm1162
      %v1164 = vsel %vm1163, %v1155, %v1160
      %v1165 = vrsqrt.pop %v1154
      %v1166 = vmul.f32 %v1165, %v1154
      %v1167 = vmul.f32 %v1166, %v1165
      %v1168 = vmul.f32 0.5, %v1167
      %v1169 = vsub.f32 1.5, %v1168
      %v1170 = vmul.f32 %v1165, %v1169
      %vm1171 = vweird.f32 %v1154
      %vm1172 = vweird.f32 %v1165
      %vm1173 = vmor %vm1171, %vm1172
      %v1174 = vsel %vm1173, %v1165, %v1170
      %v1175 = vmul.f32 %v1141, %v1164
      %v1176 = vmul.f32 %v1142, %v1174
      %v1178 = vperm.slane %v1131, 0
      %v1180 = vmul.f32 %v1175, %v1178
      %v1181 = vmul.f32 %v1176, %v1178
      %v1183 = vperm.slane %v1132, 0
      %v1185 = vadd.f32 %v1180, %v1183
      %v1186 = vadd.f32 %v1181, %v1183
      %v1187 = vpack.c.bf16 %v1186, %v1185
      %v1188 = vld [vmem:[%s628] sm:$0xf]
      %v1189 = vld [vmem:[%s628 + $0x4] sm:$0xf]
      %v1190 = vld [vmem:[%s628 + $0x8] sm:$0xf]
      %v1191 = vld [vmem:[%s628 + $0xc] sm:$0xf]
      %v1192 = vld [vmem:[%s631] sm:$0x1]
      %v1194 = vperm.slane %v1192, 0
      %v1200 = vunpack.c.l.b16 %v1188
      %v1201 = vunpack.c.l.b16 %v1189
      %v1202 = vunpack.c.l.b16 %v1190
      %v1203 = vunpack.c.l.b16 %v1191
      %v1204 = vpack.c.b16 %v1201, %v1200
      %v1205 = vpack.c.b16 %v1203, %v1202
      %v1209 = vsel %vm659, %v1187, 0
      %1211 = vmatpush.bf16.msra.mxu0 0
      %1212 = vmatpush.bf16.msra.mxu0 0
      %1213 = vmatpush.bf16.msra.mxu0 0
      %1214 = vmatpush.bf16.msra.mxu0 0
      %1215 = vmatpush.bf16.msra.mxu0 0
      %1216 = vmatpush.bf16.msra.mxu0 0
      %1217 = vmatpush.bf16.msra.mxu0 %v1205
      %1218 = vmatpush.bf16.msra.mxu0 %v1204
      %1219 = vmatmul.bf16.gmra.mxu0 %v1209
      %v1220 = vpop.f32.mrf.mxu0
      %v1221 = vadd.f32 %v1194, %v1220
      %v1222 = vpop.f32.mrf.mxu0
      %v1223 = vadd.f32 %v1194, %v1222
      %1224 = vdwg.mxu0
      %v1225 = vmul.f32 %v1221, 1.702
      %v1226 = vmul.f32 %v1223, 1.702
      %v1227 = vxor.u32 %v1225, 2147483648
      %v1228 = vxor.u32 %v1226, 2147483648
      %v1229 = vmul.f32 %v1227, 1.442695
      %v1230 = vpow.pop %v1229
      %v1231 = vmul.f32 %v1228, 1.442695
      %v1232 = vpow.pop %v1231
      %v1233 = vadd.f32 %v1230, 1.0
      %v1234 = vadd.f32 %v1232, 1.0
      %v1235 = vrcp.pop %v1233
      %v1236 = vmul.f32 %v1233, %v1235
      %v1237 = vsub.f32 1.0, %v1236
      %v1238 = vmul.f32 %v1235, %v1237
      %v1239 = vadd.f32 %v1235, %v1238
      %vm1240 = vweird.f32 %v1233
      %vm1241 = vweird.f32 %v1235
      %vm1242 = vmor %vm1240, %vm1241
      %v1243 = vsel %vm1242, %v1235, %v1239
      %v1244 = vand.u32 2147483647, %v1233
      %vm1245 = vcmp.eq.f32.partialorder %v1244, 8.507059e+37
      %v1246 = vand.u32 %v1233, 2147483648
      %v1247 = vor.u32 1.1754944e-38, %v1246
      %v1248 = vsel %vm1245, %v1247, %v1243
      %v1249 = vmul.f32 1.0, %v1248
      %v1250 = vrcp.pop %v1234
      %v1251 = vmul.f32 %v1234, %v1250
      %v1252 = vsub.f32 1.0, %v1251
      %v1253 = vmul.f32 %v1250, %v1252
      %v1254 = vadd.f32 %v1250, %v1253
      %vm1255 = vweird.f32 %v1234
      %vm1256 = vweird.f32 %v1250
      %vm1257 = vmor %vm1255, %vm1256
      %v1258 = vsel %vm1257, %v1250, %v1254
      %v1259 = vand.u32 2147483647, %v1234
      %vm1260 = vcmp.eq.f32.partialorder %v1259, 8.507059e+37
      %v1261 = vand.u32 %v1234, 2147483648
      %v1262 = vor.u32 1.1754944e-38, %v1261
      %v1263 = vsel %vm1260, %v1262, %v1258
      %v1264 = vmul.f32 1.0, %v1263
      %v1265 = vmul.f32 %v1221, %v1249
      %v1266 = vmul.f32 %v1223, %v1264
      %v1267 = vpack.c.bf16 %v1266, %v1265
      %v1268 = vld [vmem:[%s636] sm:$0xf]
      %v1269 = vld [vmem:[%s636 + $0x4] sm:$0xf]
      %v1270 = vld [vmem:[%s636 + $0x8] sm:$0xf]
      %v1271 = vld [vmem:[%s636 + $0xc] sm:$0xf]
      %v1272 = vld [vmem:[%s636 + $0x10] sm:$0xf]
      %v1273 = vld [vmem:[%s636 + $0x14] sm:$0xf]
      %v1274 = vld [vmem:[%s636 + $0x18] sm:$0xf]
      %v1275 = vld [vmem:[%s636 + $0x1c] sm:$0xf]
      %v1276 = vld [vmem:[%s636 + $0x20] sm:$0xf]
      %v1277 = vld [vmem:[%s636 + $0x24] sm:$0xf]
      %v1278 = vld [vmem:[%s636 + $0x28] sm:$0xf]
      %v1279 = vld [vmem:[%s636 + $0x2c] sm:$0xf]
      %v1280 = vld [vmem:[%s636 + $0x30] sm:$0xf]
      %v1281 = vld [vmem:[%s636 + $0x34] sm:$0xf]
      %v1282 = vld [vmem:[%s636 + $0x38] sm:$0xf]
      %v1283 = vld [vmem:[%s636 + $0x3c] sm:$0xf]
      %v1284 = vld [vmem:[%s639] sm:$0x1]
      %v1286 = vperm.slane %v1284, 0
      %v1304 = vunpack.c.l.b16 %v1268
      %v1305 = vunpack.c.l.b16 %v1269
      %v1306 = vunpack.c.l.b16 %v1270
      %v1307 = vunpack.c.l.b16 %v1271
      %v1308 = vunpack.c.l.b16 %v1272
      %v1309 = vunpack.c.l.b16 %v1273
      %v1310 = vunpack.c.l.b16 %v1274
      %v1311 = vunpack.c.l.b16 %v1275
      %v1312 = vunpack.c.l.b16 %v1276
      %v1313 = vunpack.c.l.b16 %v1277
      %v1314 = vunpack.c.l.b16 %v1278
      %v1315 = vunpack.c.l.b16 %v1279
      %v1316 = vunpack.c.l.b16 %v1280
      %v1317 = vunpack.c.l.b16 %v1281
      %v1318 = vunpack.c.l.b16 %v1282
      %v1319 = vunpack.c.l.b16 %v1283
      %v1320 = vpack.c.b16 %v1305, %v1304
      %v1321 = vpack.c.b16 %v1307, %v1306
      %v1322 = vpack.c.b16 %v1309, %v1308
      %v1323 = vpack.c.b16 %v1311, %v1310
      %v1324 = vpack.c.b16 %v1313, %v1312
      %v1325 = vpack.c.b16 %v1315, %v1314
      %v1326 = vpack.c.b16 %v1317, %v1316
      %v1327 = vpack.c.b16 %v1319, %v1318
      %1336 = vmatpush.bf16.msra.mxu0 %v1327
      %1337 = vmatpush.bf16.msra.mxu0 %v1326
      %1338 = vmatpush.bf16.msra.mxu0 %v1325
      %1339 = vmatpush.bf16.msra.mxu0 %v1324
      %1340 = vmatpush.bf16.msra.mxu0 %v1323
      %1341 = vmatpush.bf16.msra.mxu0 %v1322
      %1342 = vmatpush.bf16.msra.mxu0 %v1321
      %1343 = vmatpush.bf16.msra.mxu0 %v1320
      %1344 = vmatmul.bf16.gmra.mxu0 %v1267
      %v1345 = vpop.f32.mrf.mxu0
      %v1346 = vadd.f32 %v1286, %v1345
      %v1347 = vpop.f32.mrf.mxu0
      %v1348 = vadd.f32 %v1286, %v1347
      %1349 = vdwg.mxu0
      %v1350 = vadd.f32 %v1129, %v1346
      %v1351 = vadd.f32 %v1130, %v1348
      %1352 = vst.msk [vmem:[%s644] sm:$0xff] %vm659, %v1350
      %1353 = vst.msk [vmem:[%s644 + $0x8] sm:$0xff] %vm659, %v1351
      %p1354 = scmp.lt.s32.totalorder %s28, 1
      %s1355 = scalar_select %p1354, %s28, 1
      %s1356 = smul.addr %s1355, 2
      %s1357 = smul.addr %s1356, 8
      %s1358 = scalar_lea.vmem %s13, %s1357
      // Predicated region
      $region77: #{vit_forward_pallas.4} parent=71 // pred_check
        %p1359 = pneg %p392
      $region78: #{vit_forward_pallas.4} parent=71 // pred_check_branch
        %1361 = sbr.rel (%p1359) target = $region80
      $region79: #{vit_forward_pallas.4} parent=71 // pred_region
        _
      $region80: #{vit_forward_pallas.4} parent=71 // pred_fallthru
        _
    $region72: #{vit_forward_pallas.4} parent=5 // pred_fallthru
      _
    %p1362 = scmp.le.s32.totalorder 2, %s19
    // Predicated region
    $region81: #{vit_forward_pallas.4} parent=5 // pred_check
      %p1363 = pneg %p1362
    $region82: #{vit_forward_pallas.4} parent=5 // pred_check_branch
      %1365 = sbr.rel (%p1363) target = $region84
    $region83: #{vit_forward_pallas.4} parent=5 // pred_region
      %s1366 = ssub.s32 %s19, 2
      // Predicated region
      $region85: #{vit_forward_pallas.4} parent=83 // pred_check
        %p1367 = pneg %p398
      $region86: #{vit_forward_pallas.4} parent=83 // pred_check_branch
        %1369 = sbr.rel (%p1367) target = $region88
      $region87: #{vit_forward_pallas.4} parent=83 // pred_region
        %p1370 = scmp.lt.s32.totalorder %s30, 1
        %s1371 = scalar_select %p1370, %s30, 1
        %s1372 = smul.addr %s1371, 2
        %s1373 = smul.addr %s1372, 8
        %s1374 = scalar_lea.vmem %s13, %s1373
      $region88: #{vit_forward_pallas.4} parent=83 // pred_fallthru
        _
    $region84: #{vit_forward_pallas.4} parent=5 // pred_fallthru
      _
  $region6: #{vit_forward_pallas.4} parent=0 // loop_footer
    %s23 = sadd.s32 1, %s19
  $region7: #{vit_forward_pallas.4} parent=0 // loop_footer_branch
    %18 = sbr.rel target = $region3
  $region8: #{vit_forward_pallas.4} parent=0 // loop_exit
    _

</llo_original>
